<compile_context>
chip_gen: v6e
topology: v6e:2x2x1
jax: 0.10.0
libtpu: 0.0.40
codegen_flags: <defaults>
</compile_context>

<pallas_src>
import jax
import jax.numpy as jnp
from jax import lax
from jax.experimental import pallas as pl
from jax.experimental.pallas import tpu as pltpu


def _make_cnn_kernel(B, C, H, W, n_steps):
    """Builds the fused (conv3x3 + bias + relu) x n_steps kernel."""
    HW = H * W
    TAPS = [(dh, dw) for dh in (-1, 0, 1) for dw in (-1, 0, 1)]  # k = (dh+1)*3+(dw+1)

    def kernel(x_ref, w_ref, b_ref, o_ref):
        # x_ref : (B, C, HW)  VMEM  NC(HW) input state (free reshape of NCHW)
        # w_ref : (C*C*3*3,)  SMEM  flat weights in PyTorch OIHW row-major order
        # b_ref : (C,)        SMEM  bias
        # o_ref : (B, C, HW)  VMEM  output

        # ---------------- hoisted loop invariants ----------------
        # (a) all conv weights as SMEM scalars, read once (not per unrolled step)
        wv = []
        for (dh, dw) in TAPS:
            kh, kw = dh + 1, dw + 1
            wv.append([[w_ref[((o * C + c) * 3 + kh) * 3 + kw] for o in range(C)]
                       for c in range(C)])          # wv[k][c][o] = weight[o,c,kh,kw]

        # (b) bias broadcast slabs (JAX does not CSE broadcast_in_dim -> hoist)
        bias_slabs = [jnp.full((B, HW), b_ref[o], dtype=jnp.float32)
                      for o in range(C)]

        # (c) 0/1 boundary masks per tap, computed in-kernel from iota and hoisted
        lane = lax.broadcasted_iota(jnp.int32, (B, HW), 1)
        if W & (W - 1) == 0:
            w_idx = jnp.bitwise_and(lane, W - 1)          # lane % W (power-of-2 W)
        else:
            w_idx = lane % W   # TODO(synk): general-W path relies on int32 rem lowering
        masks = {}
        for k, (dh, dw) in enumerate(TAPS):
            if dh == 0 and dw == 0:
                continue
            conds = []
            if dh < 0:
                conds.append(lane >= (-dh) * W)           # h_idx + dh >= 0
            if dh > 0:
                conds.append(lane < (H - dh) * W)         # h_idx + dh < H
            if dw < 0:
                conds.append(w_idx >= -dw)                # w_idx + dw >= 0
            if dw > 0:
                conds.append(w_idx < W - dw)              # w_idx + dw < W
            cond = conds[0]
            for extra in conds[1:]:
                cond = jnp.logical_and(cond, extra)
            masks[k] = cond.astype(jnp.float32)

        # (d) initial state: per-channel (B, HW) slabs, loaded once
        xs0 = tuple(x_ref[:, c, :] for c in range(C))

        # ---------------- fused step loop ----------------
        def step_body(_, xs):
            accs = list(bias_slabs)
            for k, (dh, dw) in enumerate(TAPS):
                off = dh * W + dw
                if off == 0:
                    shifted = xs                       # center tap: no shift, no mask
                else:
                    mk = masks[k]
                    s = (-off) % HW                    # static, non-negative
                    shifted = tuple(pltpu.roll(xs[c], shift=s, axis=1) * mk
                                    for c in range(C))
                for c in range(C):
                    sh = shifted[c]
                    wc = wv[k][c]
                    for o in range(C):
                        # scalar (SMEM) * slab broadcast-FMA on the VPU
                        accs[o] = accs[o] + wc[o] * sh
            return tuple(jnp.maximum(a, 0.0) for a in accs)

        xs_final = lax.fori_loop(0, n_steps, step_body, xs0, unroll=True)
        for o in range(C):
            o_ref[:, o, :] = xs_final[o]

    return kernel


def cnn_forward(x, weight, bias, n_steps):
    """CNN.forward: x:(B,C,H,W), weight:(Cout,Cin,3,3), bias:(Cout,)."""
    B, C, H, W = x.shape
    Cout, Cin, KH, KW = weight.shape
    assert (Cout, Cin, KH, KW) == (C, C, 3, 3)
    HW = H * W

    # Only free (row-major) reshapes on the host — no transposes, no broadcasts.
    x_flat = x.reshape(B, C, HW).astype(jnp.float32)
    w_flat = weight.reshape(-1).astype(jnp.float32)    # PyTorch OIHW order, untouched
    b_flat = bias.astype(jnp.float32)

    kernel = _make_cnn_kernel(B, C, H, W, n_steps)
    out = pl.pallas_call(
        kernel,
        out_shape=jax.ShapeDtypeStruct((B, C, HW), jnp.float32),
        in_specs=[
            pl.BlockSpec(memory_space=pltpu.MemorySpace.VMEM),   # x (state)
            pl.BlockSpec(memory_space=pltpu.MemorySpace.SMEM),   # weights (scalars)
            pl.BlockSpec(memory_space=pltpu.MemorySpace.SMEM),   # bias (scalars)
        ],
        out_specs=pl.BlockSpec(memory_space=pltpu.MemorySpace.VMEM),
    )(x_flat, w_flat, b_flat)

    return out.reshape(B, C, H, W).astype(x.dtype)


def _ref_forward(x, weight, bias, n_steps):
    """Pure-JAX reference (matches PyTorch Conv2d + ReLU)."""
    for _ in range(n_steps):
        y = lax.conv_general_dilated(
            x, weight, window_strides=(1, 1), padding=((1, 1), (1, 1)),
            dimension_numbers=("NCHW", "OIHW", "NCHW"))
        x = jnp.maximum(y + bias.reshape(1, -1, 1, 1), 0.0)
    return x


if __name__ == "__main__":
    state_dim = 4          # in = out channels of the conv
    min_step, max_step = 2, 5
    B, H, W = 2, 16, 16

    # TODO(synk): PyTorch draws n_steps = np.random.randint(min_step, max_step)
    # per forward (host RNG); fixed here so the fused kernel graph is static.
    n_steps = (min_step + max_step) // 2   # = 3, within [min_step, max_step)

    key = jax.random.PRNGKey(0)
    kx, kw, kb = jax.random.split(key, 3)
    weight = jax.random.normal(kw, (state_dim, state_dim, 3, 3), jnp.float32) * 0.1
    bias = jax.random.normal(kb, (state_dim,), jnp.float32) * 0.1
    x = jax.random.normal(kx, (B, state_dim, H, W), jnp.float32)

    fwd = jax.jit(cnn_forward, static_argnames=("n_steps",))
    out = jax.block_until_ready(fwd(x, weight, bias, n_steps=n_steps))

    ref = _ref_forward(x, weight, bias, n_steps)
    assert out.shape == (B, state_dim, H, W)
    assert bool(jnp.all(out >= 0.0))
    max_err = float(jnp.max(jnp.abs(out - ref)))
    assert max_err < 1e-4, f"max abs err vs reference: {max_err}"
    print("KERNEL_OK")
</pallas_src>

<mosaic_0001>
module attributes {stable_mosaic.version = 11 : i64} {
  func.func @kernel(%arg0: memref<2x4x256xf32, #tpu.memory_space<vmem>>, %arg1: memref<144xf32, #tpu.memory_space<smem>>, %arg2: memref<4xf32, #tpu.memory_space<smem>>, %arg3: memref<2x4x256xf32, #tpu.memory_space<vmem>>) attributes {dimension_semantics = [], scalar_prefetch = 0 : i64, scratch_operands = 0 : i64, tpu.core_type = #tpu.core_type<tc>} {
    %c0 = arith.constant 0 : index
    %0 = memref.load %arg1[%c0] : memref<144xf32, #tpu.memory_space<smem>>
    %c36 = arith.constant 36 : index
    %1 = memref.load %arg1[%c36] : memref<144xf32, #tpu.memory_space<smem>>
    %c72 = arith.constant 72 : index
    %2 = memref.load %arg1[%c72] : memref<144xf32, #tpu.memory_space<smem>>
    %c108 = arith.constant 108 : index
    %3 = memref.load %arg1[%c108] : memref<144xf32, #tpu.memory_space<smem>>
    %c9 = arith.constant 9 : index
    %4 = memref.load %arg1[%c9] : memref<144xf32, #tpu.memory_space<smem>>
    %c45 = arith.constant 45 : index
    %5 = memref.load %arg1[%c45] : memref<144xf32, #tpu.memory_space<smem>>
    %c81 = arith.constant 81 : index
    %6 = memref.load %arg1[%c81] : memref<144xf32, #tpu.memory_space<smem>>
    %c117 = arith.constant 117 : index
    %7 = memref.load %arg1[%c117] : memref<144xf32, #tpu.memory_space<smem>>
    %c18 = arith.constant 18 : index
    %8 = memref.load %arg1[%c18] : memref<144xf32, #tpu.memory_space<smem>>
    %c54 = arith.constant 54 : index
    %9 = memref.load %arg1[%c54] : memref<144xf32, #tpu.memory_space<smem>>
    %c90 = arith.constant 90 : index
    %10 = memref.load %arg1[%c90] : memref<144xf32, #tpu.memory_space<smem>>
    %c126 = arith.constant 126 : index
    %11 = memref.load %arg1[%c126] : memref<144xf32, #tpu.memory_space<smem>>
    %c27 = arith.constant 27 : index
    %12 = memref.load %arg1[%c27] : memref<144xf32, #tpu.memory_space<smem>>
    %c63 = arith.constant 63 : index
    %13 = memref.load %arg1[%c63] : memref<144xf32, #tpu.memory_space<smem>>
    %c99 = arith.constant 99 : index
    %14 = memref.load %arg1[%c99] : memref<144xf32, #tpu.memory_space<smem>>
    %c135 = arith.constant 135 : index
    %15 = memref.load %arg1[%c135] : memref<144xf32, #tpu.memory_space<smem>>
    %c1 = arith.constant 1 : index
    %16 = memref.load %arg1[%c1] : memref<144xf32, #tpu.memory_space<smem>>
    %c37 = arith.constant 37 : index
    %17 = memref.load %arg1[%c37] : memref<144xf32, #tpu.memory_space<smem>>
    %c73 = arith.constant 73 : index
    %18 = memref.load %arg1[%c73] : memref<144xf32, #tpu.memory_space<smem>>
    %c109 = arith.constant 109 : index
    %19 = memref.load %arg1[%c109] : memref<144xf32, #tpu.memory_space<smem>>
    %c10 = arith.constant 10 : index
    %20 = memref.load %arg1[%c10] : memref<144xf32, #tpu.memory_space<smem>>
    %c46 = arith.constant 46 : index
    %21 = memref.load %arg1[%c46] : memref<144xf32, #tpu.memory_space<smem>>
    %c82 = arith.constant 82 : index
    %22 = memref.load %arg1[%c82] : memref<144xf32, #tpu.memory_space<smem>>
    %c118 = arith.constant 118 : index
    %23 = memref.load %arg1[%c118] : memref<144xf32, #tpu.memory_space<smem>>
    %c19 = arith.constant 19 : index
    %24 = memref.load %arg1[%c19] : memref<144xf32, #tpu.memory_space<smem>>
    %c55 = arith.constant 55 : index
    %25 = memref.load %arg1[%c55] : memref<144xf32, #tpu.memory_space<smem>>
    %c91 = arith.constant 91 : index
    %26 = memref.load %arg1[%c91] : memref<144xf32, #tpu.memory_space<smem>>
    %c127 = arith.constant 127 : index
    %27 = memref.load %arg1[%c127] : memref<144xf32, #tpu.memory_space<smem>>
    %c28 = arith.constant 28 : index
    %28 = memref.load %arg1[%c28] : memref<144xf32, #tpu.memory_space<smem>>
    %c64 = arith.constant 64 : index
    %29 = memref.load %arg1[%c64] : memref<144xf32, #tpu.memory_space<smem>>
    %c100 = arith.constant 100 : index
    %30 = memref.load %arg1[%c100] : memref<144xf32, #tpu.memory_space<smem>>
    %c136 = arith.constant 136 : index
    %31 = memref.load %arg1[%c136] : memref<144xf32, #tpu.memory_space<smem>>
    %c2 = arith.constant 2 : index
    %32 = memref.load %arg1[%c2] : memref<144xf32, #tpu.memory_space<smem>>
    %c38 = arith.constant 38 : index
    %33 = memref.load %arg1[%c38] : memref<144xf32, #tpu.memory_space<smem>>
    %c74 = arith.constant 74 : index
    %34 = memref.load %arg1[%c74] : memref<144xf32, #tpu.memory_space<smem>>
    %c110 = arith.constant 110 : index
    %35 = memref.load %arg1[%c110] : memref<144xf32, #tpu.memory_space<smem>>
    %c11 = arith.constant 11 : index
    %36 = memref.load %arg1[%c11] : memref<144xf32, #tpu.memory_space<smem>>
    %c47 = arith.constant 47 : index
    %37 = memref.load %arg1[%c47] : memref<144xf32, #tpu.memory_space<smem>>
    %c83 = arith.constant 83 : index
    %38 = memref.load %arg1[%c83] : memref<144xf32, #tpu.memory_space<smem>>
    %c119 = arith.constant 119 : index
    %39 = memref.load %arg1[%c119] : memref<144xf32, #tpu.memory_space<smem>>
    %c20 = arith.constant 20 : index
    %40 = memref.load %arg1[%c20] : memref<144xf32, #tpu.memory_space<smem>>
    %c56 = arith.constant 56 : index
    %41 = memref.load %arg1[%c56] : memref<144xf32, #tpu.memory_space<smem>>
    %c92 = arith.constant 92 : index
    %42 = memref.load %arg1[%c92] : memref<144xf32, #tpu.memory_space<smem>>
    %c128 = arith.constant 128 : index
    %43 = memref.load %arg1[%c128] : memref<144xf32, #tpu.memory_space<smem>>
    %c29 = arith.constant 29 : index
    %44 = memref.load %arg1[%c29] : memref<144xf32, #tpu.memory_space<smem>>
    %c65 = arith.constant 65 : index
    %45 = memref.load %arg1[%c65] : memref<144xf32, #tpu.memory_space<smem>>
    %c101 = arith.constant 101 : index
    %46 = memref.load %arg1[%c101] : memref<144xf32, #tpu.memory_space<smem>>
    %c137 = arith.constant 137 : index
    %47 = memref.load %arg1[%c137] : memref<144xf32, #tpu.memory_space<smem>>
    %c3 = arith.constant 3 : index
    %48 = memref.load %arg1[%c3] : memref<144xf32, #tpu.memory_space<smem>>
    %c39 = arith.constant 39 : index
    %49 = memref.load %arg1[%c39] : memref<144xf32, #tpu.memory_space<smem>>
    %c75 = arith.constant 75 : index
    %50 = memref.load %arg1[%c75] : memref<144xf32, #tpu.memory_space<smem>>
    %c111 = arith.constant 111 : index
    %51 = memref.load %arg1[%c111] : memref<144xf32, #tpu.memory_space<smem>>
    %c12 = arith.constant 12 : index
    %52 = memref.load %arg1[%c12] : memref<144xf32, #tpu.memory_space<smem>>
    %c48 = arith.constant 48 : index
    %53 = memref.load %arg1[%c48] : memref<144xf32, #tpu.memory_space<smem>>
    %c84 = arith.constant 84 : index
    %54 = memref.load %arg1[%c84] : memref<144xf32, #tpu.memory_space<smem>>
    %c120 = arith.constant 120 : index
    %55 = memref.load %arg1[%c120] : memref<144xf32, #tpu.memory_space<smem>>
    %c21 = arith.constant 21 : index
    %56 = memref.load %arg1[%c21] : memref<144xf32, #tpu.memory_space<smem>>
    %c57 = arith.constant 57 : index
    %57 = memref.load %arg1[%c57] : memref<144xf32, #tpu.memory_space<smem>>
    %c93 = arith.constant 93 : index
    %58 = memref.load %arg1[%c93] : memref<144xf32, #tpu.memory_space<smem>>
    %c129 = arith.constant 129 : index
    %59 = memref.load %arg1[%c129] : memref<144xf32, #tpu.memory_space<smem>>
    %c30 = arith.constant 30 : index
    %60 = memref.load %arg1[%c30] : memref<144xf32, #tpu.memory_space<smem>>
    %c66 = arith.constant 66 : index
    %61 = memref.load %arg1[%c66] : memref<144xf32, #tpu.memory_space<smem>>
    %c102 = arith.constant 102 : index
    %62 = memref.load %arg1[%c102] : memref<144xf32, #tpu.memory_space<smem>>
    %c138 = arith.constant 138 : index
    %63 = memref.load %arg1[%c138] : memref<144xf32, #tpu.memory_space<smem>>
    %c4 = arith.constant 4 : index
    %64 = memref.load %arg1[%c4] : memref<144xf32, #tpu.memory_space<smem>>
    %c40 = arith.constant 40 : index
    %65 = memref.load %arg1[%c40] : memref<144xf32, #tpu.memory_space<smem>>
    %c76 = arith.constant 76 : index
    %66 = memref.load %arg1[%c76] : memref<144xf32, #tpu.memory_space<smem>>
    %c112 = arith.constant 112 : index
    %67 = memref.load %arg1[%c112] : memref<144xf32, #tpu.memory_space<smem>>
    %c13 = arith.constant 13 : index
    %68 = memref.load %arg1[%c13] : memref<144xf32, #tpu.memory_space<smem>>
    %c49 = arith.constant 49 : index
    %69 = memref.load %arg1[%c49] : memref<144xf32, #tpu.memory_space<smem>>
    %c85 = arith.constant 85 : index
    %70 = memref.load %arg1[%c85] : memref<144xf32, #tpu.memory_space<smem>>
    %c121 = arith.constant 121 : index
    %71 = memref.load %arg1[%c121] : memref<144xf32, #tpu.memory_space<smem>>
    %c22 = arith.constant 22 : index
    %72 = memref.load %arg1[%c22] : memref<144xf32, #tpu.memory_space<smem>>
    %c58 = arith.constant 58 : index
    %73 = memref.load %arg1[%c58] : memref<144xf32, #tpu.memory_space<smem>>
    %c94 = arith.constant 94 : index
    %74 = memref.load %arg1[%c94] : memref<144xf32, #tpu.memory_space<smem>>
    %c130 = arith.constant 130 : index
    %75 = memref.load %arg1[%c130] : memref<144xf32, #tpu.memory_space<smem>>
    %c31 = arith.constant 31 : index
    %76 = memref.load %arg1[%c31] : memref<144xf32, #tpu.memory_space<smem>>
    %c67 = arith.constant 67 : index
    %77 = memref.load %arg1[%c67] : memref<144xf32, #tpu.memory_space<smem>>
    %c103 = arith.constant 103 : index
    %78 = memref.load %arg1[%c103] : memref<144xf32, #tpu.memory_space<smem>>
    %c139 = arith.constant 139 : index
    %79 = memref.load %arg1[%c139] : memref<144xf32, #tpu.memory_space<smem>>
    %c5 = arith.constant 5 : index
    %80 = memref.load %arg1[%c5] : memref<144xf32, #tpu.memory_space<smem>>
    %c41 = arith.constant 41 : index
    %81 = memref.load %arg1[%c41] : memref<144xf32, #tpu.memory_space<smem>>
    %c77 = arith.constant 77 : index
    %82 = memref.load %arg1[%c77] : memref<144xf32, #tpu.memory_space<smem>>
    %c113 = arith.constant 113 : index
    %83 = memref.load %arg1[%c113] : memref<144xf32, #tpu.memory_space<smem>>
    %c14 = arith.constant 14 : index
    %84 = memref.load %arg1[%c14] : memref<144xf32, #tpu.memory_space<smem>>
    %c50 = arith.constant 50 : index
    %85 = memref.load %arg1[%c50] : memref<144xf32, #tpu.memory_space<smem>>
    %c86 = arith.constant 86 : index
    %86 = memref.load %arg1[%c86] : memref<144xf32, #tpu.memory_space<smem>>
    %c122 = arith.constant 122 : index
    %87 = memref.load %arg1[%c122] : memref<144xf32, #tpu.memory_space<smem>>
    %c23 = arith.constant 23 : index
    %88 = memref.load %arg1[%c23] : memref<144xf32, #tpu.memory_space<smem>>
    %c59 = arith.constant 59 : index
    %89 = memref.load %arg1[%c59] : memref<144xf32, #tpu.memory_space<smem>>
    %c95 = arith.constant 95 : index
    %90 = memref.load %arg1[%c95] : memref<144xf32, #tpu.memory_space<smem>>
    %c131 = arith.constant 131 : index
    %91 = memref.load %arg1[%c131] : memref<144xf32, #tpu.memory_space<smem>>
    %c32 = arith.constant 32 : index
    %92 = memref.load %arg1[%c32] : memref<144xf32, #tpu.memory_space<smem>>
    %c68 = arith.constant 68 : index
    %93 = memref.load %arg1[%c68] : memref<144xf32, #tpu.memory_space<smem>>
    %c104 = arith.constant 104 : index
    %94 = memref.load %arg1[%c104] : memref<144xf32, #tpu.memory_space<smem>>
    %c140 = arith.constant 140 : index
    %95 = memref.load %arg1[%c140] : memref<144xf32, #tpu.memory_space<smem>>
    %c6 = arith.constant 6 : index
    %96 = memref.load %arg1[%c6] : memref<144xf32, #tpu.memory_space<smem>>
    %c42 = arith.constant 42 : index
    %97 = memref.load %arg1[%c42] : memref<144xf32, #tpu.memory_space<smem>>
    %c78 = arith.constant 78 : index
    %98 = memref.load %arg1[%c78] : memref<144xf32, #tpu.memory_space<smem>>
    %c114 = arith.constant 114 : index
    %99 = memref.load %arg1[%c114] : memref<144xf32, #tpu.memory_space<smem>>
    %c15 = arith.constant 15 : index
    %100 = memref.load %arg1[%c15] : memref<144xf32, #tpu.memory_space<smem>>
    %c51 = arith.constant 51 : index
    %101 = memref.load %arg1[%c51] : memref<144xf32, #tpu.memory_space<smem>>
    %c87 = arith.constant 87 : index
    %102 = memref.load %arg1[%c87] : memref<144xf32, #tpu.memory_space<smem>>
    %c123 = arith.constant 123 : index
    %103 = memref.load %arg1[%c123] : memref<144xf32, #tpu.memory_space<smem>>
    %c24 = arith.constant 24 : index
    %104 = memref.load %arg1[%c24] : memref<144xf32, #tpu.memory_space<smem>>
    %c60 = arith.constant 60 : index
    %105 = memref.load %arg1[%c60] : memref<144xf32, #tpu.memory_space<smem>>
    %c96 = arith.constant 96 : index
    %106 = memref.load %arg1[%c96] : memref<144xf32, #tpu.memory_space<smem>>
    %c132 = arith.constant 132 : index
    %107 = memref.load %arg1[%c132] : memref<144xf32, #tpu.memory_space<smem>>
    %c33 = arith.constant 33 : index
    %108 = memref.load %arg1[%c33] : memref<144xf32, #tpu.memory_space<smem>>
    %c69 = arith.constant 69 : index
    %109 = memref.load %arg1[%c69] : memref<144xf32, #tpu.memory_space<smem>>
    %c105 = arith.constant 105 : index
    %110 = memref.load %arg1[%c105] : memref<144xf32, #tpu.memory_space<smem>>
    %c141 = arith.constant 141 : index
    %111 = memref.load %arg1[%c141] : memref<144xf32, #tpu.memory_space<smem>>
    %c7 = arith.constant 7 : index
    %112 = memref.load %arg1[%c7] : memref<144xf32, #tpu.memory_space<smem>>
    %c43 = arith.constant 43 : index
    %113 = memref.load %arg1[%c43] : memref<144xf32, #tpu.memory_space<smem>>
    %c79 = arith.constant 79 : index
    %114 = memref.load %arg1[%c79] : memref<144xf32, #tpu.memory_space<smem>>
    %c115 = arith.constant 115 : index
    %115 = memref.load %arg1[%c115] : memref<144xf32, #tpu.memory_space<smem>>
    %c16 = arith.constant 16 : index
    %116 = memref.load %arg1[%c16] : memref<144xf32, #tpu.memory_space<smem>>
    %c52 = arith.constant 52 : index
    %117 = memref.load %arg1[%c52] : memref<144xf32, #tpu.memory_space<smem>>
    %c88 = arith.constant 88 : index
    %118 = memref.load %arg1[%c88] : memref<144xf32, #tpu.memory_space<smem>>
    %c124 = arith.constant 124 : index
    %119 = memref.load %arg1[%c124] : memref<144xf32, #tpu.memory_space<smem>>
    %c25 = arith.constant 25 : index
    %120 = memref.load %arg1[%c25] : memref<144xf32, #tpu.memory_space<smem>>
    %c61 = arith.constant 61 : index
    %121 = memref.load %arg1[%c61] : memref<144xf32, #tpu.memory_space<smem>>
    %c97 = arith.constant 97 : index
    %122 = memref.load %arg1[%c97] : memref<144xf32, #tpu.memory_space<smem>>
    %c133 = arith.constant 133 : index
    %123 = memref.load %arg1[%c133] : memref<144xf32, #tpu.memory_space<smem>>
    %c34 = arith.constant 34 : index
    %124 = memref.load %arg1[%c34] : memref<144xf32, #tpu.memory_space<smem>>
    %c70 = arith.constant 70 : index
    %125 = memref.load %arg1[%c70] : memref<144xf32, #tpu.memory_space<smem>>
    %c106 = arith.constant 106 : index
    %126 = memref.load %arg1[%c106] : memref<144xf32, #tpu.memory_space<smem>>
    %c142 = arith.constant 142 : index
    %127 = memref.load %arg1[%c142] : memref<144xf32, #tpu.memory_space<smem>>
    %c8 = arith.constant 8 : index
    %128 = memref.load %arg1[%c8] : memref<144xf32, #tpu.memory_space<smem>>
    %c44 = arith.constant 44 : index
    %129 = memref.load %arg1[%c44] : memref<144xf32, #tpu.memory_space<smem>>
    %c80 = arith.constant 80 : index
    %130 = memref.load %arg1[%c80] : memref<144xf32, #tpu.memory_space<smem>>
    %c116 = arith.constant 116 : index
    %131 = memref.load %arg1[%c116] : memref<144xf32, #tpu.memory_space<smem>>
    %c17 = arith.constant 17 : index
    %132 = memref.load %arg1[%c17] : memref<144xf32, #tpu.memory_space<smem>>
    %c53 = arith.constant 53 : index
    %133 = memref.load %arg1[%c53] : memref<144xf32, #tpu.memory_space<smem>>
    %c89 = arith.constant 89 : index
    %134 = memref.load %arg1[%c89] : memref<144xf32, #tpu.memory_space<smem>>
    %c125 = arith.constant 125 : index
    %135 = memref.load %arg1[%c125] : memref<144xf32, #tpu.memory_space<smem>>
    %c26 = arith.constant 26 : index
    %136 = memref.load %arg1[%c26] : memref<144xf32, #tpu.memory_space<smem>>
    %c62 = arith.constant 62 : index
    %137 = memref.load %arg1[%c62] : memref<144xf32, #tpu.memory_space<smem>>
    %c98 = arith.constant 98 : index
    %138 = memref.load %arg1[%c98] : memref<144xf32, #tpu.memory_space<smem>>
    %c134 = arith.constant 134 : index
    %139 = memref.load %arg1[%c134] : memref<144xf32, #tpu.memory_space<smem>>
    %c35 = arith.constant 35 : index
    %140 = memref.load %arg1[%c35] : memref<144xf32, #tpu.memory_space<smem>>
    %c71 = arith.constant 71 : index
    %141 = memref.load %arg1[%c71] : memref<144xf32, #tpu.memory_space<smem>>
    %c107 = arith.constant 107 : index
    %142 = memref.load %arg1[%c107] : memref<144xf32, #tpu.memory_space<smem>>
    %c143 = arith.constant 143 : index
    %143 = memref.load %arg1[%c143] : memref<144xf32, #tpu.memory_space<smem>>
    %c0_0 = arith.constant 0 : index
    %144 = memref.load %arg2[%c0_0] : memref<4xf32, #tpu.memory_space<smem>>
    %145 = vector.broadcast %144 : f32 to vector<2x256xf32>
    %c1_1 = arith.constant 1 : index
    %146 = memref.load %arg2[%c1_1] : memref<4xf32, #tpu.memory_space<smem>>
    %147 = vector.broadcast %146 : f32 to vector<2x256xf32>
    %c2_2 = arith.constant 2 : index
    %148 = memref.load %arg2[%c2_2] : memref<4xf32, #tpu.memory_space<smem>>
    %149 = vector.broadcast %148 : f32 to vector<2x256xf32>
    %c3_3 = arith.constant 3 : index
    %150 = memref.load %arg2[%c3_3] : memref<4xf32, #tpu.memory_space<smem>>
    %151 = vector.broadcast %150 : f32 to vector<2x256xf32>
    %152 = tpu.iota {dimensions = array<i32: 1>} : vector<2x256xi32>
    %c15_i32 = arith.constant 15 : i32
    %153 = vector.broadcast %c15_i32 : i32 to vector<2x256xi32>
    %154 = arith.andi %152, %153 : vector<2x256xi32>
    %c16_i32 = arith.constant 16 : i32
    %155 = vector.broadcast %c16_i32 : i32 to vector<2x256xi32>
    %156 = arith.cmpi sge, %152, %155 : vector<2x256xi32>
    %c1_i32 = arith.constant 1 : i32
    %157 = vector.broadcast %c1_i32 : i32 to vector<2x256xi32>
    %158 = arith.cmpi sge, %154, %157 : vector<2x256xi32>
    %159 = arith.andi %156, %158 : vector<2x256xi1>
    %160 = arith.extui %159 : vector<2x256xi1> to vector<2x256xi32>
    %161 = arith.sitofp %160 : vector<2x256xi32> to vector<2x256xf32>
    %c16_i32_4 = arith.constant 16 : i32
    %162 = vector.broadcast %c16_i32_4 : i32 to vector<2x256xi32>
    %163 = arith.cmpi sge, %152, %162 : vector<2x256xi32>
    %164 = arith.extui %163 : vector<2x256xi1> to vector<2x256xi32>
    %165 = arith.sitofp %164 : vector<2x256xi32> to vector<2x256xf32>
    %c16_i32_5 = arith.constant 16 : i32
    %166 = vector.broadcast %c16_i32_5 : i32 to vector<2x256xi32>
    %167 = arith.cmpi sge, %152, %166 : vector<2x256xi32>
    %c15_i32_6 = arith.constant 15 : i32
    %168 = vector.broadcast %c15_i32_6 : i32 to vector<2x256xi32>
    %169 = arith.cmpi slt, %154, %168 : vector<2x256xi32>
    %170 = arith.andi %167, %169 : vector<2x256xi1>
    %171 = arith.extui %170 : vector<2x256xi1> to vector<2x256xi32>
    %172 = arith.sitofp %171 : vector<2x256xi32> to vector<2x256xf32>
    %c1_i32_7 = arith.constant 1 : i32
    %173 = vector.broadcast %c1_i32_7 : i32 to vector<2x256xi32>
    %174 = arith.cmpi sge, %154, %173 : vector<2x256xi32>
    %175 = arith.extui %174 : vector<2x256xi1> to vector<2x256xi32>
    %176 = arith.sitofp %175 : vector<2x256xi32> to vector<2x256xf32>
    %c15_i32_8 = arith.constant 15 : i32
    %177 = vector.broadcast %c15_i32_8 : i32 to vector<2x256xi32>
    %178 = arith.cmpi slt, %154, %177 : vector<2x256xi32>
    %179 = arith.extui %178 : vector<2x256xi1> to vector<2x256xi32>
    %180 = arith.sitofp %179 : vector<2x256xi32> to vector<2x256xf32>
    %c240_i32 = arith.constant 240 : i32
    %181 = vector.broadcast %c240_i32 : i32 to vector<2x256xi32>
    %182 = arith.cmpi slt, %152, %181 : vector<2x256xi32>
    %c1_i32_9 = arith.constant 1 : i32
    %183 = vector.broadcast %c1_i32_9 : i32 to vector<2x256xi32>
    %184 = arith.cmpi sge, %154, %183 : vector<2x256xi32>
    %185 = arith.andi %182, %184 : vector<2x256xi1>
    %186 = arith.extui %185 : vector<2x256xi1> to vector<2x256xi32>
    %187 = arith.sitofp %186 : vector<2x256xi32> to vector<2x256xf32>
    %c240_i32_10 = arith.constant 240 : i32
    %188 = vector.broadcast %c240_i32_10 : i32 to vector<2x256xi32>
    %189 = arith.cmpi slt, %152, %188 : vector<2x256xi32>
    %190 = arith.extui %189 : vector<2x256xi1> to vector<2x256xi32>
    %191 = arith.sitofp %190 : vector<2x256xi32> to vector<2x256xf32>
    %c240_i32_11 = arith.constant 240 : i32
    %192 = vector.broadcast %c240_i32_11 : i32 to vector<2x256xi32>
    %193 = arith.cmpi slt, %152, %192 : vector<2x256xi32>
    %c15_i32_12 = arith.constant 15 : i32
    %194 = vector.broadcast %c15_i32_12 : i32 to vector<2x256xi32>
    %195 = arith.cmpi slt, %154, %194 : vector<2x256xi32>
    %196 = arith.andi %193, %195 : vector<2x256xi1>
    %197 = arith.extui %196 : vector<2x256xi1> to vector<2x256xi32>
    %198 = arith.sitofp %197 : vector<2x256xi32> to vector<2x256xf32>
    %c0_13 = arith.constant 0 : index
    %c0_14 = arith.constant 0 : index
    %c0_15 = arith.constant 0 : index
    %199 = vector.load %arg0[%c0_13, %c0_14, %c0_15] : memref<2x4x256xf32, #tpu.memory_space<vmem>>, vector<2x1x256xf32>
    %200 = vector.shape_cast %199 : vector<2x1x256xf32> to vector<2x256xf32>
    %c0_16 = arith.constant 0 : index
    %c1_17 = arith.constant 1 : index
    %c0_18 = arith.constant 0 : index
    %201 = vector.load %arg0[%c0_16, %c1_17, %c0_18] : memref<2x4x256xf32, #tpu.memory_space<vmem>>, vector<2x1x256xf32>
    %202 = vector.shape_cast %201 : vector<2x1x256xf32> to vector<2x256xf32>
    %c0_19 = arith.constant 0 : index
    %c2_20 = arith.constant 2 : index
    %c0_21 = arith.constant 0 : index
    %203 = vector.load %arg0[%c0_19, %c2_20, %c0_21] : memref<2x4x256xf32, #tpu.memory_space<vmem>>, vector<2x1x256xf32>
    %204 = vector.shape_cast %203 : vector<2x1x256xf32> to vector<2x256xf32>
    %c0_22 = arith.constant 0 : index
    %c3_23 = arith.constant 3 : index
    %c0_24 = arith.constant 0 : index
    %205 = vector.load %arg0[%c0_22, %c3_23, %c0_24] : memref<2x4x256xf32, #tpu.memory_space<vmem>>, vector<2x1x256xf32>
    %206 = vector.shape_cast %205 : vector<2x1x256xf32> to vector<2x256xf32>
    %c0_i32 = arith.constant 0 : i32
    %c17_i32 = arith.constant 17 : i32
    %207 = tpu.dynamic_rotate %200 by %c17_i32 dim 1 : vector<2x256xf32>, i32 -> vector<2x256xf32>
    %208 = arith.mulf %207, %161 : vector<2x256xf32>
    %c17_i32_25 = arith.constant 17 : i32
    %209 = tpu.dynamic_rotate %202 by %c17_i32_25 dim 1 : vector<2x256xf32>, i32 -> vector<2x256xf32>
    %210 = arith.mulf %209, %161 : vector<2x256xf32>
    %c17_i32_26 = arith.constant 17 : i32
    %211 = tpu.dynamic_rotate %204 by %c17_i32_26 dim 1 : vector<2x256xf32>, i32 -> vector<2x256xf32>
    %212 = arith.mulf %211, %161 : vector<2x256xf32>
    %c17_i32_27 = arith.constant 17 : i32
    %213 = tpu.dynamic_rotate %206 by %c17_i32_27 dim 1 : vector<2x256xf32>, i32 -> vector<2x256xf32>
    %214 = arith.mulf %213, %161 : vector<2x256xf32>
    %215 = vector.broadcast %0 : f32 to vector<2x256xf32>
    %216 = arith.mulf %215, %208 : vector<2x256xf32>
    %217 = arith.addf %145, %216 : vector<2x256xf32>
    %218 = vector.broadcast %1 : f32 to vector<2x256xf32>
    %219 = arith.mulf %218, %208 : vector<2x256xf32>
    %220 = arith.addf %147, %219 : vector<2x256xf32>
    %221 = vector.broadcast %2 : f32 to vector<2x256xf32>
    %222 = arith.mulf %221, %208 : vector<2x256xf32>
    %223 = arith.addf %149, %222 : vector<2x256xf32>
    %224 = vector.broadcast %3 : f32 to vector<2x256xf32>
    %225 = arith.mulf %224, %208 : vector<2x256xf32>
    %226 = arith.addf %151, %225 : vector<2x256xf32>
    %227 = vector.broadcast %4 : f32 to vector<2x256xf32>
    %228 = arith.mulf %227, %210 : vector<2x256xf32>
    %229 = arith.addf %217, %228 : vector<2x256xf32>
    %230 = vector.broadcast %5 : f32 to vector<2x256xf32>
    %231 = arith.mulf %230, %210 : vector<2x256xf32>
    %232 = arith.addf %220, %231 : vector<2x256xf32>
    %233 = vector.broadcast %6 : f32 to vector<2x256xf32>
    %234 = arith.mulf %233, %210 : vector<2x256xf32>
    %235 = arith.addf %223, %234 : vector<2x256xf32>
    %236 = vector.broadcast %7 : f32 to vector<2x256xf32>
    %237 = arith.mulf %236, %210 : vector<2x256xf32>
    %238 = arith.addf %226, %237 : vector<2x256xf32>
    %239 = vector.broadcast %8 : f32 to vector<2x256xf32>
    %240 = arith.mulf %239, %212 : vector<2x256xf32>
    %241 = arith.addf %229, %240 : vector<2x256xf32>
    %242 = vector.broadcast %9 : f32 to vector<2x256xf32>
    %243 = arith.mulf %242, %212 : vector<2x256xf32>
    %244 = arith.addf %232, %243 : vector<2x256xf32>
    %245 = vector.broadcast %10 : f32 to vector<2x256xf32>
    %246 = arith.mulf %245, %212 : vector<2x256xf32>
    %247 = arith.addf %235, %246 : vector<2x256xf32>
    %248 = vector.broadcast %11 : f32 to vector<2x256xf32>
    %249 = arith.mulf %248, %212 : vector<2x256xf32>
    %250 = arith.addf %238, %249 : vector<2x256xf32>
    %251 = vector.broadcast %12 : f32 to vector<2x256xf32>
    %252 = arith.mulf %251, %214 : vector<2x256xf32>
    %253 = arith.addf %241, %252 : vector<2x256xf32>
    %254 = vector.broadcast %13 : f32 to vector<2x256xf32>
    %255 = arith.mulf %254, %214 : vector<2x256xf32>
    %256 = arith.addf %244, %255 : vector<2x256xf32>
    %257 = vector.broadcast %14 : f32 to vector<2x256xf32>
    %258 = arith.mulf %257, %214 : vector<2x256xf32>
    %259 = arith.addf %247, %258 : vector<2x256xf32>
    %260 = vector.broadcast %15 : f32 to vector<2x256xf32>
    %261 = arith.mulf %260, %214 : vector<2x256xf32>
    %262 = arith.addf %250, %261 : vector<2x256xf32>
    %c16_i32_28 = arith.constant 16 : i32
    %263 = tpu.dynamic_rotate %200 by %c16_i32_28 dim 1 : vector<2x256xf32>, i32 -> vector<2x256xf32>
    %264 = arith.mulf %263, %165 : vector<2x256xf32>
    %c16_i32_29 = arith.constant 16 : i32
    %265 = tpu.dynamic_rotate %202 by %c16_i32_29 dim 1 : vector<2x256xf32>, i32 -> vector<2x256xf32>
    %266 = arith.mulf %265, %165 : vector<2x256xf32>
    %c16_i32_30 = arith.constant 16 : i32
    %267 = tpu.dynamic_rotate %204 by %c16_i32_30 dim 1 : vector<2x256xf32>, i32 -> vector<2x256xf32>
    %268 = arith.mulf %267, %165 : vector<2x256xf32>
    %c16_i32_31 = arith.constant 16 : i32
    %269 = tpu.dynamic_rotate %206 by %c16_i32_31 dim 1 : vector<2x256xf32>, i32 -> vector<2x256xf32>
    %270 = arith.mulf %269, %165 : vector<2x256xf32>
    %271 = vector.broadcast %16 : f32 to vector<2x256xf32>
    %272 = arith.mulf %271, %264 : vector<2x256xf32>
    %273 = arith.addf %253, %272 : vector<2x256xf32>
    %274 = vector.broadcast %17 : f32 to vector<2x256xf32>
    %275 = arith.mulf %274, %264 : vector<2x256xf32>
    %276 = arith.addf %256, %275 : vector<2x256xf32>
    %277 = vector.broadcast %18 : f32 to vector<2x256xf32>
    %278 = arith.mulf %277, %264 : vector<2x256xf32>
    %279 = arith.addf %259, %278 : vector<2x256xf32>
    %280 = vector.broadcast %19 : f32 to vector<2x256xf32>
    %281 = arith.mulf %280, %264 : vector<2x256xf32>
    %282 = arith.addf %262, %281 : vector<2x256xf32>
    %283 = vector.broadcast %20 : f32 to vector<2x256xf32>
    %284 = arith.mulf %283, %266 : vector<2x256xf32>
    %285 = arith.addf %273, %284 : vector<2x256xf32>
    %286 = vector.broadcast %21 : f32 to vector<2x256xf32>
    %287 = arith.mulf %286, %266 : vector<2x256xf32>
    %288 = arith.addf %276, %287 : vector<2x256xf32>
    %289 = vector.broadcast %22 : f32 to vector<2x256xf32>
    %290 = arith.mulf %289, %266 : vector<2x256xf32>
    %291 = arith.addf %279, %290 : vector<2x256xf32>
    %292 = vector.broadcast %23 : f32 to vector<2x256xf32>
    %293 = arith.mulf %292, %266 : vector<2x256xf32>
    %294 = arith.addf %282, %293 : vector<2x256xf32>
    %295 = vector.broadcast %24 : f32 to vector<2x256xf32>
    %296 = arith.mulf %295, %268 : vector<2x256xf32>
    %297 = arith.addf %285, %296 : vector<2x256xf32>
    %298 = vector.broadcast %25 : f32 to vector<2x256xf32>
    %299 = arith.mulf %298, %268 : vector<2x256xf32>
    %300 = arith.addf %288, %299 : vector<2x256xf32>
    %301 = vector.broadcast %26 : f32 to vector<2x256xf32>
    %302 = arith.mulf %301, %268 : vector<2x256xf32>
    %303 = arith.addf %291, %302 : vector<2x256xf32>
    %304 = vector.broadcast %27 : f32 to vector<2x256xf32>
    %305 = arith.mulf %304, %268 : vector<2x256xf32>
    %306 = arith.addf %294, %305 : vector<2x256xf32>
    %307 = vector.broadcast %28 : f32 to vector<2x256xf32>
    %308 = arith.mulf %307, %270 : vector<2x256xf32>
    %309 = arith.addf %297, %308 : vector<2x256xf32>
    %310 = vector.broadcast %29 : f32 to vector<2x256xf32>
    %311 = arith.mulf %310, %270 : vector<2x256xf32>
    %312 = arith.addf %300, %311 : vector<2x256xf32>
    %313 = vector.broadcast %30 : f32 to vector<2x256xf32>
    %314 = arith.mulf %313, %270 : vector<2x256xf32>
    %315 = arith.addf %303, %314 : vector<2x256xf32>
    %316 = vector.broadcast %31 : f32 to vector<2x256xf32>
    %317 = arith.mulf %316, %270 : vector<2x256xf32>
    %318 = arith.addf %306, %317 : vector<2x256xf32>
    %c15_i32_32 = arith.constant 15 : i32
    %319 = tpu.dynamic_rotate %200 by %c15_i32_32 dim 1 : vector<2x256xf32>, i32 -> vector<2x256xf32>
    %320 = arith.mulf %319, %172 : vector<2x256xf32>
    %c15_i32_33 = arith.constant 15 : i32
    %321 = tpu.dynamic_rotate %202 by %c15_i32_33 dim 1 : vector<2x256xf32>, i32 -> vector<2x256xf32>
    %322 = arith.mulf %321, %172 : vector<2x256xf32>
    %c15_i32_34 = arith.constant 15 : i32
    %323 = tpu.dynamic_rotate %204 by %c15_i32_34 dim 1 : vector<2x256xf32>, i32 -> vector<2x256xf32>
    %324 = arith.mulf %323, %172 : vector<2x256xf32>
    %c15_i32_35 = arith.constant 15 : i32
    %325 = tpu.dynamic_rotate %206 by %c15_i32_35 dim 1 : vector<2x256xf32>, i32 -> vector<2x256xf32>
    %326 = arith.mulf %325, %172 : vector<2x256xf32>
    %327 = vector.broadcast %32 : f32 to vector<2x256xf32>
    %328 = arith.mulf %327, %320 : vector<2x256xf32>
    %329 = arith.addf %309, %328 : vector<2x256xf32>
    %330 = vector.broadcast %33 : f32 to vector<2x256xf32>
    %331 = arith.mulf %330, %320 : vector<2x256xf32>
    %332 = arith.addf %312, %331 : vector<2x256xf32>
    %333 = vector.broadcast %34 : f32 to vector<2x256xf32>
    %334 = arith.mulf %333, %320 : vector<2x256xf32>
    %335 = arith.addf %315, %334 : vector<2x256xf32>
    %336 = vector.broadcast %35 : f32 to vector<2x256xf32>
    %337 = arith.mulf %336, %320 : vector<2x256xf32>
    %338 = arith.addf %318, %337 : vector<2x256xf32>
    %339 = vector.broadcast %36 : f32 to vector<2x256xf32>
    %340 = arith.mulf %339, %322 : vector<2x256xf32>
    %341 = arith.addf %329, %340 : vector<2x256xf32>
    %342 = vector.broadcast %37 : f32 to vector<2x256xf32>
    %343 = arith.mulf %342, %322 : vector<2x256xf32>
    %344 = arith.addf %332, %343 : vector<2x256xf32>
    %345 = vector.broadcast %38 : f32 to vector<2x256xf32>
    %346 = arith.mulf %345, %322 : vector<2x256xf32>
    %347 = arith.addf %335, %346 : vector<2x256xf32>
    %348 = vector.broadcast %39 : f32 to vector<2x256xf32>
    %349 = arith.mulf %348, %322 : vector<2x256xf32>
    %350 = arith.addf %338, %349 : vector<2x256xf32>
    %351 = vector.broadcast %40 : f32 to vector<2x256xf32>
    %352 = arith.mulf %351, %324 : vector<2x256xf32>
    %353 = arith.addf %341, %352 : vector<2x256xf32>
    %354 = vector.broadcast %41 : f32 to vector<2x256xf32>
    %355 = arith.mulf %354, %324 : vector<2x256xf32>
    %356 = arith.addf %344, %355 : vector<2x256xf32>
    %357 = vector.broadcast %42 : f32 to vector<2x256xf32>
    %358 = arith.mulf %357, %324 : vector<2x256xf32>
    %359 = arith.addf %347, %358 : vector<2x256xf32>
    %360 = vector.broadcast %43 : f32 to vector<2x256xf32>
    %361 = arith.mulf %360, %324 : vector<2x256xf32>
    %362 = arith.addf %350, %361 : vector<2x256xf32>
    %363 = vector.broadcast %44 : f32 to vector<2x256xf32>
    %364 = arith.mulf %363, %326 : vector<2x256xf32>
    %365 = arith.addf %353, %364 : vector<2x256xf32>
    %366 = vector.broadcast %45 : f32 to vector<2x256xf32>
    %367 = arith.mulf %366, %326 : vector<2x256xf32>
    %368 = arith.addf %356, %367 : vector<2x256xf32>
    %369 = vector.broadcast %46 : f32 to vector<2x256xf32>
    %370 = arith.mulf %369, %326 : vector<2x256xf32>
    %371 = arith.addf %359, %370 : vector<2x256xf32>
    %372 = vector.broadcast %47 : f32 to vector<2x256xf32>
    %373 = arith.mulf %372, %326 : vector<2x256xf32>
    %374 = arith.addf %362, %373 : vector<2x256xf32>
    %c1_i32_36 = arith.constant 1 : i32
    %375 = tpu.dynamic_rotate %200 by %c1_i32_36 dim 1 : vector<2x256xf32>, i32 -> vector<2x256xf32>
    %376 = arith.mulf %375, %176 : vector<2x256xf32>
    %c1_i32_37 = arith.constant 1 : i32
    %377 = tpu.dynamic_rotate %202 by %c1_i32_37 dim 1 : vector<2x256xf32>, i32 -> vector<2x256xf32>
    %378 = arith.mulf %377, %176 : vector<2x256xf32>
    %c1_i32_38 = arith.constant 1 : i32
    %379 = tpu.dynamic_rotate %204 by %c1_i32_38 dim 1 : vector<2x256xf32>, i32 -> vector<2x256xf32>
    %380 = arith.mulf %379, %176 : vector<2x256xf32>
    %c1_i32_39 = arith.constant 1 : i32
    %381 = tpu.dynamic_rotate %206 by %c1_i32_39 dim 1 : vector<2x256xf32>, i32 -> vector<2x256xf32>
    %382 = arith.mulf %381, %176 : vector<2x256xf32>
    %383 = vector.broadcast %48 : f32 to vector<2x256xf32>
    %384 = arith.mulf %383, %376 : vector<2x256xf32>
    %385 = arith.addf %365, %384 : vector<2x256xf32>
    %386 = vector.broadcast %49 : f32 to vector<2x256xf32>
    %387 = arith.mulf %386, %376 : vector<2x256xf32>
    %388 = arith.addf %368, %387 : vector<2x256xf32>
    %389 = vector.broadcast %50 : f32 to vector<2x256xf32>
    %390 = arith.mulf %389, %376 : vector<2x256xf32>
    %391 = arith.addf %371, %390 : vector<2x256xf32>
    %392 = vector.broadcast %51 : f32 to vector<2x256xf32>
    %393 = arith.mulf %392, %376 : vector<2x256xf32>
    %394 = arith.addf %374, %393 : vector<2x256xf32>
    %395 = vector.broadcast %52 : f32 to vector<2x256xf32>
    %396 = arith.mulf %395, %378 : vector<2x256xf32>
    %397 = arith.addf %385, %396 : vector<2x256xf32>
    %398 = vector.broadcast %53 : f32 to vector<2x256xf32>
    %399 = arith.mulf %398, %378 : vector<2x256xf32>
    %400 = arith.addf %388, %399 : vector<2x256xf32>
    %401 = vector.broadcast %54 : f32 to vector<2x256xf32>
    %402 = arith.mulf %401, %378 : vector<2x256xf32>
    %403 = arith.addf %391, %402 : vector<2x256xf32>
    %404 = vector.broadcast %55 : f32 to vector<2x256xf32>
    %405 = arith.mulf %404, %378 : vector<2x256xf32>
    %406 = arith.addf %394, %405 : vector<2x256xf32>
    %407 = vector.broadcast %56 : f32 to vector<2x256xf32>
    %408 = arith.mulf %407, %380 : vector<2x256xf32>
    %409 = arith.addf %397, %408 : vector<2x256xf32>
    %410 = vector.broadcast %57 : f32 to vector<2x256xf32>
    %411 = arith.mulf %410, %380 : vector<2x256xf32>
    %412 = arith.addf %400, %411 : vector<2x256xf32>
    %413 = vector.broadcast %58 : f32 to vector<2x256xf32>
    %414 = arith.mulf %413, %380 : vector<2x256xf32>
    %415 = arith.addf %403, %414 : vector<2x256xf32>
    %416 = vector.broadcast %59 : f32 to vector<2x256xf32>
    %417 = arith.mulf %416, %380 : vector<2x256xf32>
    %418 = arith.addf %406, %417 : vector<2x256xf32>
    %419 = vector.broadcast %60 : f32 to vector<2x256xf32>
    %420 = arith.mulf %419, %382 : vector<2x256xf32>
    %421 = arith.addf %409, %420 : vector<2x256xf32>
    %422 = vector.broadcast %61 : f32 to vector<2x256xf32>
    %423 = arith.mulf %422, %382 : vector<2x256xf32>
    %424 = arith.addf %412, %423 : vector<2x256xf32>
    %425 = vector.broadcast %62 : f32 to vector<2x256xf32>
    %426 = arith.mulf %425, %382 : vector<2x256xf32>
    %427 = arith.addf %415, %426 : vector<2x256xf32>
    %428 = vector.broadcast %63 : f32 to vector<2x256xf32>
    %429 = arith.mulf %428, %382 : vector<2x256xf32>
    %430 = arith.addf %418, %429 : vector<2x256xf32>
    %431 = vector.broadcast %64 : f32 to vector<2x256xf32>
    %432 = arith.mulf %431, %200 : vector<2x256xf32>
    %433 = arith.addf %421, %432 : vector<2x256xf32>
    %434 = vector.broadcast %65 : f32 to vector<2x256xf32>
    %435 = arith.mulf %434, %200 : vector<2x256xf32>
    %436 = arith.addf %424, %435 : vector<2x256xf32>
    %437 = vector.broadcast %66 : f32 to vector<2x256xf32>
    %438 = arith.mulf %437, %200 : vector<2x256xf32>
    %439 = arith.addf %427, %438 : vector<2x256xf32>
    %440 = vector.broadcast %67 : f32 to vector<2x256xf32>
    %441 = arith.mulf %440, %200 : vector<2x256xf32>
    %442 = arith.addf %430, %441 : vector<2x256xf32>
    %443 = vector.broadcast %68 : f32 to vector<2x256xf32>
    %444 = arith.mulf %443, %202 : vector<2x256xf32>
    %445 = arith.addf %433, %444 : vector<2x256xf32>
    %446 = vector.broadcast %69 : f32 to vector<2x256xf32>
    %447 = arith.mulf %446, %202 : vector<2x256xf32>
    %448 = arith.addf %436, %447 : vector<2x256xf32>
    %449 = vector.broadcast %70 : f32 to vector<2x256xf32>
    %450 = arith.mulf %449, %202 : vector<2x256xf32>
    %451 = arith.addf %439, %450 : vector<2x256xf32>
    %452 = vector.broadcast %71 : f32 to vector<2x256xf32>
    %453 = arith.mulf %452, %202 : vector<2x256xf32>
    %454 = arith.addf %442, %453 : vector<2x256xf32>
    %455 = vector.broadcast %72 : f32 to vector<2x256xf32>
    %456 = arith.mulf %455, %204 : vector<2x256xf32>
    %457 = arith.addf %445, %456 : vector<2x256xf32>
    %458 = vector.broadcast %73 : f32 to vector<2x256xf32>
    %459 = arith.mulf %458, %204 : vector<2x256xf32>
    %460 = arith.addf %448, %459 : vector<2x256xf32>
    %461 = vector.broadcast %74 : f32 to vector<2x256xf32>
    %462 = arith.mulf %461, %204 : vector<2x256xf32>
    %463 = arith.addf %451, %462 : vector<2x256xf32>
    %464 = vector.broadcast %75 : f32 to vector<2x256xf32>
    %465 = arith.mulf %464, %204 : vector<2x256xf32>
    %466 = arith.addf %454, %465 : vector<2x256xf32>
    %467 = vector.broadcast %76 : f32 to vector<2x256xf32>
    %468 = arith.mulf %467, %206 : vector<2x256xf32>
    %469 = arith.addf %457, %468 : vector<2x256xf32>
    %470 = vector.broadcast %77 : f32 to vector<2x256xf32>
    %471 = arith.mulf %470, %206 : vector<2x256xf32>
    %472 = arith.addf %460, %471 : vector<2x256xf32>
    %473 = vector.broadcast %78 : f32 to vector<2x256xf32>
    %474 = arith.mulf %473, %206 : vector<2x256xf32>
    %475 = arith.addf %463, %474 : vector<2x256xf32>
    %476 = vector.broadcast %79 : f32 to vector<2x256xf32>
    %477 = arith.mulf %476, %206 : vector<2x256xf32>
    %478 = arith.addf %466, %477 : vector<2x256xf32>
    %c255_i32 = arith.constant 255 : i32
    %479 = tpu.dynamic_rotate %200 by %c255_i32 dim 1 : vector<2x256xf32>, i32 -> vector<2x256xf32>
    %480 = arith.mulf %479, %180 : vector<2x256xf32>
    %c255_i32_40 = arith.constant 255 : i32
    %481 = tpu.dynamic_rotate %202 by %c255_i32_40 dim 1 : vector<2x256xf32>, i32 -> vector<2x256xf32>
    %482 = arith.mulf %481, %180 : vector<2x256xf32>
    %c255_i32_41 = arith.constant 255 : i32
    %483 = tpu.dynamic_rotate %204 by %c255_i32_41 dim 1 : vector<2x256xf32>, i32 -> vector<2x256xf32>
    %484 = arith.mulf %483, %180 : vector<2x256xf32>
    %c255_i32_42 = arith.constant 255 : i32
    %485 = tpu.dynamic_rotate %206 by %c255_i32_42 dim 1 : vector<2x256xf32>, i32 -> vector<2x256xf32>
    %486 = arith.mulf %485, %180 : vector<2x256xf32>
    %487 = vector.broadcast %80 : f32 to vector<2x256xf32>
    %488 = arith.mulf %487, %480 : vector<2x256xf32>
    %489 = arith.addf %469, %488 : vector<2x256xf32>
    %490 = vector.broadcast %81 : f32 to vector<2x256xf32>
    %491 = arith.mulf %490, %480 : vector<2x256xf32>
    %492 = arith.addf %472, %491 : vector<2x256xf32>
    %493 = vector.broadcast %82 : f32 to vector<2x256xf32>
    %494 = arith.mulf %493, %480 : vector<2x256xf32>
    %495 = arith.addf %475, %494 : vector<2x256xf32>
    %496 = vector.broadcast %83 : f32 to vector<2x256xf32>
    %497 = arith.mulf %496, %480 : vector<2x256xf32>
    %498 = arith.addf %478, %497 : vector<2x256xf32>
    %499 = vector.broadcast %84 : f32 to vector<2x256xf32>
    %500 = arith.mulf %499, %482 : vector<2x256xf32>
    %501 = arith.addf %489, %500 : vector<2x256xf32>
    %502 = vector.broadcast %85 : f32 to vector<2x256xf32>
    %503 = arith.mulf %502, %482 : vector<2x256xf32>
    %504 = arith.addf %492, %503 : vector<2x256xf32>
    %505 = vector.broadcast %86 : f32 to vector<2x256xf32>
    %506 = arith.mulf %505, %482 : vector<2x256xf32>
    %507 = arith.addf %495, %506 : vector<2x256xf32>
    %508 = vector.broadcast %87 : f32 to vector<2x256xf32>
    %509 = arith.mulf %508, %482 : vector<2x256xf32>
    %510 = arith.addf %498, %509 : vector<2x256xf32>
    %511 = vector.broadcast %88 : f32 to vector<2x256xf32>
    %512 = arith.mulf %511, %484 : vector<2x256xf32>
    %513 = arith.addf %501, %512 : vector<2x256xf32>
    %514 = vector.broadcast %89 : f32 to vector<2x256xf32>
    %515 = arith.mulf %514, %484 : vector<2x256xf32>
    %516 = arith.addf %504, %515 : vector<2x256xf32>
    %517 = vector.broadcast %90 : f32 to vector<2x256xf32>
    %518 = arith.mulf %517, %484 : vector<2x256xf32>
    %519 = arith.addf %507, %518 : vector<2x256xf32>
    %520 = vector.broadcast %91 : f32 to vector<2x256xf32>
    %521 = arith.mulf %520, %484 : vector<2x256xf32>
    %522 = arith.addf %510, %521 : vector<2x256xf32>
    %523 = vector.broadcast %92 : f32 to vector<2x256xf32>
    %524 = arith.mulf %523, %486 : vector<2x256xf32>
    %525 = arith.addf %513, %524 : vector<2x256xf32>
    %526 = vector.broadcast %93 : f32 to vector<2x256xf32>
    %527 = arith.mulf %526, %486 : vector<2x256xf32>
    %528 = arith.addf %516, %527 : vector<2x256xf32>
    %529 = vector.broadcast %94 : f32 to vector<2x256xf32>
    %530 = arith.mulf %529, %486 : vector<2x256xf32>
    %531 = arith.addf %519, %530 : vector<2x256xf32>
    %532 = vector.broadcast %95 : f32 to vector<2x256xf32>
    %533 = arith.mulf %532, %486 : vector<2x256xf32>
    %534 = arith.addf %522, %533 : vector<2x256xf32>
    %c241_i32 = arith.constant 241 : i32
    %535 = tpu.dynamic_rotate %200 by %c241_i32 dim 1 : vector<2x256xf32>, i32 -> vector<2x256xf32>
    %536 = arith.mulf %535, %187 : vector<2x256xf32>
    %c241_i32_43 = arith.constant 241 : i32
    %537 = tpu.dynamic_rotate %202 by %c241_i32_43 dim 1 : vector<2x256xf32>, i32 -> vector<2x256xf32>
    %538 = arith.mulf %537, %187 : vector<2x256xf32>
    %c241_i32_44 = arith.constant 241 : i32
    %539 = tpu.dynamic_rotate %204 by %c241_i32_44 dim 1 : vector<2x256xf32>, i32 -> vector<2x256xf32>
    %540 = arith.mulf %539, %187 : vector<2x256xf32>
    %c241_i32_45 = arith.constant 241 : i32
    %541 = tpu.dynamic_rotate %206 by %c241_i32_45 dim 1 : vector<2x256xf32>, i32 -> vector<2x256xf32>
    %542 = arith.mulf %541, %187 : vector<2x256xf32>
    %543 = vector.broadcast %96 : f32 to vector<2x256xf32>
    %544 = arith.mulf %543, %536 : vector<2x256xf32>
    %545 = arith.addf %525, %544 : vector<2x256xf32>
    %546 = vector.broadcast %97 : f32 to vector<2x256xf32>
    %547 = arith.mulf %546, %536 : vector<2x256xf32>
    %548 = arith.addf %528, %547 : vector<2x256xf32>
    %549 = vector.broadcast %98 : f32 to vector<2x256xf32>
    %550 = arith.mulf %549, %536 : vector<2x256xf32>
    %551 = arith.addf %531, %550 : vector<2x256xf32>
    %552 = vector.broadcast %99 : f32 to vector<2x256xf32>
    %553 = arith.mulf %552, %536 : vector<2x256xf32>
    %554 = arith.addf %534, %553 : vector<2x256xf32>
    %555 = vector.broadcast %100 : f32 to vector<2x256xf32>
    %556 = arith.mulf %555, %538 : vector<2x256xf32>
    %557 = arith.addf %545, %556 : vector<2x256xf32>
    %558 = vector.broadcast %101 : f32 to vector<2x256xf32>
    %559 = arith.mulf %558, %538 : vector<2x256xf32>
    %560 = arith.addf %548, %559 : vector<2x256xf32>
    %561 = vector.broadcast %102 : f32 to vector<2x256xf32>
    %562 = arith.mulf %561, %538 : vector<2x256xf32>
    %563 = arith.addf %551, %562 : vector<2x256xf32>
    %564 = vector.broadcast %103 : f32 to vector<2x256xf32>
    %565 = arith.mulf %564, %538 : vector<2x256xf32>
    %566 = arith.addf %554, %565 : vector<2x256xf32>
    %567 = vector.broadcast %104 : f32 to vector<2x256xf32>
    %568 = arith.mulf %567, %540 : vector<2x256xf32>
    %569 = arith.addf %557, %568 : vector<2x256xf32>
    %570 = vector.broadcast %105 : f32 to vector<2x256xf32>
    %571 = arith.mulf %570, %540 : vector<2x256xf32>
    %572 = arith.addf %560, %571 : vector<2x256xf32>
    %573 = vector.broadcast %106 : f32 to vector<2x256xf32>
    %574 = arith.mulf %573, %540 : vector<2x256xf32>
    %575 = arith.addf %563, %574 : vector<2x256xf32>
    %576 = vector.broadcast %107 : f32 to vector<2x256xf32>
    %577 = arith.mulf %576, %540 : vector<2x256xf32>
    %578 = arith.addf %566, %577 : vector<2x256xf32>
    %579 = vector.broadcast %108 : f32 to vector<2x256xf32>
    %580 = arith.mulf %579, %542 : vector<2x256xf32>
    %581 = arith.addf %569, %580 : vector<2x256xf32>
    %582 = vector.broadcast %109 : f32 to vector<2x256xf32>
    %583 = arith.mulf %582, %542 : vector<2x256xf32>
    %584 = arith.addf %572, %583 : vector<2x256xf32>
    %585 = vector.broadcast %110 : f32 to vector<2x256xf32>
    %586 = arith.mulf %585, %542 : vector<2x256xf32>
    %587 = arith.addf %575, %586 : vector<2x256xf32>
    %588 = vector.broadcast %111 : f32 to vector<2x256xf32>
    %589 = arith.mulf %588, %542 : vector<2x256xf32>
    %590 = arith.addf %578, %589 : vector<2x256xf32>
    %c240_i32_46 = arith.constant 240 : i32
    %591 = tpu.dynamic_rotate %200 by %c240_i32_46 dim 1 : vector<2x256xf32>, i32 -> vector<2x256xf32>
    %592 = arith.mulf %591, %191 : vector<2x256xf32>
    %c240_i32_47 = arith.constant 240 : i32
    %593 = tpu.dynamic_rotate %202 by %c240_i32_47 dim 1 : vector<2x256xf32>, i32 -> vector<2x256xf32>
    %594 = arith.mulf %593, %191 : vector<2x256xf32>
    %c240_i32_48 = arith.constant 240 : i32
    %595 = tpu.dynamic_rotate %204 by %c240_i32_48 dim 1 : vector<2x256xf32>, i32 -> vector<2x256xf32>
    %596 = arith.mulf %595, %191 : vector<2x256xf32>
    %c240_i32_49 = arith.constant 240 : i32
    %597 = tpu.dynamic_rotate %206 by %c240_i32_49 dim 1 : vector<2x256xf32>, i32 -> vector<2x256xf32>
    %598 = arith.mulf %597, %191 : vector<2x256xf32>
    %599 = vector.broadcast %112 : f32 to vector<2x256xf32>
    %600 = arith.mulf %599, %592 : vector<2x256xf32>
    %601 = arith.addf %581, %600 : vector<2x256xf32>
    %602 = vector.broadcast %113 : f32 to vector<2x256xf32>
    %603 = arith.mulf %602, %592 : vector<2x256xf32>
    %604 = arith.addf %584, %603 : vector<2x256xf32>
    %605 = vector.broadcast %114 : f32 to vector<2x256xf32>
    %606 = arith.mulf %605, %592 : vector<2x256xf32>
    %607 = arith.addf %587, %606 : vector<2x256xf32>
    %608 = vector.broadcast %115 : f32 to vector<2x256xf32>
    %609 = arith.mulf %608, %592 : vector<2x256xf32>
    %610 = arith.addf %590, %609 : vector<2x256xf32>
    %611 = vector.broadcast %116 : f32 to vector<2x256xf32>
    %612 = arith.mulf %611, %594 : vector<2x256xf32>
    %613 = arith.addf %601, %612 : vector<2x256xf32>
    %614 = vector.broadcast %117 : f32 to vector<2x256xf32>
    %615 = arith.mulf %614, %594 : vector<2x256xf32>
    %616 = arith.addf %604, %615 : vector<2x256xf32>
    %617 = vector.broadcast %118 : f32 to vector<2x256xf32>
    %618 = arith.mulf %617, %594 : vector<2x256xf32>
    %619 = arith.addf %607, %618 : vector<2x256xf32>
    %620 = vector.broadcast %119 : f32 to vector<2x256xf32>
    %621 = arith.mulf %620, %594 : vector<2x256xf32>
    %622 = arith.addf %610, %621 : vector<2x256xf32>
    %623 = vector.broadcast %120 : f32 to vector<2x256xf32>
    %624 = arith.mulf %623, %596 : vector<2x256xf32>
    %625 = arith.addf %613, %624 : vector<2x256xf32>
    %626 = vector.broadcast %121 : f32 to vector<2x256xf32>
    %627 = arith.mulf %626, %596 : vector<2x256xf32>
    %628 = arith.addf %616, %627 : vector<2x256xf32>
    %629 = vector.broadcast %122 : f32 to vector<2x256xf32>
    %630 = arith.mulf %629, %596 : vector<2x256xf32>
    %631 = arith.addf %619, %630 : vector<2x256xf32>
    %632 = vector.broadcast %123 : f32 to vector<2x256xf32>
    %633 = arith.mulf %632, %596 : vector<2x256xf32>
    %634 = arith.addf %622, %633 : vector<2x256xf32>
    %635 = vector.broadcast %124 : f32 to vector<2x256xf32>
    %636 = arith.mulf %635, %598 : vector<2x256xf32>
    %637 = arith.addf %625, %636 : vector<2x256xf32>
    %638 = vector.broadcast %125 : f32 to vector<2x256xf32>
    %639 = arith.mulf %638, %598 : vector<2x256xf32>
    %640 = arith.addf %628, %639 : vector<2x256xf32>
    %641 = vector.broadcast %126 : f32 to vector<2x256xf32>
    %642 = arith.mulf %641, %598 : vector<2x256xf32>
    %643 = arith.addf %631, %642 : vector<2x256xf32>
    %644 = vector.broadcast %127 : f32 to vector<2x256xf32>
    %645 = arith.mulf %644, %598 : vector<2x256xf32>
    %646 = arith.addf %634, %645 : vector<2x256xf32>
    %c239_i32 = arith.constant 239 : i32
    %647 = tpu.dynamic_rotate %200 by %c239_i32 dim 1 : vector<2x256xf32>, i32 -> vector<2x256xf32>
    %648 = arith.mulf %647, %198 : vector<2x256xf32>
    %c239_i32_50 = arith.constant 239 : i32
    %649 = tpu.dynamic_rotate %202 by %c239_i32_50 dim 1 : vector<2x256xf32>, i32 -> vector<2x256xf32>
    %650 = arith.mulf %649, %198 : vector<2x256xf32>
    %c239_i32_51 = arith.constant 239 : i32
    %651 = tpu.dynamic_rotate %204 by %c239_i32_51 dim 1 : vector<2x256xf32>, i32 -> vector<2x256xf32>
    %652 = arith.mulf %651, %198 : vector<2x256xf32>
    %c239_i32_52 = arith.constant 239 : i32
    %653 = tpu.dynamic_rotate %206 by %c239_i32_52 dim 1 : vector<2x256xf32>, i32 -> vector<2x256xf32>
    %654 = arith.mulf %653, %198 : vector<2x256xf32>
    %655 = vector.broadcast %128 : f32 to vector<2x256xf32>
    %656 = arith.mulf %655, %648 : vector<2x256xf32>
    %657 = arith.addf %637, %656 : vector<2x256xf32>
    %658 = vector.broadcast %129 : f32 to vector<2x256xf32>
    %659 = arith.mulf %658, %648 : vector<2x256xf32>
    %660 = arith.addf %640, %659 : vector<2x256xf32>
    %661 = vector.broadcast %130 : f32 to vector<2x256xf32>
    %662 = arith.mulf %661, %648 : vector<2x256xf32>
    %663 = arith.addf %643, %662 : vector<2x256xf32>
    %664 = vector.broadcast %131 : f32 to vector<2x256xf32>
    %665 = arith.mulf %664, %648 : vector<2x256xf32>
    %666 = arith.addf %646, %665 : vector<2x256xf32>
    %667 = vector.broadcast %132 : f32 to vector<2x256xf32>
    %668 = arith.mulf %667, %650 : vector<2x256xf32>
    %669 = arith.addf %657, %668 : vector<2x256xf32>
    %670 = vector.broadcast %133 : f32 to vector<2x256xf32>
    %671 = arith.mulf %670, %650 : vector<2x256xf32>
    %672 = arith.addf %660, %671 : vector<2x256xf32>
    %673 = vector.broadcast %134 : f32 to vector<2x256xf32>
    %674 = arith.mulf %673, %650 : vector<2x256xf32>
    %675 = arith.addf %663, %674 : vector<2x256xf32>
    %676 = vector.broadcast %135 : f32 to vector<2x256xf32>
    %677 = arith.mulf %676, %650 : vector<2x256xf32>
    %678 = arith.addf %666, %677 : vector<2x256xf32>
    %679 = vector.broadcast %136 : f32 to vector<2x256xf32>
    %680 = arith.mulf %679, %652 : vector<2x256xf32>
    %681 = arith.addf %669, %680 : vector<2x256xf32>
    %682 = vector.broadcast %137 : f32 to vector<2x256xf32>
    %683 = arith.mulf %682, %652 : vector<2x256xf32>
    %684 = arith.addf %672, %683 : vector<2x256xf32>
    %685 = vector.broadcast %138 : f32 to vector<2x256xf32>
    %686 = arith.mulf %685, %652 : vector<2x256xf32>
    %687 = arith.addf %675, %686 : vector<2x256xf32>
    %688 = vector.broadcast %139 : f32 to vector<2x256xf32>
    %689 = arith.mulf %688, %652 : vector<2x256xf32>
    %690 = arith.addf %678, %689 : vector<2x256xf32>
    %691 = vector.broadcast %140 : f32 to vector<2x256xf32>
    %692 = arith.mulf %691, %654 : vector<2x256xf32>
    %693 = arith.addf %681, %692 : vector<2x256xf32>
    %694 = vector.broadcast %141 : f32 to vector<2x256xf32>
    %695 = arith.mulf %694, %654 : vector<2x256xf32>
    %696 = arith.addf %684, %695 : vector<2x256xf32>
    %697 = vector.broadcast %142 : f32 to vector<2x256xf32>
    %698 = arith.mulf %697, %654 : vector<2x256xf32>
    %699 = arith.addf %687, %698 : vector<2x256xf32>
    %700 = vector.broadcast %143 : f32 to vector<2x256xf32>
    %701 = arith.mulf %700, %654 : vector<2x256xf32>
    %702 = arith.addf %690, %701 : vector<2x256xf32>
    %cst = arith.constant 0.000000e+00 : f32
    %703 = vector.broadcast %cst : f32 to vector<2x256xf32>
    %704 = arith.maximumf %693, %703 : vector<2x256xf32>
    %cst_53 = arith.constant 0.000000e+00 : f32
    %705 = vector.broadcast %cst_53 : f32 to vector<2x256xf32>
    %706 = arith.maximumf %696, %705 : vector<2x256xf32>
    %cst_54 = arith.constant 0.000000e+00 : f32
    %707 = vector.broadcast %cst_54 : f32 to vector<2x256xf32>
    %708 = arith.maximumf %699, %707 : vector<2x256xf32>
    %cst_55 = arith.constant 0.000000e+00 : f32
    %709 = vector.broadcast %cst_55 : f32 to vector<2x256xf32>
    %710 = arith.maximumf %702, %709 : vector<2x256xf32>
    %c1_i32_56 = arith.constant 1 : i32
    %c17_i32_57 = arith.constant 17 : i32
    %711 = tpu.dynamic_rotate %704 by %c17_i32_57 dim 1 : vector<2x256xf32>, i32 -> vector<2x256xf32>
    %712 = arith.mulf %711, %161 : vector<2x256xf32>
    %c17_i32_58 = arith.constant 17 : i32
    %713 = tpu.dynamic_rotate %706 by %c17_i32_58 dim 1 : vector<2x256xf32>, i32 -> vector<2x256xf32>
    %714 = arith.mulf %713, %161 : vector<2x256xf32>
    %c17_i32_59 = arith.constant 17 : i32
    %715 = tpu.dynamic_rotate %708 by %c17_i32_59 dim 1 : vector<2x256xf32>, i32 -> vector<2x256xf32>
    %716 = arith.mulf %715, %161 : vector<2x256xf32>
    %c17_i32_60 = arith.constant 17 : i32
    %717 = tpu.dynamic_rotate %710 by %c17_i32_60 dim 1 : vector<2x256xf32>, i32 -> vector<2x256xf32>
    %718 = arith.mulf %717, %161 : vector<2x256xf32>
    %719 = vector.broadcast %0 : f32 to vector<2x256xf32>
    %720 = arith.mulf %719, %712 : vector<2x256xf32>
    %721 = arith.addf %145, %720 : vector<2x256xf32>
    %722 = vector.broadcast %1 : f32 to vector<2x256xf32>
    %723 = arith.mulf %722, %712 : vector<2x256xf32>
    %724 = arith.addf %147, %723 : vector<2x256xf32>
    %725 = vector.broadcast %2 : f32 to vector<2x256xf32>
    %726 = arith.mulf %725, %712 : vector<2x256xf32>
    %727 = arith.addf %149, %726 : vector<2x256xf32>
    %728 = vector.broadcast %3 : f32 to vector<2x256xf32>
    %729 = arith.mulf %728, %712 : vector<2x256xf32>
    %730 = arith.addf %151, %729 : vector<2x256xf32>
    %731 = vector.broadcast %4 : f32 to vector<2x256xf32>
    %732 = arith.mulf %731, %714 : vector<2x256xf32>
    %733 = arith.addf %721, %732 : vector<2x256xf32>
    %734 = vector.broadcast %5 : f32 to vector<2x256xf32>
    %735 = arith.mulf %734, %714 : vector<2x256xf32>
    %736 = arith.addf %724, %735 : vector<2x256xf32>
    %737 = vector.broadcast %6 : f32 to vector<2x256xf32>
    %738 = arith.mulf %737, %714 : vector<2x256xf32>
    %739 = arith.addf %727, %738 : vector<2x256xf32>
    %740 = vector.broadcast %7 : f32 to vector<2x256xf32>
    %741 = arith.mulf %740, %714 : vector<2x256xf32>
    %742 = arith.addf %730, %741 : vector<2x256xf32>
    %743 = vector.broadcast %8 : f32 to vector<2x256xf32>
    %744 = arith.mulf %743, %716 : vector<2x256xf32>
    %745 = arith.addf %733, %744 : vector<2x256xf32>
    %746 = vector.broadcast %9 : f32 to vector<2x256xf32>
    %747 = arith.mulf %746, %716 : vector<2x256xf32>
    %748 = arith.addf %736, %747 : vector<2x256xf32>
    %749 = vector.broadcast %10 : f32 to vector<2x256xf32>
    %750 = arith.mulf %749, %716 : vector<2x256xf32>
    %751 = arith.addf %739, %750 : vector<2x256xf32>
    %752 = vector.broadcast %11 : f32 to vector<2x256xf32>
    %753 = arith.mulf %752, %716 : vector<2x256xf32>
    %754 = arith.addf %742, %753 : vector<2x256xf32>
    %755 = vector.broadcast %12 : f32 to vector<2x256xf32>
    %756 = arith.mulf %755, %718 : vector<2x256xf32>
    %757 = arith.addf %745, %756 : vector<2x256xf32>
    %758 = vector.broadcast %13 : f32 to vector<2x256xf32>
    %759 = arith.mulf %758, %718 : vector<2x256xf32>
    %760 = arith.addf %748, %759 : vector<2x256xf32>
    %761 = vector.broadcast %14 : f32 to vector<2x256xf32>
    %762 = arith.mulf %761, %718 : vector<2x256xf32>
    %763 = arith.addf %751, %762 : vector<2x256xf32>
    %764 = vector.broadcast %15 : f32 to vector<2x256xf32>
    %765 = arith.mulf %764, %718 : vector<2x256xf32>
    %766 = arith.addf %754, %765 : vector<2x256xf32>
    %c16_i32_61 = arith.constant 16 : i32
    %767 = tpu.dynamic_rotate %704 by %c16_i32_61 dim 1 : vector<2x256xf32>, i32 -> vector<2x256xf32>
    %768 = arith.mulf %767, %165 : vector<2x256xf32>
    %c16_i32_62 = arith.constant 16 : i32
    %769 = tpu.dynamic_rotate %706 by %c16_i32_62 dim 1 : vector<2x256xf32>, i32 -> vector<2x256xf32>
    %770 = arith.mulf %769, %165 : vector<2x256xf32>
    %c16_i32_63 = arith.constant 16 : i32
    %771 = tpu.dynamic_rotate %708 by %c16_i32_63 dim 1 : vector<2x256xf32>, i32 -> vector<2x256xf32>
    %772 = arith.mulf %771, %165 : vector<2x256xf32>
    %c16_i32_64 = arith.constant 16 : i32
    %773 = tpu.dynamic_rotate %710 by %c16_i32_64 dim 1 : vector<2x256xf32>, i32 -> vector<2x256xf32>
    %774 = arith.mulf %773, %165 : vector<2x256xf32>
    %775 = vector.broadcast %16 : f32 to vector<2x256xf32>
    %776 = arith.mulf %775, %768 : vector<2x256xf32>
    %777 = arith.addf %757, %776 : vector<2x256xf32>
    %778 = vector.broadcast %17 : f32 to vector<2x256xf32>
    %779 = arith.mulf %778, %768 : vector<2x256xf32>
    %780 = arith.addf %760, %779 : vector<2x256xf32>
    %781 = vector.broadcast %18 : f32 to vector<2x256xf32>
    %782 = arith.mulf %781, %768 : vector<2x256xf32>
    %783 = arith.addf %763, %782 : vector<2x256xf32>
    %784 = vector.broadcast %19 : f32 to vector<2x256xf32>
    %785 = arith.mulf %784, %768 : vector<2x256xf32>
    %786 = arith.addf %766, %785 : vector<2x256xf32>
    %787 = vector.broadcast %20 : f32 to vector<2x256xf32>
    %788 = arith.mulf %787, %770 : vector<2x256xf32>
    %789 = arith.addf %777, %788 : vector<2x256xf32>
    %790 = vector.broadcast %21 : f32 to vector<2x256xf32>
    %791 = arith.mulf %790, %770 : vector<2x256xf32>
    %792 = arith.addf %780, %791 : vector<2x256xf32>
    %793 = vector.broadcast %22 : f32 to vector<2x256xf32>
    %794 = arith.mulf %793, %770 : vector<2x256xf32>
    %795 = arith.addf %783, %794 : vector<2x256xf32>
    %796 = vector.broadcast %23 : f32 to vector<2x256xf32>
    %797 = arith.mulf %796, %770 : vector<2x256xf32>
    %798 = arith.addf %786, %797 : vector<2x256xf32>
    %799 = vector.broadcast %24 : f32 to vector<2x256xf32>
    %800 = arith.mulf %799, %772 : vector<2x256xf32>
    %801 = arith.addf %789, %800 : vector<2x256xf32>
    %802 = vector.broadcast %25 : f32 to vector<2x256xf32>
    %803 = arith.mulf %802, %772 : vector<2x256xf32>
    %804 = arith.addf %792, %803 : vector<2x256xf32>
    %805 = vector.broadcast %26 : f32 to vector<2x256xf32>
    %806 = arith.mulf %805, %772 : vector<2x256xf32>
    %807 = arith.addf %795, %806 : vector<2x256xf32>
    %808 = vector.broadcast %27 : f32 to vector<2x256xf32>
    %809 = arith.mulf %808, %772 : vector<2x256xf32>
    %810 = arith.addf %798, %809 : vector<2x256xf32>
    %811 = vector.broadcast %28 : f32 to vector<2x256xf32>
    %812 = arith.mulf %811, %774 : vector<2x256xf32>
    %813 = arith.addf %801, %812 : vector<2x256xf32>
    %814 = vector.broadcast %29 : f32 to vector<2x256xf32>
    %815 = arith.mulf %814, %774 : vector<2x256xf32>
    %816 = arith.addf %804, %815 : vector<2x256xf32>
    %817 = vector.broadcast %30 : f32 to vector<2x256xf32>
    %818 = arith.mulf %817, %774 : vector<2x256xf32>
    %819 = arith.addf %807, %818 : vector<2x256xf32>
    %820 = vector.broadcast %31 : f32 to vector<2x256xf32>
    %821 = arith.mulf %820, %774 : vector<2x256xf32>
    %822 = arith.addf %810, %821 : vector<2x256xf32>
    %c15_i32_65 = arith.constant 15 : i32
    %823 = tpu.dynamic_rotate %704 by %c15_i32_65 dim 1 : vector<2x256xf32>, i32 -> vector<2x256xf32>
    %824 = arith.mulf %823, %172 : vector<2x256xf32>
    %c15_i32_66 = arith.constant 15 : i32
    %825 = tpu.dynamic_rotate %706 by %c15_i32_66 dim 1 : vector<2x256xf32>, i32 -> vector<2x256xf32>
    %826 = arith.mulf %825, %172 : vector<2x256xf32>
    %c15_i32_67 = arith.constant 15 : i32
    %827 = tpu.dynamic_rotate %708 by %c15_i32_67 dim 1 : vector<2x256xf32>, i32 -> vector<2x256xf32>
    %828 = arith.mulf %827, %172 : vector<2x256xf32>
    %c15_i32_68 = arith.constant 15 : i32
    %829 = tpu.dynamic_rotate %710 by %c15_i32_68 dim 1 : vector<2x256xf32>, i32 -> vector<2x256xf32>
    %830 = arith.mulf %829, %172 : vector<2x256xf32>
    %831 = vector.broadcast %32 : f32 to vector<2x256xf32>
    %832 = arith.mulf %831, %824 : vector<2x256xf32>
    %833 = arith.addf %813, %832 : vector<2x256xf32>
    %834 = vector.broadcast %33 : f32 to vector<2x256xf32>
    %835 = arith.mulf %834, %824 : vector<2x256xf32>
    %836 = arith.addf %816, %835 : vector<2x256xf32>
    %837 = vector.broadcast %34 : f32 to vector<2x256xf32>
    %838 = arith.mulf %837, %824 : vector<2x256xf32>
    %839 = arith.addf %819, %838 : vector<2x256xf32>
    %840 = vector.broadcast %35 : f32 to vector<2x256xf32>
    %841 = arith.mulf %840, %824 : vector<2x256xf32>
    %842 = arith.addf %822, %841 : vector<2x256xf32>
    %843 = vector.broadcast %36 : f32 to vector<2x256xf32>
    %844 = arith.mulf %843, %826 : vector<2x256xf32>
    %845 = arith.addf %833, %844 : vector<2x256xf32>
    %846 = vector.broadcast %37 : f32 to vector<2x256xf32>
    %847 = arith.mulf %846, %826 : vector<2x256xf32>
    %848 = arith.addf %836, %847 : vector<2x256xf32>
    %849 = vector.broadcast %38 : f32 to vector<2x256xf32>
    %850 = arith.mulf %849, %826 : vector<2x256xf32>
    %851 = arith.addf %839, %850 : vector<2x256xf32>
    %852 = vector.broadcast %39 : f32 to vector<2x256xf32>
    %853 = arith.mulf %852, %826 : vector<2x256xf32>
    %854 = arith.addf %842, %853 : vector<2x256xf32>
    %855 = vector.broadcast %40 : f32 to vector<2x256xf32>
    %856 = arith.mulf %855, %828 : vector<2x256xf32>
    %857 = arith.addf %845, %856 : vector<2x256xf32>
    %858 = vector.broadcast %41 : f32 to vector<2x256xf32>
    %859 = arith.mulf %858, %828 : vector<2x256xf32>
    %860 = arith.addf %848, %859 : vector<2x256xf32>
    %861 = vector.broadcast %42 : f32 to vector<2x256xf32>
    %862 = arith.mulf %861, %828 : vector<2x256xf32>
    %863 = arith.addf %851, %862 : vector<2x256xf32>
    %864 = vector.broadcast %43 : f32 to vector<2x256xf32>
    %865 = arith.mulf %864, %828 : vector<2x256xf32>
    %866 = arith.addf %854, %865 : vector<2x256xf32>
    %867 = vector.broadcast %44 : f32 to vector<2x256xf32>
    %868 = arith.mulf %867, %830 : vector<2x256xf32>
    %869 = arith.addf %857, %868 : vector<2x256xf32>
    %870 = vector.broadcast %45 : f32 to vector<2x256xf32>
    %871 = arith.mulf %870, %830 : vector<2x256xf32>
    %872 = arith.addf %860, %871 : vector<2x256xf32>
    %873 = vector.broadcast %46 : f32 to vector<2x256xf32>
    %874 = arith.mulf %873, %830 : vector<2x256xf32>
    %875 = arith.addf %863, %874 : vector<2x256xf32>
    %876 = vector.broadcast %47 : f32 to vector<2x256xf32>
    %877 = arith.mulf %876, %830 : vector<2x256xf32>
    %878 = arith.addf %866, %877 : vector<2x256xf32>
    %c1_i32_69 = arith.constant 1 : i32
    %879 = tpu.dynamic_rotate %704 by %c1_i32_69 dim 1 : vector<2x256xf32>, i32 -> vector<2x256xf32>
    %880 = arith.mulf %879, %176 : vector<2x256xf32>
    %c1_i32_70 = arith.constant 1 : i32
    %881 = tpu.dynamic_rotate %706 by %c1_i32_70 dim 1 : vector<2x256xf32>, i32 -> vector<2x256xf32>
    %882 = arith.mulf %881, %176 : vector<2x256xf32>
    %c1_i32_71 = arith.constant 1 : i32
    %883 = tpu.dynamic_rotate %708 by %c1_i32_71 dim 1 : vector<2x256xf32>, i32 -> vector<2x256xf32>
    %884 = arith.mulf %883, %176 : vector<2x256xf32>
    %c1_i32_72 = arith.constant 1 : i32
    %885 = tpu.dynamic_rotate %710 by %c1_i32_72 dim 1 : vector<2x256xf32>, i32 -> vector<2x256xf32>
    %886 = arith.mulf %885, %176 : vector<2x256xf32>
    %887 = vector.broadcast %48 : f32 to vector<2x256xf32>
    %888 = arith.mulf %887, %880 : vector<2x256xf32>
    %889 = arith.addf %869, %888 : vector<2x256xf32>
    %890 = vector.broadcast %49 : f32 to vector<2x256xf32>
    %891 = arith.mulf %890, %880 : vector<2x256xf32>
    %892 = arith.addf %872, %891 : vector<2x256xf32>
    %893 = vector.broadcast %50 : f32 to vector<2x256xf32>
    %894 = arith.mulf %893, %880 : vector<2x256xf32>
    %895 = arith.addf %875, %894 : vector<2x256xf32>
    %896 = vector.broadcast %51 : f32 to vector<2x256xf32>
    %897 = arith.mulf %896, %880 : vector<2x256xf32>
    %898 = arith.addf %878, %897 : vector<2x256xf32>
    %899 = vector.broadcast %52 : f32 to vector<2x256xf32>
    %900 = arith.mulf %899, %882 : vector<2x256xf32>
    %901 = arith.addf %889, %900 : vector<2x256xf32>
    %902 = vector.broadcast %53 : f32 to vector<2x256xf32>
    %903 = arith.mulf %902, %882 : vector<2x256xf32>
    %904 = arith.addf %892, %903 : vector<2x256xf32>
    %905 = vector.broadcast %54 : f32 to vector<2x256xf32>
    %906 = arith.mulf %905, %882 : vector<2x256xf32>
    %907 = arith.addf %895, %906 : vector<2x256xf32>
    %908 = vector.broadcast %55 : f32 to vector<2x256xf32>
    %909 = arith.mulf %908, %882 : vector<2x256xf32>
    %910 = arith.addf %898, %909 : vector<2x256xf32>
    %911 = vector.broadcast %56 : f32 to vector<2x256xf32>
    %912 = arith.mulf %911, %884 : vector<2x256xf32>
    %913 = arith.addf %901, %912 : vector<2x256xf32>
    %914 = vector.broadcast %57 : f32 to vector<2x256xf32>
    %915 = arith.mulf %914, %884 : vector<2x256xf32>
    %916 = arith.addf %904, %915 : vector<2x256xf32>
    %917 = vector.broadcast %58 : f32 to vector<2x256xf32>
    %918 = arith.mulf %917, %884 : vector<2x256xf32>
    %919 = arith.addf %907, %918 : vector<2x256xf32>
    %920 = vector.broadcast %59 : f32 to vector<2x256xf32>
    %921 = arith.mulf %920, %884 : vector<2x256xf32>
    %922 = arith.addf %910, %921 : vector<2x256xf32>
    %923 = vector.broadcast %60 : f32 to vector<2x256xf32>
    %924 = arith.mulf %923, %886 : vector<2x256xf32>
    %925 = arith.addf %913, %924 : vector<2x256xf32>
    %926 = vector.broadcast %61 : f32 to vector<2x256xf32>
    %927 = arith.mulf %926, %886 : vector<2x256xf32>
    %928 = arith.addf %916, %927 : vector<2x256xf32>
    %929 = vector.broadcast %62 : f32 to vector<2x256xf32>
    %930 = arith.mulf %929, %886 : vector<2x256xf32>
    %931 = arith.addf %919, %930 : vector<2x256xf32>
    %932 = vector.broadcast %63 : f32 to vector<2x256xf32>
    %933 = arith.mulf %932, %886 : vector<2x256xf32>
    %934 = arith.addf %922, %933 : vector<2x256xf32>
    %935 = vector.broadcast %64 : f32 to vector<2x256xf32>
    %936 = arith.mulf %935, %704 : vector<2x256xf32>
    %937 = arith.addf %925, %936 : vector<2x256xf32>
    %938 = vector.broadcast %65 : f32 to vector<2x256xf32>
    %939 = arith.mulf %938, %704 : vector<2x256xf32>
    %940 = arith.addf %928, %939 : vector<2x256xf32>
    %941 = vector.broadcast %66 : f32 to vector<2x256xf32>
    %942 = arith.mulf %941, %704 : vector<2x256xf32>
    %943 = arith.addf %931, %942 : vector<2x256xf32>
    %944 = vector.broadcast %67 : f32 to vector<2x256xf32>
    %945 = arith.mulf %944, %704 : vector<2x256xf32>
    %946 = arith.addf %934, %945 : vector<2x256xf32>
    %947 = vector.broadcast %68 : f32 to vector<2x256xf32>
    %948 = arith.mulf %947, %706 : vector<2x256xf32>
    %949 = arith.addf %937, %948 : vector<2x256xf32>
    %950 = vector.broadcast %69 : f32 to vector<2x256xf32>
    %951 = arith.mulf %950, %706 : vector<2x256xf32>
    %952 = arith.addf %940, %951 : vector<2x256xf32>
    %953 = vector.broadcast %70 : f32 to vector<2x256xf32>
    %954 = arith.mulf %953, %706 : vector<2x256xf32>
    %955 = arith.addf %943, %954 : vector<2x256xf32>
    %956 = vector.broadcast %71 : f32 to vector<2x256xf32>
    %957 = arith.mulf %956, %706 : vector<2x256xf32>
    %958 = arith.addf %946, %957 : vector<2x256xf32>
    %959 = vector.broadcast %72 : f32 to vector<2x256xf32>
    %960 = arith.mulf %959, %708 : vector<2x256xf32>
    %961 = arith.addf %949, %960 : vector<2x256xf32>
    %962 = vector.broadcast %73 : f32 to vector<2x256xf32>
    %963 = arith.mulf %962, %708 : vector<2x256xf32>
    %964 = arith.addf %952, %963 : vector<2x256xf32>
    %965 = vector.broadcast %74 : f32 to vector<2x256xf32>
    %966 = arith.mulf %965, %708 : vector<2x256xf32>
    %967 = arith.addf %955, %966 : vector<2x256xf32>
    %968 = vector.broadcast %75 : f32 to vector<2x256xf32>
    %969 = arith.mulf %968, %708 : vector<2x256xf32>
    %970 = arith.addf %958, %969 : vector<2x256xf32>
    %971 = vector.broadcast %76 : f32 to vector<2x256xf32>
    %972 = arith.mulf %971, %710 : vector<2x256xf32>
    %973 = arith.addf %961, %972 : vector<2x256xf32>
    %974 = vector.broadcast %77 : f32 to vector<2x256xf32>
    %975 = arith.mulf %974, %710 : vector<2x256xf32>
    %976 = arith.addf %964, %975 : vector<2x256xf32>
    %977 = vector.broadcast %78 : f32 to vector<2x256xf32>
    %978 = arith.mulf %977, %710 : vector<2x256xf32>
    %979 = arith.addf %967, %978 : vector<2x256xf32>
    %980 = vector.broadcast %79 : f32 to vector<2x256xf32>
    %981 = arith.mulf %980, %710 : vector<2x256xf32>
    %982 = arith.addf %970, %981 : vector<2x256xf32>
    %c255_i32_73 = arith.constant 255 : i32
    %983 = tpu.dynamic_rotate %704 by %c255_i32_73 dim 1 : vector<2x256xf32>, i32 -> vector<2x256xf32>
    %984 = arith.mulf %983, %180 : vector<2x256xf32>
    %c255_i32_74 = arith.constant 255 : i32
    %985 = tpu.dynamic_rotate %706 by %c255_i32_74 dim 1 : vector<2x256xf32>, i32 -> vector<2x256xf32>
    %986 = arith.mulf %985, %180 : vector<2x256xf32>
    %c255_i32_75 = arith.constant 255 : i32
    %987 = tpu.dynamic_rotate %708 by %c255_i32_75 dim 1 : vector<2x256xf32>, i32 -> vector<2x256xf32>
    %988 = arith.mulf %987, %180 : vector<2x256xf32>
    %c255_i32_76 = arith.constant 255 : i32
    %989 = tpu.dynamic_rotate %710 by %c255_i32_76 dim 1 : vector<2x256xf32>, i32 -> vector<2x256xf32>
    %990 = arith.mulf %989, %180 : vector<2x256xf32>
    %991 = vector.broadcast %80 : f32 to vector<2x256xf32>
    %992 = arith.mulf %991, %984 : vector<2x256xf32>
    %993 = arith.addf %973, %992 : vector<2x256xf32>
    %994 = vector.broadcast %81 : f32 to vector<2x256xf32>
    %995 = arith.mulf %994, %984 : vector<2x256xf32>
    %996 = arith.addf %976, %995 : vector<2x256xf32>
    %997 = vector.broadcast %82 : f32 to vector<2x256xf32>
    %998 = arith.mulf %997, %984 : vector<2x256xf32>
    %999 = arith.addf %979, %998 : vector<2x256xf32>
    %1000 = vector.broadcast %83 : f32 to vector<2x256xf32>
    %1001 = arith.mulf %1000, %984 : vector<2x256xf32>
    %1002 = arith.addf %982, %1001 : vector<2x256xf32>
    %1003 = vector.broadcast %84 : f32 to vector<2x256xf32>
    %1004 = arith.mulf %1003, %986 : vector<2x256xf32>
    %1005 = arith.addf %993, %1004 : vector<2x256xf32>
    %1006 = vector.broadcast %85 : f32 to vector<2x256xf32>
    %1007 = arith.mulf %1006, %986 : vector<2x256xf32>
    %1008 = arith.addf %996, %1007 : vector<2x256xf32>
    %1009 = vector.broadcast %86 : f32 to vector<2x256xf32>
    %1010 = arith.mulf %1009, %986 : vector<2x256xf32>
    %1011 = arith.addf %999, %1010 : vector<2x256xf32>
    %1012 = vector.broadcast %87 : f32 to vector<2x256xf32>
    %1013 = arith.mulf %1012, %986 : vector<2x256xf32>
    %1014 = arith.addf %1002, %1013 : vector<2x256xf32>
    %1015 = vector.broadcast %88 : f32 to vector<2x256xf32>
    %1016 = arith.mulf %1015, %988 : vector<2x256xf32>
    %1017 = arith.addf %1005, %1016 : vector<2x256xf32>
    %1018 = vector.broadcast %89 : f32 to vector<2x256xf32>
    %1019 = arith.mulf %1018, %988 : vector<2x256xf32>
    %1020 = arith.addf %1008, %1019 : vector<2x256xf32>
    %1021 = vector.broadcast %90 : f32 to vector<2x256xf32>
    %1022 = arith.mulf %1021, %988 : vector<2x256xf32>
    %1023 = arith.addf %1011, %1022 : vector<2x256xf32>
    %1024 = vector.broadcast %91 : f32 to vector<2x256xf32>
    %1025 = arith.mulf %1024, %988 : vector<2x256xf32>
    %1026 = arith.addf %1014, %1025 : vector<2x256xf32>
    %1027 = vector.broadcast %92 : f32 to vector<2x256xf32>
    %1028 = arith.mulf %1027, %990 : vector<2x256xf32>
    %1029 = arith.addf %1017, %1028 : vector<2x256xf32>
    %1030 = vector.broadcast %93 : f32 to vector<2x256xf32>
    %1031 = arith.mulf %1030, %990 : vector<2x256xf32>
    %1032 = arith.addf %1020, %1031 : vector<2x256xf32>
    %1033 = vector.broadcast %94 : f32 to vector<2x256xf32>
    %1034 = arith.mulf %1033, %990 : vector<2x256xf32>
    %1035 = arith.addf %1023, %1034 : vector<2x256xf32>
    %1036 = vector.broadcast %95 : f32 to vector<2x256xf32>
    %1037 = arith.mulf %1036, %990 : vector<2x256xf32>
    %1038 = arith.addf %1026, %1037 : vector<2x256xf32>
    %c241_i32_77 = arith.constant 241 : i32
    %1039 = tpu.dynamic_rotate %704 by %c241_i32_77 dim 1 : vector<2x256xf32>, i32 -> vector<2x256xf32>
    %1040 = arith.mulf %1039, %187 : vector<2x256xf32>
    %c241_i32_78 = arith.constant 241 : i32
    %1041 = tpu.dynamic_rotate %706 by %c241_i32_78 dim 1 : vector<2x256xf32>, i32 -> vector<2x256xf32>
    %1042 = arith.mulf %1041, %187 : vector<2x256xf32>
    %c241_i32_79 = arith.constant 241 : i32
    %1043 = tpu.dynamic_rotate %708 by %c241_i32_79 dim 1 : vector<2x256xf32>, i32 -> vector<2x256xf32>
    %1044 = arith.mulf %1043, %187 : vector<2x256xf32>
    %c241_i32_80 = arith.constant 241 : i32
    %1045 = tpu.dynamic_rotate %710 by %c241_i32_80 dim 1 : vector<2x256xf32>, i32 -> vector<2x256xf32>
    %1046 = arith.mulf %1045, %187 : vector<2x256xf32>
    %1047 = vector.broadcast %96 : f32 to vector<2x256xf32>
    %1048 = arith.mulf %1047, %1040 : vector<2x256xf32>
    %1049 = arith.addf %1029, %1048 : vector<2x256xf32>
    %1050 = vector.broadcast %97 : f32 to vector<2x256xf32>
    %1051 = arith.mulf %1050, %1040 : vector<2x256xf32>
    %1052 = arith.addf %1032, %1051 : vector<2x256xf32>
    %1053 = vector.broadcast %98 : f32 to vector<2x256xf32>
    %1054 = arith.mulf %1053, %1040 : vector<2x256xf32>
    %1055 = arith.addf %1035, %1054 : vector<2x256xf32>
    %1056 = vector.broadcast %99 : f32 to vector<2x256xf32>
    %1057 = arith.mulf %1056, %1040 : vector<2x256xf32>
    %1058 = arith.addf %1038, %1057 : vector<2x256xf32>
    %1059 = vector.broadcast %100 : f32 to vector<2x256xf32>
    %1060 = arith.mulf %1059, %1042 : vector<2x256xf32>
    %1061 = arith.addf %1049, %1060 : vector<2x256xf32>
    %1062 = vector.broadcast %101 : f32 to vector<2x256xf32>
    %1063 = arith.mulf %1062, %1042 : vector<2x256xf32>
    %1064 = arith.addf %1052, %1063 : vector<2x256xf32>
    %1065 = vector.broadcast %102 : f32 to vector<2x256xf32>
    %1066 = arith.mulf %1065, %1042 : vector<2x256xf32>
    %1067 = arith.addf %1055, %1066 : vector<2x256xf32>
    %1068 = vector.broadcast %103 : f32 to vector<2x256xf32>
    %1069 = arith.mulf %1068, %1042 : vector<2x256xf32>
    %1070 = arith.addf %1058, %1069 : vector<2x256xf32>
    %1071 = vector.broadcast %104 : f32 to vector<2x256xf32>
    %1072 = arith.mulf %1071, %1044 : vector<2x256xf32>
    %1073 = arith.addf %1061, %1072 : vector<2x256xf32>
    %1074 = vector.broadcast %105 : f32 to vector<2x256xf32>
    %1075 = arith.mulf %1074, %1044 : vector<2x256xf32>
    %1076 = arith.addf %1064, %1075 : vector<2x256xf32>
    %1077 = vector.broadcast %106 : f32 to vector<2x256xf32>
    %1078 = arith.mulf %1077, %1044 : vector<2x256xf32>
    %1079 = arith.addf %1067, %1078 : vector<2x256xf32>
    %1080 = vector.broadcast %107 : f32 to vector<2x256xf32>
    %1081 = arith.mulf %1080, %1044 : vector<2x256xf32>
    %1082 = arith.addf %1070, %1081 : vector<2x256xf32>
    %1083 = vector.broadcast %108 : f32 to vector<2x256xf32>
    %1084 = arith.mulf %1083, %1046 : vector<2x256xf32>
    %1085 = arith.addf %1073, %1084 : vector<2x256xf32>
    %1086 = vector.broadcast %109 : f32 to vector<2x256xf32>
    %1087 = arith.mulf %1086, %1046 : vector<2x256xf32>
    %1088 = arith.addf %1076, %1087 : vector<2x256xf32>
    %1089 = vector.broadcast %110 : f32 to vector<2x256xf32>
    %1090 = arith.mulf %1089, %1046 : vector<2x256xf32>
    %1091 = arith.addf %1079, %1090 : vector<2x256xf32>
    %1092 = vector.broadcast %111 : f32 to vector<2x256xf32>
    %1093 = arith.mulf %1092, %1046 : vector<2x256xf32>
    %1094 = arith.addf %1082, %1093 : vector<2x256xf32>
    %c240_i32_81 = arith.constant 240 : i32
    %1095 = tpu.dynamic_rotate %704 by %c240_i32_81 dim 1 : vector<2x256xf32>, i32 -> vector<2x256xf32>
    %1096 = arith.mulf %1095, %191 : vector<2x256xf32>
    %c240_i32_82 = arith.constant 240 : i32
    %1097 = tpu.dynamic_rotate %706 by %c240_i32_82 dim 1 : vector<2x256xf32>, i32 -> vector<2x256xf32>
    %1098 = arith.mulf %1097, %191 : vector<2x256xf32>
    %c240_i32_83 = arith.constant 240 : i32
    %1099 = tpu.dynamic_rotate %708 by %c240_i32_83 dim 1 : vector<2x256xf32>, i32 -> vector<2x256xf32>
    %1100 = arith.mulf %1099, %191 : vector<2x256xf32>
    %c240_i32_84 = arith.constant 240 : i32
    %1101 = tpu.dynamic_rotate %710 by %c240_i32_84 dim 1 : vector<2x256xf32>, i32 -> vector<2x256xf32>
    %1102 = arith.mulf %1101, %191 : vector<2x256xf32>
    %1103 = vector.broadcast %112 : f32 to vector<2x256xf32>
    %1104 = arith.mulf %1103, %1096 : vector<2x256xf32>
    %1105 = arith.addf %1085, %1104 : vector<2x256xf32>
    %1106 = vector.broadcast %113 : f32 to vector<2x256xf32>
    %1107 = arith.mulf %1106, %1096 : vector<2x256xf32>
    %1108 = arith.addf %1088, %1107 : vector<2x256xf32>
    %1109 = vector.broadcast %114 : f32 to vector<2x256xf32>
    %1110 = arith.mulf %1109, %1096 : vector<2x256xf32>
    %1111 = arith.addf %1091, %1110 : vector<2x256xf32>
    %1112 = vector.broadcast %115 : f32 to vector<2x256xf32>
    %1113 = arith.mulf %1112, %1096 : vector<2x256xf32>
    %1114 = arith.addf %1094, %1113 : vector<2x256xf32>
    %1115 = vector.broadcast %116 : f32 to vector<2x256xf32>
    %1116 = arith.mulf %1115, %1098 : vector<2x256xf32>
    %1117 = arith.addf %1105, %1116 : vector<2x256xf32>
    %1118 = vector.broadcast %117 : f32 to vector<2x256xf32>
    %1119 = arith.mulf %1118, %1098 : vector<2x256xf32>
    %1120 = arith.addf %1108, %1119 : vector<2x256xf32>
    %1121 = vector.broadcast %118 : f32 to vector<2x256xf32>
    %1122 = arith.mulf %1121, %1098 : vector<2x256xf32>
    %1123 = arith.addf %1111, %1122 : vector<2x256xf32>
    %1124 = vector.broadcast %119 : f32 to vector<2x256xf32>
    %1125 = arith.mulf %1124, %1098 : vector<2x256xf32>
    %1126 = arith.addf %1114, %1125 : vector<2x256xf32>
    %1127 = vector.broadcast %120 : f32 to vector<2x256xf32>
    %1128 = arith.mulf %1127, %1100 : vector<2x256xf32>
    %1129 = arith.addf %1117, %1128 : vector<2x256xf32>
    %1130 = vector.broadcast %121 : f32 to vector<2x256xf32>
    %1131 = arith.mulf %1130, %1100 : vector<2x256xf32>
    %1132 = arith.addf %1120, %1131 : vector<2x256xf32>
    %1133 = vector.broadcast %122 : f32 to vector<2x256xf32>
    %1134 = arith.mulf %1133, %1100 : vector<2x256xf32>
    %1135 = arith.addf %1123, %1134 : vector<2x256xf32>
    %1136 = vector.broadcast %123 : f32 to vector<2x256xf32>
    %1137 = arith.mulf %1136, %1100 : vector<2x256xf32>
    %1138 = arith.addf %1126, %1137 : vector<2x256xf32>
    %1139 = vector.broadcast %124 : f32 to vector<2x256xf32>
    %1140 = arith.mulf %1139, %1102 : vector<2x256xf32>
    %1141 = arith.addf %1129, %1140 : vector<2x256xf32>
    %1142 = vector.broadcast %125 : f32 to vector<2x256xf32>
    %1143 = arith.mulf %1142, %1102 : vector<2x256xf32>
    %1144 = arith.addf %1132, %1143 : vector<2x256xf32>
    %1145 = vector.broadcast %126 : f32 to vector<2x256xf32>
    %1146 = arith.mulf %1145, %1102 : vector<2x256xf32>
    %1147 = arith.addf %1135, %1146 : vector<2x256xf32>
    %1148 = vector.broadcast %127 : f32 to vector<2x256xf32>
    %1149 = arith.mulf %1148, %1102 : vector<2x256xf32>
    %1150 = arith.addf %1138, %1149 : vector<2x256xf32>
    %c239_i32_85 = arith.constant 239 : i32
    %1151 = tpu.dynamic_rotate %704 by %c239_i32_85 dim 1 : vector<2x256xf32>, i32 -> vector<2x256xf32>
    %1152 = arith.mulf %1151, %198 : vector<2x256xf32>
    %c239_i32_86 = arith.constant 239 : i32
    %1153 = tpu.dynamic_rotate %706 by %c239_i32_86 dim 1 : vector<2x256xf32>, i32 -> vector<2x256xf32>
    %1154 = arith.mulf %1153, %198 : vector<2x256xf32>
    %c239_i32_87 = arith.constant 239 : i32
    %1155 = tpu.dynamic_rotate %708 by %c239_i32_87 dim 1 : vector<2x256xf32>, i32 -> vector<2x256xf32>
    %1156 = arith.mulf %1155, %198 : vector<2x256xf32>
    %c239_i32_88 = arith.constant 239 : i32
    %1157 = tpu.dynamic_rotate %710 by %c239_i32_88 dim 1 : vector<2x256xf32>, i32 -> vector<2x256xf32>
    %1158 = arith.mulf %1157, %198 : vector<2x256xf32>
    %1159 = vector.broadcast %128 : f32 to vector<2x256xf32>
    %1160 = arith.mulf %1159, %1152 : vector<2x256xf32>
    %1161 = arith.addf %1141, %1160 : vector<2x256xf32>
    %1162 = vector.broadcast %129 : f32 to vector<2x256xf32>
    %1163 = arith.mulf %1162, %1152 : vector<2x256xf32>
    %1164 = arith.addf %1144, %1163 : vector<2x256xf32>
    %1165 = vector.broadcast %130 : f32 to vector<2x256xf32>
    %1166 = arith.mulf %1165, %1152 : vector<2x256xf32>
    %1167 = arith.addf %1147, %1166 : vector<2x256xf32>
    %1168 = vector.broadcast %131 : f32 to vector<2x256xf32>
    %1169 = arith.mulf %1168, %1152 : vector<2x256xf32>
    %1170 = arith.addf %1150, %1169 : vector<2x256xf32>
    %1171 = vector.broadcast %132 : f32 to vector<2x256xf32>
    %1172 = arith.mulf %1171, %1154 : vector<2x256xf32>
    %1173 = arith.addf %1161, %1172 : vector<2x256xf32>
    %1174 = vector.broadcast %133 : f32 to vector<2x256xf32>
    %1175 = arith.mulf %1174, %1154 : vector<2x256xf32>
    %1176 = arith.addf %1164, %1175 : vector<2x256xf32>
    %1177 = vector.broadcast %134 : f32 to vector<2x256xf32>
    %1178 = arith.mulf %1177, %1154 : vector<2x256xf32>
    %1179 = arith.addf %1167, %1178 : vector<2x256xf32>
    %1180 = vector.broadcast %135 : f32 to vector<2x256xf32>
    %1181 = arith.mulf %1180, %1154 : vector<2x256xf32>
    %1182 = arith.addf %1170, %1181 : vector<2x256xf32>
    %1183 = vector.broadcast %136 : f32 to vector<2x256xf32>
    %1184 = arith.mulf %1183, %1156 : vector<2x256xf32>
    %1185 = arith.addf %1173, %1184 : vector<2x256xf32>
    %1186 = vector.broadcast %137 : f32 to vector<2x256xf32>
    %1187 = arith.mulf %1186, %1156 : vector<2x256xf32>
    %1188 = arith.addf %1176, %1187 : vector<2x256xf32>
    %1189 = vector.broadcast %138 : f32 to vector<2x256xf32>
    %1190 = arith.mulf %1189, %1156 : vector<2x256xf32>
    %1191 = arith.addf %1179, %1190 : vector<2x256xf32>
    %1192 = vector.broadcast %139 : f32 to vector<2x256xf32>
    %1193 = arith.mulf %1192, %1156 : vector<2x256xf32>
    %1194 = arith.addf %1182, %1193 : vector<2x256xf32>
    %1195 = vector.broadcast %140 : f32 to vector<2x256xf32>
    %1196 = arith.mulf %1195, %1158 : vector<2x256xf32>
    %1197 = arith.addf %1185, %1196 : vector<2x256xf32>
    %1198 = vector.broadcast %141 : f32 to vector<2x256xf32>
    %1199 = arith.mulf %1198, %1158 : vector<2x256xf32>
    %1200 = arith.addf %1188, %1199 : vector<2x256xf32>
    %1201 = vector.broadcast %142 : f32 to vector<2x256xf32>
    %1202 = arith.mulf %1201, %1158 : vector<2x256xf32>
    %1203 = arith.addf %1191, %1202 : vector<2x256xf32>
    %1204 = vector.broadcast %143 : f32 to vector<2x256xf32>
    %1205 = arith.mulf %1204, %1158 : vector<2x256xf32>
    %1206 = arith.addf %1194, %1205 : vector<2x256xf32>
    %cst_89 = arith.constant 0.000000e+00 : f32
    %1207 = vector.broadcast %cst_89 : f32 to vector<2x256xf32>
    %1208 = arith.maximumf %1197, %1207 : vector<2x256xf32>
    %cst_90 = arith.constant 0.000000e+00 : f32
    %1209 = vector.broadcast %cst_90 : f32 to vector<2x256xf32>
    %1210 = arith.maximumf %1200, %1209 : vector<2x256xf32>
    %cst_91 = arith.constant 0.000000e+00 : f32
    %1211 = vector.broadcast %cst_91 : f32 to vector<2x256xf32>
    %1212 = arith.maximumf %1203, %1211 : vector<2x256xf32>
    %cst_92 = arith.constant 0.000000e+00 : f32
    %1213 = vector.broadcast %cst_92 : f32 to vector<2x256xf32>
    %1214 = arith.maximumf %1206, %1213 : vector<2x256xf32>
    %c2_i32 = arith.constant 2 : i32
    %c17_i32_93 = arith.constant 17 : i32
    %1215 = tpu.dynamic_rotate %1208 by %c17_i32_93 dim 1 : vector<2x256xf32>, i32 -> vector<2x256xf32>
    %1216 = arith.mulf %1215, %161 : vector<2x256xf32>
    %c17_i32_94 = arith.constant 17 : i32
    %1217 = tpu.dynamic_rotate %1210 by %c17_i32_94 dim 1 : vector<2x256xf32>, i32 -> vector<2x256xf32>
    %1218 = arith.mulf %1217, %161 : vector<2x256xf32>
    %c17_i32_95 = arith.constant 17 : i32
    %1219 = tpu.dynamic_rotate %1212 by %c17_i32_95 dim 1 : vector<2x256xf32>, i32 -> vector<2x256xf32>
    %1220 = arith.mulf %1219, %161 : vector<2x256xf32>
    %c17_i32_96 = arith.constant 17 : i32
    %1221 = tpu.dynamic_rotate %1214 by %c17_i32_96 dim 1 : vector<2x256xf32>, i32 -> vector<2x256xf32>
    %1222 = arith.mulf %1221, %161 : vector<2x256xf32>
    %1223 = vector.broadcast %0 : f32 to vector<2x256xf32>
    %1224 = arith.mulf %1223, %1216 : vector<2x256xf32>
    %1225 = arith.addf %145, %1224 : vector<2x256xf32>
    %1226 = vector.broadcast %1 : f32 to vector<2x256xf32>
    %1227 = arith.mulf %1226, %1216 : vector<2x256xf32>
    %1228 = arith.addf %147, %1227 : vector<2x256xf32>
    %1229 = vector.broadcast %2 : f32 to vector<2x256xf32>
    %1230 = arith.mulf %1229, %1216 : vector<2x256xf32>
    %1231 = arith.addf %149, %1230 : vector<2x256xf32>
    %1232 = vector.broadcast %3 : f32 to vector<2x256xf32>
    %1233 = arith.mulf %1232, %1216 : vector<2x256xf32>
    %1234 = arith.addf %151, %1233 : vector<2x256xf32>
    %1235 = vector.broadcast %4 : f32 to vector<2x256xf32>
    %1236 = arith.mulf %1235, %1218 : vector<2x256xf32>
    %1237 = arith.addf %1225, %1236 : vector<2x256xf32>
    %1238 = vector.broadcast %5 : f32 to vector<2x256xf32>
    %1239 = arith.mulf %1238, %1218 : vector<2x256xf32>
    %1240 = arith.addf %1228, %1239 : vector<2x256xf32>
    %1241 = vector.broadcast %6 : f32 to vector<2x256xf32>
    %1242 = arith.mulf %1241, %1218 : vector<2x256xf32>
    %1243 = arith.addf %1231, %1242 : vector<2x256xf32>
    %1244 = vector.broadcast %7 : f32 to vector<2x256xf32>
    %1245 = arith.mulf %1244, %1218 : vector<2x256xf32>
    %1246 = arith.addf %1234, %1245 : vector<2x256xf32>
    %1247 = vector.broadcast %8 : f32 to vector<2x256xf32>
    %1248 = arith.mulf %1247, %1220 : vector<2x256xf32>
    %1249 = arith.addf %1237, %1248 : vector<2x256xf32>
    %1250 = vector.broadcast %9 : f32 to vector<2x256xf32>
    %1251 = arith.mulf %1250, %1220 : vector<2x256xf32>
    %1252 = arith.addf %1240, %1251 : vector<2x256xf32>
    %1253 = vector.broadcast %10 : f32 to vector<2x256xf32>
    %1254 = arith.mulf %1253, %1220 : vector<2x256xf32>
    %1255 = arith.addf %1243, %1254 : vector<2x256xf32>
    %1256 = vector.broadcast %11 : f32 to vector<2x256xf32>
    %1257 = arith.mulf %1256, %1220 : vector<2x256xf32>
    %1258 = arith.addf %1246, %1257 : vector<2x256xf32>
    %1259 = vector.broadcast %12 : f32 to vector<2x256xf32>
    %1260 = arith.mulf %1259, %1222 : vector<2x256xf32>
    %1261 = arith.addf %1249, %1260 : vector<2x256xf32>
    %1262 = vector.broadcast %13 : f32 to vector<2x256xf32>
    %1263 = arith.mulf %1262, %1222 : vector<2x256xf32>
    %1264 = arith.addf %1252, %1263 : vector<2x256xf32>
    %1265 = vector.broadcast %14 : f32 to vector<2x256xf32>
    %1266 = arith.mulf %1265, %1222 : vector<2x256xf32>
    %1267 = arith.addf %1255, %1266 : vector<2x256xf32>
    %1268 = vector.broadcast %15 : f32 to vector<2x256xf32>
    %1269 = arith.mulf %1268, %1222 : vector<2x256xf32>
    %1270 = arith.addf %1258, %1269 : vector<2x256xf32>
    %c16_i32_97 = arith.constant 16 : i32
    %1271 = tpu.dynamic_rotate %1208 by %c16_i32_97 dim 1 : vector<2x256xf32>, i32 -> vector<2x256xf32>
    %1272 = arith.mulf %1271, %165 : vector<2x256xf32>
    %c16_i32_98 = arith.constant 16 : i32
    %1273 = tpu.dynamic_rotate %1210 by %c16_i32_98 dim 1 : vector<2x256xf32>, i32 -> vector<2x256xf32>
    %1274 = arith.mulf %1273, %165 : vector<2x256xf32>
    %c16_i32_99 = arith.constant 16 : i32
    %1275 = tpu.dynamic_rotate %1212 by %c16_i32_99 dim 1 : vector<2x256xf32>, i32 -> vector<2x256xf32>
    %1276 = arith.mulf %1275, %165 : vector<2x256xf32>
    %c16_i32_100 = arith.constant 16 : i32
    %1277 = tpu.dynamic_rotate %1214 by %c16_i32_100 dim 1 : vector<2x256xf32>, i32 -> vector<2x256xf32>
    %1278 = arith.mulf %1277, %165 : vector<2x256xf32>
    %1279 = vector.broadcast %16 : f32 to vector<2x256xf32>
    %1280 = arith.mulf %1279, %1272 : vector<2x256xf32>
    %1281 = arith.addf %1261, %1280 : vector<2x256xf32>
    %1282 = vector.broadcast %17 : f32 to vector<2x256xf32>
    %1283 = arith.mulf %1282, %1272 : vector<2x256xf32>
    %1284 = arith.addf %1264, %1283 : vector<2x256xf32>
    %1285 = vector.broadcast %18 : f32 to vector<2x256xf32>
    %1286 = arith.mulf %1285, %1272 : vector<2x256xf32>
    %1287 = arith.addf %1267, %1286 : vector<2x256xf32>
    %1288 = vector.broadcast %19 : f32 to vector<2x256xf32>
    %1289 = arith.mulf %1288, %1272 : vector<2x256xf32>
    %1290 = arith.addf %1270, %1289 : vector<2x256xf32>
    %1291 = vector.broadcast %20 : f32 to vector<2x256xf32>
    %1292 = arith.mulf %1291, %1274 : vector<2x256xf32>
    %1293 = arith.addf %1281, %1292 : vector<2x256xf32>
    %1294 = vector.broadcast %21 : f32 to vector<2x256xf32>
    %1295 = arith.mulf %1294, %1274 : vector<2x256xf32>
    %1296 = arith.addf %1284, %1295 : vector<2x256xf32>
    %1297 = vector.broadcast %22 : f32 to vector<2x256xf32>
    %1298 = arith.mulf %1297, %1274 : vector<2x256xf32>
    %1299 = arith.addf %1287, %1298 : vector<2x256xf32>
    %1300 = vector.broadcast %23 : f32 to vector<2x256xf32>
    %1301 = arith.mulf %1300, %1274 : vector<2x256xf32>
    %1302 = arith.addf %1290, %1301 : vector<2x256xf32>
    %1303 = vector.broadcast %24 : f32 to vector<2x256xf32>
    %1304 = arith.mulf %1303, %1276 : vector<2x256xf32>
    %1305 = arith.addf %1293, %1304 : vector<2x256xf32>
    %1306 = vector.broadcast %25 : f32 to vector<2x256xf32>
    %1307 = arith.mulf %1306, %1276 : vector<2x256xf32>
    %1308 = arith.addf %1296, %1307 : vector<2x256xf32>
    %1309 = vector.broadcast %26 : f32 to vector<2x256xf32>
    %1310 = arith.mulf %1309, %1276 : vector<2x256xf32>
    %1311 = arith.addf %1299, %1310 : vector<2x256xf32>
    %1312 = vector.broadcast %27 : f32 to vector<2x256xf32>
    %1313 = arith.mulf %1312, %1276 : vector<2x256xf32>
    %1314 = arith.addf %1302, %1313 : vector<2x256xf32>
    %1315 = vector.broadcast %28 : f32 to vector<2x256xf32>
    %1316 = arith.mulf %1315, %1278 : vector<2x256xf32>
    %1317 = arith.addf %1305, %1316 : vector<2x256xf32>
    %1318 = vector.broadcast %29 : f32 to vector<2x256xf32>
    %1319 = arith.mulf %1318, %1278 : vector<2x256xf32>
    %1320 = arith.addf %1308, %1319 : vector<2x256xf32>
    %1321 = vector.broadcast %30 : f32 to vector<2x256xf32>
    %1322 = arith.mulf %1321, %1278 : vector<2x256xf32>
    %1323 = arith.addf %1311, %1322 : vector<2x256xf32>
    %1324 = vector.broadcast %31 : f32 to vector<2x256xf32>
    %1325 = arith.mulf %1324, %1278 : vector<2x256xf32>
    %1326 = arith.addf %1314, %1325 : vector<2x256xf32>
    %c15_i32_101 = arith.constant 15 : i32
    %1327 = tpu.dynamic_rotate %1208 by %c15_i32_101 dim 1 : vector<2x256xf32>, i32 -> vector<2x256xf32>
    %1328 = arith.mulf %1327, %172 : vector<2x256xf32>
    %c15_i32_102 = arith.constant 15 : i32
    %1329 = tpu.dynamic_rotate %1210 by %c15_i32_102 dim 1 : vector<2x256xf32>, i32 -> vector<2x256xf32>
    %1330 = arith.mulf %1329, %172 : vector<2x256xf32>
    %c15_i32_103 = arith.constant 15 : i32
    %1331 = tpu.dynamic_rotate %1212 by %c15_i32_103 dim 1 : vector<2x256xf32>, i32 -> vector<2x256xf32>
    %1332 = arith.mulf %1331, %172 : vector<2x256xf32>
    %c15_i32_104 = arith.constant 15 : i32
    %1333 = tpu.dynamic_rotate %1214 by %c15_i32_104 dim 1 : vector<2x256xf32>, i32 -> vector<2x256xf32>
    %1334 = arith.mulf %1333, %172 : vector<2x256xf32>
    %1335 = vector.broadcast %32 : f32 to vector<2x256xf32>
    %1336 = arith.mulf %1335, %1328 : vector<2x256xf32>
    %1337 = arith.addf %1317, %1336 : vector<2x256xf32>
    %1338 = vector.broadcast %33 : f32 to vector<2x256xf32>
    %1339 = arith.mulf %1338, %1328 : vector<2x256xf32>
    %1340 = arith.addf %1320, %1339 : vector<2x256xf32>
    %1341 = vector.broadcast %34 : f32 to vector<2x256xf32>
    %1342 = arith.mulf %1341, %1328 : vector<2x256xf32>
    %1343 = arith.addf %1323, %1342 : vector<2x256xf32>
    %1344 = vector.broadcast %35 : f32 to vector<2x256xf32>
    %1345 = arith.mulf %1344, %1328 : vector<2x256xf32>
    %1346 = arith.addf %1326, %1345 : vector<2x256xf32>
    %1347 = vector.broadcast %36 : f32 to vector<2x256xf32>
    %1348 = arith.mulf %1347, %1330 : vector<2x256xf32>
    %1349 = arith.addf %1337, %1348 : vector<2x256xf32>
    %1350 = vector.broadcast %37 : f32 to vector<2x256xf32>
    %1351 = arith.mulf %1350, %1330 : vector<2x256xf32>
    %1352 = arith.addf %1340, %1351 : vector<2x256xf32>
    %1353 = vector.broadcast %38 : f32 to vector<2x256xf32>
    %1354 = arith.mulf %1353, %1330 : vector<2x256xf32>
    %1355 = arith.addf %1343, %1354 : vector<2x256xf32>
    %1356 = vector.broadcast %39 : f32 to vector<2x256xf32>
    %1357 = arith.mulf %1356, %1330 : vector<2x256xf32>
    %1358 = arith.addf %1346, %1357 : vector<2x256xf32>
    %1359 = vector.broadcast %40 : f32 to vector<2x256xf32>
    %1360 = arith.mulf %1359, %1332 : vector<2x256xf32>
    %1361 = arith.addf %1349, %1360 : vector<2x256xf32>
    %1362 = vector.broadcast %41 : f32 to vector<2x256xf32>
    %1363 = arith.mulf %1362, %1332 : vector<2x256xf32>
    %1364 = arith.addf %1352, %1363 : vector<2x256xf32>
    %1365 = vector.broadcast %42 : f32 to vector<2x256xf32>
    %1366 = arith.mulf %1365, %1332 : vector<2x256xf32>
    %1367 = arith.addf %1355, %1366 : vector<2x256xf32>
    %1368 = vector.broadcast %43 : f32 to vector<2x256xf32>
    %1369 = arith.mulf %1368, %1332 : vector<2x256xf32>
    %1370 = arith.addf %1358, %1369 : vector<2x256xf32>
    %1371 = vector.broadcast %44 : f32 to vector<2x256xf32>
    %1372 = arith.mulf %1371, %1334 : vector<2x256xf32>
    %1373 = arith.addf %1361, %1372 : vector<2x256xf32>
    %1374 = vector.broadcast %45 : f32 to vector<2x256xf32>
    %1375 = arith.mulf %1374, %1334 : vector<2x256xf32>
    %1376 = arith.addf %1364, %1375 : vector<2x256xf32>
    %1377 = vector.broadcast %46 : f32 to vector<2x256xf32>
    %1378 = arith.mulf %1377, %1334 : vector<2x256xf32>
    %1379 = arith.addf %1367, %1378 : vector<2x256xf32>
    %1380 = vector.broadcast %47 : f32 to vector<2x256xf32>
    %1381 = arith.mulf %1380, %1334 : vector<2x256xf32>
    %1382 = arith.addf %1370, %1381 : vector<2x256xf32>
    %c1_i32_105 = arith.constant 1 : i32
    %1383 = tpu.dynamic_rotate %1208 by %c1_i32_105 dim 1 : vector<2x256xf32>, i32 -> vector<2x256xf32>
    %1384 = arith.mulf %1383, %176 : vector<2x256xf32>
    %c1_i32_106 = arith.constant 1 : i32
    %1385 = tpu.dynamic_rotate %1210 by %c1_i32_106 dim 1 : vector<2x256xf32>, i32 -> vector<2x256xf32>
    %1386 = arith.mulf %1385, %176 : vector<2x256xf32>
    %c1_i32_107 = arith.constant 1 : i32
    %1387 = tpu.dynamic_rotate %1212 by %c1_i32_107 dim 1 : vector<2x256xf32>, i32 -> vector<2x256xf32>
    %1388 = arith.mulf %1387, %176 : vector<2x256xf32>
    %c1_i32_108 = arith.constant 1 : i32
    %1389 = tpu.dynamic_rotate %1214 by %c1_i32_108 dim 1 : vector<2x256xf32>, i32 -> vector<2x256xf32>
    %1390 = arith.mulf %1389, %176 : vector<2x256xf32>
    %1391 = vector.broadcast %48 : f32 to vector<2x256xf32>
    %1392 = arith.mulf %1391, %1384 : vector<2x256xf32>
    %1393 = arith.addf %1373, %1392 : vector<2x256xf32>
    %1394 = vector.broadcast %49 : f32 to vector<2x256xf32>
    %1395 = arith.mulf %1394, %1384 : vector<2x256xf32>
    %1396 = arith.addf %1376, %1395 : vector<2x256xf32>
    %1397 = vector.broadcast %50 : f32 to vector<2x256xf32>
    %1398 = arith.mulf %1397, %1384 : vector<2x256xf32>
    %1399 = arith.addf %1379, %1398 : vector<2x256xf32>
    %1400 = vector.broadcast %51 : f32 to vector<2x256xf32>
    %1401 = arith.mulf %1400, %1384 : vector<2x256xf32>
    %1402 = arith.addf %1382, %1401 : vector<2x256xf32>
    %1403 = vector.broadcast %52 : f32 to vector<2x256xf32>
    %1404 = arith.mulf %1403, %1386 : vector<2x256xf32>
    %1405 = arith.addf %1393, %1404 : vector<2x256xf32>
    %1406 = vector.broadcast %53 : f32 to vector<2x256xf32>
    %1407 = arith.mulf %1406, %1386 : vector<2x256xf32>
    %1408 = arith.addf %1396, %1407 : vector<2x256xf32>
    %1409 = vector.broadcast %54 : f32 to vector<2x256xf32>
    %1410 = arith.mulf %1409, %1386 : vector<2x256xf32>
    %1411 = arith.addf %1399, %1410 : vector<2x256xf32>
    %1412 = vector.broadcast %55 : f32 to vector<2x256xf32>
    %1413 = arith.mulf %1412, %1386 : vector<2x256xf32>
    %1414 = arith.addf %1402, %1413 : vector<2x256xf32>
    %1415 = vector.broadcast %56 : f32 to vector<2x256xf32>
    %1416 = arith.mulf %1415, %1388 : vector<2x256xf32>
    %1417 = arith.addf %1405, %1416 : vector<2x256xf32>
    %1418 = vector.broadcast %57 : f32 to vector<2x256xf32>
    %1419 = arith.mulf %1418, %1388 : vector<2x256xf32>
    %1420 = arith.addf %1408, %1419 : vector<2x256xf32>
    %1421 = vector.broadcast %58 : f32 to vector<2x256xf32>
    %1422 = arith.mulf %1421, %1388 : vector<2x256xf32>
    %1423 = arith.addf %1411, %1422 : vector<2x256xf32>
    %1424 = vector.broadcast %59 : f32 to vector<2x256xf32>
    %1425 = arith.mulf %1424, %1388 : vector<2x256xf32>
    %1426 = arith.addf %1414, %1425 : vector<2x256xf32>
    %1427 = vector.broadcast %60 : f32 to vector<2x256xf32>
    %1428 = arith.mulf %1427, %1390 : vector<2x256xf32>
    %1429 = arith.addf %1417, %1428 : vector<2x256xf32>
    %1430 = vector.broadcast %61 : f32 to vector<2x256xf32>
    %1431 = arith.mulf %1430, %1390 : vector<2x256xf32>
    %1432 = arith.addf %1420, %1431 : vector<2x256xf32>
    %1433 = vector.broadcast %62 : f32 to vector<2x256xf32>
    %1434 = arith.mulf %1433, %1390 : vector<2x256xf32>
    %1435 = arith.addf %1423, %1434 : vector<2x256xf32>
    %1436 = vector.broadcast %63 : f32 to vector<2x256xf32>
    %1437 = arith.mulf %1436, %1390 : vector<2x256xf32>
    %1438 = arith.addf %1426, %1437 : vector<2x256xf32>
    %1439 = vector.broadcast %64 : f32 to vector<2x256xf32>
    %1440 = arith.mulf %1439, %1208 : vector<2x256xf32>
    %1441 = arith.addf %1429, %1440 : vector<2x256xf32>
    %1442 = vector.broadcast %65 : f32 to vector<2x256xf32>
    %1443 = arith.mulf %1442, %1208 : vector<2x256xf32>
    %1444 = arith.addf %1432, %1443 : vector<2x256xf32>
    %1445 = vector.broadcast %66 : f32 to vector<2x256xf32>
    %1446 = arith.mulf %1445, %1208 : vector<2x256xf32>
    %1447 = arith.addf %1435, %1446 : vector<2x256xf32>
    %1448 = vector.broadcast %67 : f32 to vector<2x256xf32>
    %1449 = arith.mulf %1448, %1208 : vector<2x256xf32>
    %1450 = arith.addf %1438, %1449 : vector<2x256xf32>
    %1451 = vector.broadcast %68 : f32 to vector<2x256xf32>
    %1452 = arith.mulf %1451, %1210 : vector<2x256xf32>
    %1453 = arith.addf %1441, %1452 : vector<2x256xf32>
    %1454 = vector.broadcast %69 : f32 to vector<2x256xf32>
    %1455 = arith.mulf %1454, %1210 : vector<2x256xf32>
    %1456 = arith.addf %1444, %1455 : vector<2x256xf32>
    %1457 = vector.broadcast %70 : f32 to vector<2x256xf32>
    %1458 = arith.mulf %1457, %1210 : vector<2x256xf32>
    %1459 = arith.addf %1447, %1458 : vector<2x256xf32>
    %1460 = vector.broadcast %71 : f32 to vector<2x256xf32>
    %1461 = arith.mulf %1460, %1210 : vector<2x256xf32>
    %1462 = arith.addf %1450, %1461 : vector<2x256xf32>
    %1463 = vector.broadcast %72 : f32 to vector<2x256xf32>
    %1464 = arith.mulf %1463, %1212 : vector<2x256xf32>
    %1465 = arith.addf %1453, %1464 : vector<2x256xf32>
    %1466 = vector.broadcast %73 : f32 to vector<2x256xf32>
    %1467 = arith.mulf %1466, %1212 : vector<2x256xf32>
    %1468 = arith.addf %1456, %1467 : vector<2x256xf32>
    %1469 = vector.broadcast %74 : f32 to vector<2x256xf32>
    %1470 = arith.mulf %1469, %1212 : vector<2x256xf32>
    %1471 = arith.addf %1459, %1470 : vector<2x256xf32>
    %1472 = vector.broadcast %75 : f32 to vector<2x256xf32>
    %1473 = arith.mulf %1472, %1212 : vector<2x256xf32>
    %1474 = arith.addf %1462, %1473 : vector<2x256xf32>
    %1475 = vector.broadcast %76 : f32 to vector<2x256xf32>
    %1476 = arith.mulf %1475, %1214 : vector<2x256xf32>
    %1477 = arith.addf %1465, %1476 : vector<2x256xf32>
    %1478 = vector.broadcast %77 : f32 to vector<2x256xf32>
    %1479 = arith.mulf %1478, %1214 : vector<2x256xf32>
    %1480 = arith.addf %1468, %1479 : vector<2x256xf32>
    %1481 = vector.broadcast %78 : f32 to vector<2x256xf32>
    %1482 = arith.mulf %1481, %1214 : vector<2x256xf32>
    %1483 = arith.addf %1471, %1482 : vector<2x256xf32>
    %1484 = vector.broadcast %79 : f32 to vector<2x256xf32>
    %1485 = arith.mulf %1484, %1214 : vector<2x256xf32>
    %1486 = arith.addf %1474, %1485 : vector<2x256xf32>
    %c255_i32_109 = arith.constant 255 : i32
    %1487 = tpu.dynamic_rotate %1208 by %c255_i32_109 dim 1 : vector<2x256xf32>, i32 -> vector<2x256xf32>
    %1488 = arith.mulf %1487, %180 : vector<2x256xf32>
    %c255_i32_110 = arith.constant 255 : i32
    %1489 = tpu.dynamic_rotate %1210 by %c255_i32_110 dim 1 : vector<2x256xf32>, i32 -> vector<2x256xf32>
    %1490 = arith.mulf %1489, %180 : vector<2x256xf32>
    %c255_i32_111 = arith.constant 255 : i32
    %1491 = tpu.dynamic_rotate %1212 by %c255_i32_111 dim 1 : vector<2x256xf32>, i32 -> vector<2x256xf32>
    %1492 = arith.mulf %1491, %180 : vector<2x256xf32>
    %c255_i32_112 = arith.constant 255 : i32
    %1493 = tpu.dynamic_rotate %1214 by %c255_i32_112 dim 1 : vector<2x256xf32>, i32 -> vector<2x256xf32>
    %1494 = arith.mulf %1493, %180 : vector<2x256xf32>
    %1495 = vector.broadcast %80 : f32 to vector<2x256xf32>
    %1496 = arith.mulf %1495, %1488 : vector<2x256xf32>
    %1497 = arith.addf %1477, %1496 : vector<2x256xf32>
    %1498 = vector.broadcast %81 : f32 to vector<2x256xf32>
    %1499 = arith.mulf %1498, %1488 : vector<2x256xf32>
    %1500 = arith.addf %1480, %1499 : vector<2x256xf32>
    %1501 = vector.broadcast %82 : f32 to vector<2x256xf32>
    %1502 = arith.mulf %1501, %1488 : vector<2x256xf32>
    %1503 = arith.addf %1483, %1502 : vector<2x256xf32>
    %1504 = vector.broadcast %83 : f32 to vector<2x256xf32>
    %1505 = arith.mulf %1504, %1488 : vector<2x256xf32>
    %1506 = arith.addf %1486, %1505 : vector<2x256xf32>
    %1507 = vector.broadcast %84 : f32 to vector<2x256xf32>
    %1508 = arith.mulf %1507, %1490 : vector<2x256xf32>
    %1509 = arith.addf %1497, %1508 : vector<2x256xf32>
    %1510 = vector.broadcast %85 : f32 to vector<2x256xf32>
    %1511 = arith.mulf %1510, %1490 : vector<2x256xf32>
    %1512 = arith.addf %1500, %1511 : vector<2x256xf32>
    %1513 = vector.broadcast %86 : f32 to vector<2x256xf32>
    %1514 = arith.mulf %1513, %1490 : vector<2x256xf32>
    %1515 = arith.addf %1503, %1514 : vector<2x256xf32>
    %1516 = vector.broadcast %87 : f32 to vector<2x256xf32>
    %1517 = arith.mulf %1516, %1490 : vector<2x256xf32>
    %1518 = arith.addf %1506, %1517 : vector<2x256xf32>
    %1519 = vector.broadcast %88 : f32 to vector<2x256xf32>
    %1520 = arith.mulf %1519, %1492 : vector<2x256xf32>
    %1521 = arith.addf %1509, %1520 : vector<2x256xf32>
    %1522 = vector.broadcast %89 : f32 to vector<2x256xf32>
    %1523 = arith.mulf %1522, %1492 : vector<2x256xf32>
    %1524 = arith.addf %1512, %1523 : vector<2x256xf32>
    %1525 = vector.broadcast %90 : f32 to vector<2x256xf32>
    %1526 = arith.mulf %1525, %1492 : vector<2x256xf32>
    %1527 = arith.addf %1515, %1526 : vector<2x256xf32>
    %1528 = vector.broadcast %91 : f32 to vector<2x256xf32>
    %1529 = arith.mulf %1528, %1492 : vector<2x256xf32>
    %1530 = arith.addf %1518, %1529 : vector<2x256xf32>
    %1531 = vector.broadcast %92 : f32 to vector<2x256xf32>
    %1532 = arith.mulf %1531, %1494 : vector<2x256xf32>
    %1533 = arith.addf %1521, %1532 : vector<2x256xf32>
    %1534 = vector.broadcast %93 : f32 to vector<2x256xf32>
    %1535 = arith.mulf %1534, %1494 : vector<2x256xf32>
    %1536 = arith.addf %1524, %1535 : vector<2x256xf32>
    %1537 = vector.broadcast %94 : f32 to vector<2x256xf32>
    %1538 = arith.mulf %1537, %1494 : vector<2x256xf32>
    %1539 = arith.addf %1527, %1538 : vector<2x256xf32>
    %1540 = vector.broadcast %95 : f32 to vector<2x256xf32>
    %1541 = arith.mulf %1540, %1494 : vector<2x256xf32>
    %1542 = arith.addf %1530, %1541 : vector<2x256xf32>
    %c241_i32_113 = arith.constant 241 : i32
    %1543 = tpu.dynamic_rotate %1208 by %c241_i32_113 dim 1 : vector<2x256xf32>, i32 -> vector<2x256xf32>
    %1544 = arith.mulf %1543, %187 : vector<2x256xf32>
    %c241_i32_114 = arith.constant 241 : i32
    %1545 = tpu.dynamic_rotate %1210 by %c241_i32_114 dim 1 : vector<2x256xf32>, i32 -> vector<2x256xf32>
    %1546 = arith.mulf %1545, %187 : vector<2x256xf32>
    %c241_i32_115 = arith.constant 241 : i32
    %1547 = tpu.dynamic_rotate %1212 by %c241_i32_115 dim 1 : vector<2x256xf32>, i32 -> vector<2x256xf32>
    %1548 = arith.mulf %1547, %187 : vector<2x256xf32>
    %c241_i32_116 = arith.constant 241 : i32
    %1549 = tpu.dynamic_rotate %1214 by %c241_i32_116 dim 1 : vector<2x256xf32>, i32 -> vector<2x256xf32>
    %1550 = arith.mulf %1549, %187 : vector<2x256xf32>
    %1551 = vector.broadcast %96 : f32 to vector<2x256xf32>
    %1552 = arith.mulf %1551, %1544 : vector<2x256xf32>
    %1553 = arith.addf %1533, %1552 : vector<2x256xf32>
    %1554 = vector.broadcast %97 : f32 to vector<2x256xf32>
    %1555 = arith.mulf %1554, %1544 : vector<2x256xf32>
    %1556 = arith.addf %1536, %1555 : vector<2x256xf32>
    %1557 = vector.broadcast %98 : f32 to vector<2x256xf32>
    %1558 = arith.mulf %1557, %1544 : vector<2x256xf32>
    %1559 = arith.addf %1539, %1558 : vector<2x256xf32>
    %1560 = vector.broadcast %99 : f32 to vector<2x256xf32>
    %1561 = arith.mulf %1560, %1544 : vector<2x256xf32>
    %1562 = arith.addf %1542, %1561 : vector<2x256xf32>
    %1563 = vector.broadcast %100 : f32 to vector<2x256xf32>
    %1564 = arith.mulf %1563, %1546 : vector<2x256xf32>
    %1565 = arith.addf %1553, %1564 : vector<2x256xf32>
    %1566 = vector.broadcast %101 : f32 to vector<2x256xf32>
    %1567 = arith.mulf %1566, %1546 : vector<2x256xf32>
    %1568 = arith.addf %1556, %1567 : vector<2x256xf32>
    %1569 = vector.broadcast %102 : f32 to vector<2x256xf32>
    %1570 = arith.mulf %1569, %1546 : vector<2x256xf32>
    %1571 = arith.addf %1559, %1570 : vector<2x256xf32>
    %1572 = vector.broadcast %103 : f32 to vector<2x256xf32>
    %1573 = arith.mulf %1572, %1546 : vector<2x256xf32>
    %1574 = arith.addf %1562, %1573 : vector<2x256xf32>
    %1575 = vector.broadcast %104 : f32 to vector<2x256xf32>
    %1576 = arith.mulf %1575, %1548 : vector<2x256xf32>
    %1577 = arith.addf %1565, %1576 : vector<2x256xf32>
    %1578 = vector.broadcast %105 : f32 to vector<2x256xf32>
    %1579 = arith.mulf %1578, %1548 : vector<2x256xf32>
    %1580 = arith.addf %1568, %1579 : vector<2x256xf32>
    %1581 = vector.broadcast %106 : f32 to vector<2x256xf32>
    %1582 = arith.mulf %1581, %1548 : vector<2x256xf32>
    %1583 = arith.addf %1571, %1582 : vector<2x256xf32>
    %1584 = vector.broadcast %107 : f32 to vector<2x256xf32>
    %1585 = arith.mulf %1584, %1548 : vector<2x256xf32>
    %1586 = arith.addf %1574, %1585 : vector<2x256xf32>
    %1587 = vector.broadcast %108 : f32 to vector<2x256xf32>
    %1588 = arith.mulf %1587, %1550 : vector<2x256xf32>
    %1589 = arith.addf %1577, %1588 : vector<2x256xf32>
    %1590 = vector.broadcast %109 : f32 to vector<2x256xf32>
    %1591 = arith.mulf %1590, %1550 : vector<2x256xf32>
    %1592 = arith.addf %1580, %1591 : vector<2x256xf32>
    %1593 = vector.broadcast %110 : f32 to vector<2x256xf32>
    %1594 = arith.mulf %1593, %1550 : vector<2x256xf32>
    %1595 = arith.addf %1583, %1594 : vector<2x256xf32>
    %1596 = vector.broadcast %111 : f32 to vector<2x256xf32>
    %1597 = arith.mulf %1596, %1550 : vector<2x256xf32>
    %1598 = arith.addf %1586, %1597 : vector<2x256xf32>
    %c240_i32_117 = arith.constant 240 : i32
    %1599 = tpu.dynamic_rotate %1208 by %c240_i32_117 dim 1 : vector<2x256xf32>, i32 -> vector<2x256xf32>
    %1600 = arith.mulf %1599, %191 : vector<2x256xf32>
    %c240_i32_118 = arith.constant 240 : i32
    %1601 = tpu.dynamic_rotate %1210 by %c240_i32_118 dim 1 : vector<2x256xf32>, i32 -> vector<2x256xf32>
    %1602 = arith.mulf %1601, %191 : vector<2x256xf32>
    %c240_i32_119 = arith.constant 240 : i32
    %1603 = tpu.dynamic_rotate %1212 by %c240_i32_119 dim 1 : vector<2x256xf32>, i32 -> vector<2x256xf32>
    %1604 = arith.mulf %1603, %191 : vector<2x256xf32>
    %c240_i32_120 = arith.constant 240 : i32
    %1605 = tpu.dynamic_rotate %1214 by %c240_i32_120 dim 1 : vector<2x256xf32>, i32 -> vector<2x256xf32>
    %1606 = arith.mulf %1605, %191 : vector<2x256xf32>
    %1607 = vector.broadcast %112 : f32 to vector<2x256xf32>
    %1608 = arith.mulf %1607, %1600 : vector<2x256xf32>
    %1609 = arith.addf %1589, %1608 : vector<2x256xf32>
    %1610 = vector.broadcast %113 : f32 to vector<2x256xf32>
    %1611 = arith.mulf %1610, %1600 : vector<2x256xf32>
    %1612 = arith.addf %1592, %1611 : vector<2x256xf32>
    %1613 = vector.broadcast %114 : f32 to vector<2x256xf32>
    %1614 = arith.mulf %1613, %1600 : vector<2x256xf32>
    %1615 = arith.addf %1595, %1614 : vector<2x256xf32>
    %1616 = vector.broadcast %115 : f32 to vector<2x256xf32>
    %1617 = arith.mulf %1616, %1600 : vector<2x256xf32>
    %1618 = arith.addf %1598, %1617 : vector<2x256xf32>
    %1619 = vector.broadcast %116 : f32 to vector<2x256xf32>
    %1620 = arith.mulf %1619, %1602 : vector<2x256xf32>
    %1621 = arith.addf %1609, %1620 : vector<2x256xf32>
    %1622 = vector.broadcast %117 : f32 to vector<2x256xf32>
    %1623 = arith.mulf %1622, %1602 : vector<2x256xf32>
    %1624 = arith.addf %1612, %1623 : vector<2x256xf32>
    %1625 = vector.broadcast %118 : f32 to vector<2x256xf32>
    %1626 = arith.mulf %1625, %1602 : vector<2x256xf32>
    %1627 = arith.addf %1615, %1626 : vector<2x256xf32>
    %1628 = vector.broadcast %119 : f32 to vector<2x256xf32>
    %1629 = arith.mulf %1628, %1602 : vector<2x256xf32>
    %1630 = arith.addf %1618, %1629 : vector<2x256xf32>
    %1631 = vector.broadcast %120 : f32 to vector<2x256xf32>
    %1632 = arith.mulf %1631, %1604 : vector<2x256xf32>
    %1633 = arith.addf %1621, %1632 : vector<2x256xf32>
    %1634 = vector.broadcast %121 : f32 to vector<2x256xf32>
    %1635 = arith.mulf %1634, %1604 : vector<2x256xf32>
    %1636 = arith.addf %1624, %1635 : vector<2x256xf32>
    %1637 = vector.broadcast %122 : f32 to vector<2x256xf32>
    %1638 = arith.mulf %1637, %1604 : vector<2x256xf32>
    %1639 = arith.addf %1627, %1638 : vector<2x256xf32>
    %1640 = vector.broadcast %123 : f32 to vector<2x256xf32>
    %1641 = arith.mulf %1640, %1604 : vector<2x256xf32>
    %1642 = arith.addf %1630, %1641 : vector<2x256xf32>
    %1643 = vector.broadcast %124 : f32 to vector<2x256xf32>
    %1644 = arith.mulf %1643, %1606 : vector<2x256xf32>
    %1645 = arith.addf %1633, %1644 : vector<2x256xf32>
    %1646 = vector.broadcast %125 : f32 to vector<2x256xf32>
    %1647 = arith.mulf %1646, %1606 : vector<2x256xf32>
    %1648 = arith.addf %1636, %1647 : vector<2x256xf32>
    %1649 = vector.broadcast %126 : f32 to vector<2x256xf32>
    %1650 = arith.mulf %1649, %1606 : vector<2x256xf32>
    %1651 = arith.addf %1639, %1650 : vector<2x256xf32>
    %1652 = vector.broadcast %127 : f32 to vector<2x256xf32>
    %1653 = arith.mulf %1652, %1606 : vector<2x256xf32>
    %1654 = arith.addf %1642, %1653 : vector<2x256xf32>
    %c239_i32_121 = arith.constant 239 : i32
    %1655 = tpu.dynamic_rotate %1208 by %c239_i32_121 dim 1 : vector<2x256xf32>, i32 -> vector<2x256xf32>
    %1656 = arith.mulf %1655, %198 : vector<2x256xf32>
    %c239_i32_122 = arith.constant 239 : i32
    %1657 = tpu.dynamic_rotate %1210 by %c239_i32_122 dim 1 : vector<2x256xf32>, i32 -> vector<2x256xf32>
    %1658 = arith.mulf %1657, %198 : vector<2x256xf32>
    %c239_i32_123 = arith.constant 239 : i32
    %1659 = tpu.dynamic_rotate %1212 by %c239_i32_123 dim 1 : vector<2x256xf32>, i32 -> vector<2x256xf32>
    %1660 = arith.mulf %1659, %198 : vector<2x256xf32>
    %c239_i32_124 = arith.constant 239 : i32
    %1661 = tpu.dynamic_rotate %1214 by %c239_i32_124 dim 1 : vector<2x256xf32>, i32 -> vector<2x256xf32>
    %1662 = arith.mulf %1661, %198 : vector<2x256xf32>
    %1663 = vector.broadcast %128 : f32 to vector<2x256xf32>
    %1664 = arith.mulf %1663, %1656 : vector<2x256xf32>
    %1665 = arith.addf %1645, %1664 : vector<2x256xf32>
    %1666 = vector.broadcast %129 : f32 to vector<2x256xf32>
    %1667 = arith.mulf %1666, %1656 : vector<2x256xf32>
    %1668 = arith.addf %1648, %1667 : vector<2x256xf32>
    %1669 = vector.broadcast %130 : f32 to vector<2x256xf32>
    %1670 = arith.mulf %1669, %1656 : vector<2x256xf32>
    %1671 = arith.addf %1651, %1670 : vector<2x256xf32>
    %1672 = vector.broadcast %131 : f32 to vector<2x256xf32>
    %1673 = arith.mulf %1672, %1656 : vector<2x256xf32>
    %1674 = arith.addf %1654, %1673 : vector<2x256xf32>
    %1675 = vector.broadcast %132 : f32 to vector<2x256xf32>
    %1676 = arith.mulf %1675, %1658 : vector<2x256xf32>
    %1677 = arith.addf %1665, %1676 : vector<2x256xf32>
    %1678 = vector.broadcast %133 : f32 to vector<2x256xf32>
    %1679 = arith.mulf %1678, %1658 : vector<2x256xf32>
    %1680 = arith.addf %1668, %1679 : vector<2x256xf32>
    %1681 = vector.broadcast %134 : f32 to vector<2x256xf32>
    %1682 = arith.mulf %1681, %1658 : vector<2x256xf32>
    %1683 = arith.addf %1671, %1682 : vector<2x256xf32>
    %1684 = vector.broadcast %135 : f32 to vector<2x256xf32>
    %1685 = arith.mulf %1684, %1658 : vector<2x256xf32>
    %1686 = arith.addf %1674, %1685 : vector<2x256xf32>
    %1687 = vector.broadcast %136 : f32 to vector<2x256xf32>
    %1688 = arith.mulf %1687, %1660 : vector<2x256xf32>
    %1689 = arith.addf %1677, %1688 : vector<2x256xf32>
    %1690 = vector.broadcast %137 : f32 to vector<2x256xf32>
    %1691 = arith.mulf %1690, %1660 : vector<2x256xf32>
    %1692 = arith.addf %1680, %1691 : vector<2x256xf32>
    %1693 = vector.broadcast %138 : f32 to vector<2x256xf32>
    %1694 = arith.mulf %1693, %1660 : vector<2x256xf32>
    %1695 = arith.addf %1683, %1694 : vector<2x256xf32>
    %1696 = vector.broadcast %139 : f32 to vector<2x256xf32>
    %1697 = arith.mulf %1696, %1660 : vector<2x256xf32>
    %1698 = arith.addf %1686, %1697 : vector<2x256xf32>
    %1699 = vector.broadcast %140 : f32 to vector<2x256xf32>
    %1700 = arith.mulf %1699, %1662 : vector<2x256xf32>
    %1701 = arith.addf %1689, %1700 : vector<2x256xf32>
    %1702 = vector.broadcast %141 : f32 to vector<2x256xf32>
    %1703 = arith.mulf %1702, %1662 : vector<2x256xf32>
    %1704 = arith.addf %1692, %1703 : vector<2x256xf32>
    %1705 = vector.broadcast %142 : f32 to vector<2x256xf32>
    %1706 = arith.mulf %1705, %1662 : vector<2x256xf32>
    %1707 = arith.addf %1695, %1706 : vector<2x256xf32>
    %1708 = vector.broadcast %143 : f32 to vector<2x256xf32>
    %1709 = arith.mulf %1708, %1662 : vector<2x256xf32>
    %1710 = arith.addf %1698, %1709 : vector<2x256xf32>
    %cst_125 = arith.constant 0.000000e+00 : f32
    %1711 = vector.broadcast %cst_125 : f32 to vector<2x256xf32>
    %1712 = arith.maximumf %1701, %1711 : vector<2x256xf32>
    %cst_126 = arith.constant 0.000000e+00 : f32
    %1713 = vector.broadcast %cst_126 : f32 to vector<2x256xf32>
    %1714 = arith.maximumf %1704, %1713 : vector<2x256xf32>
    %cst_127 = arith.constant 0.000000e+00 : f32
    %1715 = vector.broadcast %cst_127 : f32 to vector<2x256xf32>
    %1716 = arith.maximumf %1707, %1715 : vector<2x256xf32>
    %cst_128 = arith.constant 0.000000e+00 : f32
    %1717 = vector.broadcast %cst_128 : f32 to vector<2x256xf32>
    %1718 = arith.maximumf %1710, %1717 : vector<2x256xf32>
    %c0_129 = arith.constant 0 : index
    %c0_130 = arith.constant 0 : index
    %c0_131 = arith.constant 0 : index
    %1719 = vector.load %arg3[%c0_129, %c0_130, %c0_131] : memref<2x4x256xf32, #tpu.memory_space<vmem>>, vector<2x1x256xf32>
    %1720 = vector.shape_cast %1719 : vector<2x1x256xf32> to vector<2x256xf32>
    %1721 = vector.shape_cast %1712 : vector<2x256xf32> to vector<2x1x256xf32>
    tpu.vector_store %arg3[%c0_129, %c0_130, %c0_131], %1721 {strides = array<i32>} : memref<2x4x256xf32, #tpu.memory_space<vmem>>, vector<2x1x256xf32>,
    %c0_132 = arith.constant 0 : index
    %c1_133 = arith.constant 1 : index
    %c0_134 = arith.constant 0 : index
    %1722 = vector.load %arg3[%c0_132, %c1_133, %c0_134] : memref<2x4x256xf32, #tpu.memory_space<vmem>>, vector<2x1x256xf32>
    %1723 = vector.shape_cast %1722 : vector<2x1x256xf32> to vector<2x256xf32>
    %1724 = vector.shape_cast %1714 : vector<2x256xf32> to vector<2x1x256xf32>
    tpu.vector_store %arg3[%c0_132, %c1_133, %c0_134], %1724 {strides = array<i32>} : memref<2x4x256xf32, #tpu.memory_space<vmem>>, vector<2x1x256xf32>,
    %c0_135 = arith.constant 0 : index
    %c2_136 = arith.constant 2 : index
    %c0_137 = arith.constant 0 : index
    %1725 = vector.load %arg3[%c0_135, %c2_136, %c0_137] : memref<2x4x256xf32, #tpu.memory_space<vmem>>, vector<2x1x256xf32>
    %1726 = vector.shape_cast %1725 : vector<2x1x256xf32> to vector<2x256xf32>
    %1727 = vector.shape_cast %1716 : vector<2x256xf32> to vector<2x1x256xf32>
    tpu.vector_store %arg3[%c0_135, %c2_136, %c0_137], %1727 {strides = array<i32>} : memref<2x4x256xf32, #tpu.memory_space<vmem>>, vector<2x1x256xf32>,
    %c0_138 = arith.constant 0 : index
    %c3_139 = arith.constant 3 : index
    %c0_140 = arith.constant 0 : index
    %1728 = vector.load %arg3[%c0_138, %c3_139, %c0_140] : memref<2x4x256xf32, #tpu.memory_space<vmem>>, vector<2x1x256xf32>
    %1729 = vector.shape_cast %1728 : vector<2x1x256xf32> to vector<2x256xf32>
    %1730 = vector.shape_cast %1718 : vector<2x256xf32> to vector<2x1x256xf32>
    tpu.vector_store %arg3[%c0_138, %c3_139, %c0_140], %1730 {strides = array<i32>} : memref<2x4x256xf32, #tpu.memory_space<vmem>>, vector<2x1x256xf32>,
    return
  }
}

</mosaic_0001>

<llo_original>
// kernel: cnn_forward.1
$region0: #{cnn_forward.1}
  #allocation0 [shape = 'u32[]', space=smem, size = 0x4, offset = 0x4, fixed_abs, tag = 'smem constant byte address 0x4 - core index']
  #allocation1 [shape = 'u32[144,128]{1,0:T(1,128)}', space=vmem, size = 0x12000, scoped, tag = 'internal scratch']
  %s0 = inlined_call_operand.vmem [shape: f32[2,4,256], index: 0, kind: input, shape index: {}]
  %s1 = inlined_call_operand.vmem [shape: f32[144], index: 1, kind: input, shape index: {}]
  %s2 = inlined_call_operand.vmem [shape: f32[4], index: 2, kind: input, shape index: {}]
  %s3 = inlined_call_operand.vmem [shape: f32[2,4,256], index: 3, kind: output, shape index: {}]
  %s4 = sld [smem:[#allocation0]]
  $region30: #{cnn_forward.1} parent=0
    _
  %s6 = ssub.s32 1, %s4
  %s7 = scalar_select 0, %s6, %s4
  $region1: #{cnn_forward.1} parent=0
    #allocation2 [shape = 'u8[1024]{0}', space=smem, size = 0x400, scoped, tag = 'input window, operand 1, single buffered']
    #allocation3 [shape = 's32[1]{0}', space=sflag, size = 0x4, scoped, tag = 'scoped memory for cnn_forward.1']
    #allocation4 [shape = 'u8[512]{0}', space=smem, size = 0x200, scoped, tag = 'input window, operand 2, single buffered']
    #allocation5 [shape = 's32[1]{0}', space=sflag, size = 0x4, scoped, tag = 'scoped memory for cnn_forward.1']
    %8 = vsyncpa [#allocation3], 0
    %9 = vsyncpa [#allocation5], 0
    // Predicated region
    $region2: #{cnn_forward.1} parent=1 // pred_check
      _
    $region3: #{cnn_forward.1} parent=1 // pred_check_branch
      %11 = sbr.rel (0) target = $region5
    $region4: #{cnn_forward.1} parent=1 // pred_region
      _
    $region5: #{cnn_forward.1} parent=1 // pred_fallthru
      _
    // Predicated region
    $region6: #{cnn_forward.1} parent=1 // pred_check
      _
    $region7: #{cnn_forward.1} parent=1 // pred_check_branch
      %13 = sbr.rel (0) target = $region9
    $region8: #{cnn_forward.1} parent=1 // pred_region
      %s15 = ssub.s32 32, 32
      %16 = vsyncadd [#allocation3], %s15
      %s18 = sshll.u32 %s1, 4
      %s19 = int_to_ptr.vmem [resolvable:$true] %s18
      %21 = dma.vmem_to_smem %s19, 32, [#allocation2], [#allocation3]
    $region9: #{cnn_forward.1} parent=1 // pred_fallthru
      _
    // Predicated region
    $region10: #{cnn_forward.1} parent=1 // pred_check
      _
    $region11: #{cnn_forward.1} parent=1 // pred_check_branch
      %23 = sbr.rel (0) target = $region13
    $region12: #{cnn_forward.1} parent=1 // pred_region
      %s25 = ssub.s32 16, 16
      %26 = vsyncadd [#allocation5], %s25
      %s28 = sshll.u32 %s2, 4
      %s29 = int_to_ptr.vmem [resolvable:$true] %s28
      %31 = dma.vmem_to_smem %s29, 16, [#allocation4], [#allocation5]
    $region13: #{cnn_forward.1} parent=1 // pred_fallthru
      _
    // Predicated region
    $region14: #{cnn_forward.1} parent=1 // pred_check
      _
    $region15: #{cnn_forward.1} parent=1 // pred_check_branch
      %33 = sbr.rel (0) target = $region17
    $region16: #{cnn_forward.1} parent=1 // pred_region
      %34 = dma.done [#allocation3], 32
    $region17: #{cnn_forward.1} parent=1 // pred_fallthru
      _
    // Predicated region
    $region18: #{cnn_forward.1} parent=1 // pred_check
      _
    $region19: #{cnn_forward.1} parent=1 // pred_check_branch
      %36 = sbr.rel (0) target = $region21
    $region20: #{cnn_forward.1} parent=1 // pred_region
      %37 = dma.done [#allocation5], 16
    $region21: #{cnn_forward.1} parent=1 // pred_fallthru
      _
    %38 = sfence
    %s39 = sld [smem:[#allocation2]]
    %s40 = sld [smem:[#allocation2 + $0x24]]
    %s41 = sld [smem:[#allocation2 + $0x48]]
    %s42 = sld [smem:[#allocation2 + $0x6c]]
    %s43 = sld [smem:[#allocation2 + $0x9]]
    %s44 = sld [smem:[#allocation2 + $0x2d]]
    %s45 = sld [smem:[#allocation2 + $0x51]]
    %s46 = sld [smem:[#allocation2 + $0x75]]
    %s47 = sld [smem:[#allocation2 + $0x12]]
    %s48 = sld [smem:[#allocation2 + $0x36]]
    %s49 = sld [smem:[#allocation2 + $0x5a]]
    %s50 = sld [smem:[#allocation2 + $0x7e]]
    %s51 = sld [smem:[#allocation2 + $0x1b]]
    %s52 = sld [smem:[#allocation2 + $0x3f]]
    %s53 = sld [smem:[#allocation2 + $0x63]]
    %s54 = sld [smem:[#allocation2 + $0x87]]
    %s55 = sld [smem:[#allocation2 + $0x1]]
    %s56 = sld [smem:[#allocation2 + $0x25]]
    %s57 = sld [smem:[#allocation2 + $0x49]]
    %s58 = sld [smem:[#allocation2 + $0x6d]]
    %s59 = sld [smem:[#allocation2 + $0xa]]
    %s60 = sld [smem:[#allocation2 + $0x2e]]
    %s61 = sld [smem:[#allocation2 + $0x52]]
    %s62 = sld [smem:[#allocation2 + $0x76]]
    %s63 = sld [smem:[#allocation2 + $0x13]]
    %s64 = sld [smem:[#allocation2 + $0x37]]
    %s65 = sld [smem:[#allocation2 + $0x5b]]
    %s66 = sld [smem:[#allocation2 + $0x7f]]
    %s67 = sld [smem:[#allocation2 + $0x1c]]
    %s68 = sld [smem:[#allocation2 + $0x40]]
    %s69 = sld [smem:[#allocation2 + $0x64]]
    %s70 = sld [smem:[#allocation2 + $0x88]]
    %s71 = sld [smem:[#allocation2 + $0x2]]
    %s72 = sld [smem:[#allocation2 + $0x26]]
    %s73 = sld [smem:[#allocation2 + $0x4a]]
    %s74 = sld [smem:[#allocation2 + $0x6e]]
    %s75 = sld [smem:[#allocation2 + $0xb]]
    %s76 = sld [smem:[#allocation2 + $0x2f]]
    %s77 = sld [smem:[#allocation2 + $0x53]]
    %s78 = sld [smem:[#allocation2 + $0x77]]
    %s79 = sld [smem:[#allocation2 + $0x14]]
    %s80 = sld [smem:[#allocation2 + $0x38]]
    %s81 = sld [smem:[#allocation2 + $0x5c]]
    %s82 = sld [smem:[#allocation2 + $0x80]]
    %s83 = sld [smem:[#allocation2 + $0x1d]]
    %s84 = sld [smem:[#allocation2 + $0x41]]
    %s85 = sld [smem:[#allocation2 + $0x65]]
    %s86 = sld [smem:[#allocation2 + $0x89]]
    %s87 = sld [smem:[#allocation2 + $0x3]]
    %s88 = sld [smem:[#allocation2 + $0x27]]
    %s89 = sld [smem:[#allocation2 + $0x4b]]
    %s90 = sld [smem:[#allocation2 + $0x6f]]
    %s91 = sld [smem:[#allocation2 + $0xc]]
    %s92 = sld [smem:[#allocation2 + $0x30]]
    %s93 = sld [smem:[#allocation2 + $0x54]]
    %s94 = sld [smem:[#allocation2 + $0x78]]
    %s95 = sld [smem:[#allocation2 + $0x15]]
    %s96 = sld [smem:[#allocation2 + $0x39]]
    %s97 = sld [smem:[#allocation2 + $0x5d]]
    %s98 = sld [smem:[#allocation2 + $0x81]]
    %s99 = sld [smem:[#allocation2 + $0x1e]]
    %s100 = sld [smem:[#allocation2 + $0x42]]
    %s101 = sld [smem:[#allocation2 + $0x66]]
    %s102 = sld [smem:[#allocation2 + $0x8a]]
    %s103 = sld [smem:[#allocation2 + $0x4]]
    %s104 = sld [smem:[#allocation2 + $0x28]]
    %s105 = sld [smem:[#allocation2 + $0x4c]]
    %s106 = sld [smem:[#allocation2 + $0x70]]
    %s107 = sld [smem:[#allocation2 + $0xd]]
    %s108 = sld [smem:[#allocation2 + $0x31]]
    %s109 = sld [smem:[#allocation2 + $0x55]]
    %s110 = sld [smem:[#allocation2 + $0x79]]
    %s111 = sld [smem:[#allocation2 + $0x16]]
    %s112 = sld [smem:[#allocation2 + $0x3a]]
    %s113 = sld [smem:[#allocation2 + $0x5e]]
    %s114 = sld [smem:[#allocation2 + $0x82]]
    %s115 = sld [smem:[#allocation2 + $0x1f]]
    %s116 = sld [smem:[#allocation2 + $0x43]]
    %s117 = sld [smem:[#allocation2 + $0x67]]
    %s118 = sld [smem:[#allocation2 + $0x8b]]
    %s119 = sld [smem:[#allocation2 + $0x5]]
    %s120 = sld [smem:[#allocation2 + $0x29]]
    %s121 = sld [smem:[#allocation2 + $0x4d]]
    %s122 = sld [smem:[#allocation2 + $0x71]]
    %s123 = sld [smem:[#allocation2 + $0xe]]
    %s124 = sld [smem:[#allocation2 + $0x32]]
    %s125 = sld [smem:[#allocation2 + $0x56]]
    %s126 = sld [smem:[#allocation2 + $0x7a]]
    %s127 = sld [smem:[#allocation2 + $0x17]]
    %s128 = sld [smem:[#allocation2 + $0x3b]]
    %s129 = sld [smem:[#allocation2 + $0x5f]]
    %s130 = sld [smem:[#allocation2 + $0x83]]
    %s131 = sld [smem:[#allocation2 + $0x20]]
    %s132 = sld [smem:[#allocation2 + $0x44]]
    %s133 = sld [smem:[#allocation2 + $0x68]]
    %s134 = sld [smem:[#allocation2 + $0x8c]]
    %s135 = sld [smem:[#allocation2 + $0x6]]
    %s136 = sld [smem:[#allocation2 + $0x2a]]
    %s137 = sld [smem:[#allocation2 + $0x4e]]
    %s138 = sld [smem:[#allocation2 + $0x72]]
    %s139 = sld [smem:[#allocation2 + $0xf]]
    %s140 = sld [smem:[#allocation2 + $0x33]]
    %s141 = sld [smem:[#allocation2 + $0x57]]
    %s142 = sld [smem:[#allocation2 + $0x7b]]
    %s143 = sld [smem:[#allocation2 + $0x18]]
    %s144 = sld [smem:[#allocation2 + $0x3c]]
    %s145 = sld [smem:[#allocation2 + $0x60]]
    %s146 = sld [smem:[#allocation2 + $0x84]]
    %s147 = sld [smem:[#allocation2 + $0x21]]
    %s148 = sld [smem:[#allocation2 + $0x45]]
    %s149 = sld [smem:[#allocation2 + $0x69]]
    %s150 = sld [smem:[#allocation2 + $0x8d]]
    %s151 = sld [smem:[#allocation2 + $0x7]]
    %s152 = sld [smem:[#allocation2 + $0x2b]]
    %s153 = sld [smem:[#allocation2 + $0x4f]]
    %s154 = sld [smem:[#allocation2 + $0x73]]
    %s155 = sld [smem:[#allocation2 + $0x10]]
    %s156 = sld [smem:[#allocation2 + $0x34]]
    %s157 = sld [smem:[#allocation2 + $0x58]]
    %s158 = sld [smem:[#allocation2 + $0x7c]]
    %s159 = sld [smem:[#allocation2 + $0x19]]
    %s160 = sld [smem:[#allocation2 + $0x3d]]
    %s161 = sld [smem:[#allocation2 + $0x61]]
    %s162 = sld [smem:[#allocation2 + $0x85]]
    %s163 = sld [smem:[#allocation2 + $0x22]]
    %s164 = sld [smem:[#allocation2 + $0x46]]
    %s165 = sld [smem:[#allocation2 + $0x6a]]
    %s166 = sld [smem:[#allocation2 + $0x8e]]
    %s167 = sld [smem:[#allocation2 + $0x8]]
    %s168 = sld [smem:[#allocation2 + $0x2c]]
    %s169 = sld [smem:[#allocation2 + $0x50]]
    %s170 = sld [smem:[#allocation2 + $0x74]]
    %s171 = sld [smem:[#allocation2 + $0x11]]
    %s172 = sld [smem:[#allocation2 + $0x35]]
    %s173 = sld [smem:[#allocation2 + $0x59]]
    %s174 = sld [smem:[#allocation2 + $0x7d]]
    %s175 = sld [smem:[#allocation2 + $0x1a]]
    %s176 = sld [smem:[#allocation2 + $0x3e]]
    %s177 = sld [smem:[#allocation2 + $0x62]]
    %s178 = sld [smem:[#allocation2 + $0x86]]
    %s179 = sld [smem:[#allocation2 + $0x23]]
    %s180 = sld [smem:[#allocation2 + $0x47]]
    %s181 = sld [smem:[#allocation2 + $0x6b]]
    %s182 = sld [smem:[#allocation2 + $0x8f]]
    %s183 = sld [smem:[#allocation4]]
    %v184 = vstv %s183
    %s185 = sld [smem:[#allocation4 + $0x1]]
    %v186 = vstv %s185
    %s187 = sld [smem:[#allocation4 + $0x2]]
    %v188 = vstv %s187
    %s189 = sld [smem:[#allocation4 + $0x3]]
    %v190 = vstv %s189
    %v191 = vlaneseq
    %v192 = vand.u32 %v191, 127
    %v193 = vadd.s32 %v192, 128
    %v194 = vand.u32 %v192, 15
    %v195 = vand.u32 %v193, 15
    %vm196 = vcmp.ge.s32.totalorder %v192, 16
    %vm197 = vcmp.ge.s32.totalorder %v193, 16
    %vm198 = vcmp.ge.s32.totalorder %v194, 1
    %vm199 = vcmp.ge.s32.totalorder %v195, 1
    %vm200 = vmand %vm196, %vm198
    %vm201 = vmand %vm197, %vm199
    %v202 = vsel %vm200, 1, 0
    %v203 = vsel %vm201, 1, 0
    %v204 = vcvt.s32.f32 %v202
    %v205 = vcvt.s32.f32 %v203
    %v206 = vsel %vm196, 1, 0
    %v207 = vsel %vm197, 1, 0
    %v208 = vcvt.s32.f32 %v206
    %v209 = vcvt.s32.f32 %v207
    %vm210 = vcmp.lt.s32.totalorder %v194, 15
    %vm211 = vcmp.lt.s32.totalorder %v195, 15
    %vm212 = vmand %vm196, %vm210
    %vm213 = vmand %vm197, %vm211
    %v214 = vsel %vm212, 1, 0
    %v215 = vsel %vm213, 1, 0
    %v216 = vcvt.s32.f32 %v214
    %v217 = vcvt.s32.f32 %v215
    %v218 = vsel %vm198, 1, 0
    %v219 = vsel %vm199, 1, 0
    %v220 = vcvt.s32.f32 %v218
    %v221 = vcvt.s32.f32 %v219
    %v222 = vsel %vm210, 1, 0
    %v223 = vsel %vm211, 1, 0
    %v224 = vcvt.s32.f32 %v222
    %v225 = vcvt.s32.f32 %v223
    %vm226 = vcmp.lt.s32.totalorder %v192, 240
    %vm227 = vcmp.lt.s32.totalorder %v193, 240
    %vm228 = vmand %vm226, %vm198
    %vm229 = vmand %vm227, %vm199
    %v230 = vsel %vm228, 1, 0
    %v231 = vsel %vm229, 1, 0
    %v232 = vcvt.s32.f32 %v230
    %v233 = vcvt.s32.f32 %v231
    %v234 = vsel %vm226, 1, 0
    %v235 = vsel %vm227, 1, 0
    %v236 = vcvt.s32.f32 %v234
    %v237 = vcvt.s32.f32 %v235
    %vm238 = vmand %vm226, %vm210
    %vm239 = vmand %vm227, %vm211
    %v240 = vsel %vm238, 1, 0
    %v241 = vsel %vm239, 1, 0
    %v242 = vcvt.s32.f32 %v240
    %v243 = vcvt.s32.f32 %v241
    %v244 = vld [vmem:[%s0] ss:$4 sm:$0x3]
    %s245 = scalar_lea.vmem %s0, 8
    %v246 = vld [vmem:[%s245] ss:$4 sm:$0x3]
    %s247 = scalar_lea.vmem %s0, 1
    %v248 = vld [vmem:[%s247] ss:$4 sm:$0x3]
    %s249 = scalar_lea.vmem %s0, 9
    %v250 = vld [vmem:[%s249] ss:$4 sm:$0x3]
    %s251 = scalar_lea.vmem %s0, 2
    %v252 = vld [vmem:[%s251] ss:$4 sm:$0x3]
    %s253 = scalar_lea.vmem %s0, 10
    %v254 = vld [vmem:[%s253] ss:$4 sm:$0x3]
    %s255 = scalar_lea.vmem %s0, 3
    %v256 = vld [vmem:[%s255] ss:$4 sm:$0x3]
    %s257 = scalar_lea.vmem %s0, 11
    %v258 = vld [vmem:[%s257] ss:$4 sm:$0x3]
    %v261 = vcombine.low %v244, %v246
    %v263 = vunpack.c.l.s4 1966171168
    %v264 = vunpack.c.0.s8 %v263
    %v265 = vlaneseq
    %v266 = vshrl.u32 %v265, 7
    %v267 = vsub.s32 %v264, %v266
    %v268 = vrot.slane %v261, %v267
    %v269 = vcombine.high %v268, %v268
    %v271 = vunpack.c.l.s4 1966171168
    %v272 = vunpack.c.0.s8 %v271
    %v273 = vlaneseq
    %v274 = vshrl.u32 %v273, 7
    %v275 = vsub.s32 %v272, %v274
    %v276 = vrot.slane %v268, %v275
    %v278 = vunpack.c.l.s4 1966171168
    %v279 = vunpack.c.0.s8 %v278
    %v280 = vlaneseq
    %v281 = vshrl.u32 %v280, 7
    %v282 = vsub.s32 %v279, %v281
    %v283 = vrot.slane %v269, %v282
    %286 = vrot.lane.b32.xlu0 %v276, 17
    %v287 = vpop.permute.xlu0 %286
    %288 = vrot.lane.b32.xlu0 %v283, 17
    %v289 = vpop.permute.xlu0 %288
    %vm290 = vcmp.lt.s32.totalorder %v192, 17
    %v291 = vsel %vm290, %v287, %v289
    %v292 = vsel %vm290, %v289, %v287
    %v293 = vmul.f32 %v292, %v204
    %v294 = vmul.f32 %v291, %v205
    %v297 = vcombine.low %v248, %v250
    %v299 = vunpack.c.l.s4 1966171168
    %v300 = vunpack.c.0.s8 %v299
    %v301 = vlaneseq
    %v302 = vshrl.u32 %v301, 7
    %v303 = vsub.s32 %v300, %v302
    %v304 = vrot.slane %v297, %v303
    %v305 = vcombine.high %v304, %v304
    %v307 = vunpack.c.l.s4 1966171168
    %v308 = vunpack.c.0.s8 %v307
    %v309 = vlaneseq
    %v310 = vshrl.u32 %v309, 7
    %v311 = vsub.s32 %v308, %v310
    %v312 = vrot.slane %v304, %v311
    %v314 = vunpack.c.l.s4 1966171168
    %v315 = vunpack.c.0.s8 %v314
    %v316 = vlaneseq
    %v317 = vshrl.u32 %v316, 7
    %v318 = vsub.s32 %v315, %v317
    %v319 = vrot.slane %v305, %v318
    %322 = vrot.lane.b32.xlu0 %v312, 17
    %v323 = vpop.permute.xlu0 %322
    %324 = vrot.lane.b32.xlu0 %v319, 17
    %v325 = vpop.permute.xlu0 %324
    %v326 = vsel %vm290, %v323, %v325
    %v327 = vsel %vm290, %v325, %v323
    %v328 = vmul.f32 %v327, %v204
    %v329 = vmul.f32 %v326, %v205
    %v332 = vcombine.low %v252, %v254
    %v334 = vunpack.c.l.s4 1966171168
    %v335 = vunpack.c.0.s8 %v334
    %v336 = vlaneseq
    %v337 = vshrl.u32 %v336, 7
    %v338 = vsub.s32 %v335, %v337
    %v339 = vrot.slane %v332, %v338
    %v340 = vcombine.high %v339, %v339
    %v342 = vunpack.c.l.s4 1966171168
    %v343 = vunpack.c.0.s8 %v342
    %v344 = vlaneseq
    %v345 = vshrl.u32 %v344, 7
    %v346 = vsub.s32 %v343, %v345
    %v347 = vrot.slane %v339, %v346
    %v349 = vunpack.c.l.s4 1966171168
    %v350 = vunpack.c.0.s8 %v349
    %v351 = vlaneseq
    %v352 = vshrl.u32 %v351, 7
    %v353 = vsub.s32 %v350, %v352
    %v354 = vrot.slane %v340, %v353
    %357 = vrot.lane.b32.xlu0 %v347, 17
    %v358 = vpop.permute.xlu0 %357
    %359 = vrot.lane.b32.xlu0 %v354, 17
    %v360 = vpop.permute.xlu0 %359
    %v361 = vsel %vm290, %v358, %v360
    %v362 = vsel %vm290, %v360, %v358
    %v363 = vmul.f32 %v362, %v204
    %v364 = vmul.f32 %v361, %v205
    %v367 = vcombine.low %v256, %v258
    %v369 = vunpack.c.l.s4 1966171168
    %v370 = vunpack.c.0.s8 %v369
    %v371 = vlaneseq
    %v372 = vshrl.u32 %v371, 7
    %v373 = vsub.s32 %v370, %v372
    %v374 = vrot.slane %v367, %v373
    %v375 = vcombine.high %v374, %v374
    %v377 = vunpack.c.l.s4 1966171168
    %v378 = vunpack.c.0.s8 %v377
    %v379 = vlaneseq
    %v380 = vshrl.u32 %v379, 7
    %v381 = vsub.s32 %v378, %v380
    %v382 = vrot.slane %v374, %v381
    %v384 = vunpack.c.l.s4 1966171168
    %v385 = vunpack.c.0.s8 %v384
    %v386 = vlaneseq
    %v387 = vshrl.u32 %v386, 7
    %v388 = vsub.s32 %v385, %v387
    %v389 = vrot.slane %v375, %v388
    %392 = vrot.lane.b32.xlu0 %v382, 17
    %v393 = vpop.permute.xlu0 %392
    %394 = vrot.lane.b32.xlu0 %v389, 17
    %v395 = vpop.permute.xlu0 %394
    %v396 = vsel %vm290, %v393, %v395
    %v397 = vsel %vm290, %v395, %v393
    %v398 = vmul.f32 %v397, %v204
    %v399 = vmul.f32 %v396, %v205
    %v400 = vstv %s39
    %v401 = vmul.f32 %v400, %v293
    %v402 = vmul.f32 %v400, %v294
    %v403 = vadd.f32 %v184, %v401
    %v404 = vadd.f32 %v184, %v402
    %v405 = vstv %s40
    %v406 = vmul.f32 %v405, %v293
    %v407 = vmul.f32 %v405, %v294
    %v408 = vadd.f32 %v186, %v406
    %v409 = vadd.f32 %v186, %v407
    %v410 = vstv %s41
    %v411 = vmul.f32 %v410, %v293
    %v412 = vmul.f32 %v410, %v294
    %v413 = vadd.f32 %v188, %v411
    %v414 = vadd.f32 %v188, %v412
    %v415 = vstv %s42
    %v416 = vmul.f32 %v415, %v293
    %v417 = vmul.f32 %v415, %v294
    %v418 = vadd.f32 %v190, %v416
    %v419 = vadd.f32 %v190, %v417
    %v420 = vstv %s43
    %v421 = vmul.f32 %v420, %v328
    %v422 = vmul.f32 %v420, %v329
    %v423 = vadd.f32 %v403, %v421
    %v424 = vadd.f32 %v404, %v422
    %v425 = vstv %s44
    %v426 = vmul.f32 %v425, %v328
    %v427 = vmul.f32 %v425, %v329
    %v428 = vadd.f32 %v408, %v426
    %v429 = vadd.f32 %v409, %v427
    %v430 = vstv %s45
    %v431 = vmul.f32 %v430, %v328
    %v432 = vmul.f32 %v430, %v329
    %v433 = vadd.f32 %v413, %v431
    %v434 = vadd.f32 %v414, %v432
    %v435 = vstv %s46
    %v436 = vmul.f32 %v435, %v328
    %v437 = vmul.f32 %v435, %v329
    %v438 = vadd.f32 %v418, %v436
    %v439 = vadd.f32 %v419, %v437
    %v440 = vstv %s47
    %v441 = vmul.f32 %v440, %v363
    %v442 = vmul.f32 %v440, %v364
    %v443 = vadd.f32 %v423, %v441
    %v444 = vadd.f32 %v424, %v442
    %v445 = vstv %s48
    %v446 = vmul.f32 %v445, %v363
    %v447 = vmul.f32 %v445, %v364
    %v448 = vadd.f32 %v428, %v446
    %v449 = vadd.f32 %v429, %v447
    %v450 = vstv %s49
    %v451 = vmul.f32 %v450, %v363
    %v452 = vmul.f32 %v450, %v364
    %v453 = vadd.f32 %v433, %v451
    %v454 = vadd.f32 %v434, %v452
    %v455 = vstv %s50
    %v456 = vmul.f32 %v455, %v363
    %v457 = vmul.f32 %v455, %v364
    %v458 = vadd.f32 %v438, %v456
    %v459 = vadd.f32 %v439, %v457
    %v460 = vstv %s51
    %v461 = vmul.f32 %v460, %v398
    %v462 = vmul.f32 %v460, %v399
    %v463 = vadd.f32 %v443, %v461
    %v464 = vadd.f32 %v444, %v462
    %v465 = vstv %s52
    %v466 = vmul.f32 %v465, %v398
    %v467 = vmul.f32 %v465, %v399
    %v468 = vadd.f32 %v448, %v466
    %v469 = vadd.f32 %v449, %v467
    %v470 = vstv %s53
    %v471 = vmul.f32 %v470, %v398
    %v472 = vmul.f32 %v470, %v399
    %v473 = vadd.f32 %v453, %v471
    %v474 = vadd.f32 %v454, %v472
    %v475 = vstv %s54
    %v476 = vmul.f32 %v475, %v398
    %v477 = vmul.f32 %v475, %v399
    %v478 = vadd.f32 %v458, %v476
    %v479 = vadd.f32 %v459, %v477
    %480 = vrot.lane.b32.xlu0 %v276, 16
    %v481 = vpop.permute.xlu0 %480
    %482 = vrot.lane.b32.xlu0 %v283, 16
    %v483 = vpop.permute.xlu0 %482
    %vm484 = vcmp.lt.s32.totalorder %v192, 16
    %v485 = vsel %vm484, %v481, %v483
    %v486 = vsel %vm484, %v483, %v481
    %v487 = vmul.f32 %v486, %v208
    %v488 = vmul.f32 %v485, %v209
    %489 = vrot.lane.b32.xlu0 %v312, 16
    %v490 = vpop.permute.xlu0 %489
    %491 = vrot.lane.b32.xlu0 %v319, 16
    %v492 = vpop.permute.xlu0 %491
    %v493 = vsel %vm484, %v490, %v492
    %v494 = vsel %vm484, %v492, %v490
    %v495 = vmul.f32 %v494, %v208
    %v496 = vmul.f32 %v493, %v209
    %497 = vrot.lane.b32.xlu0 %v347, 16
    %v498 = vpop.permute.xlu0 %497
    %499 = vrot.lane.b32.xlu0 %v354, 16
    %v500 = vpop.permute.xlu0 %499
    %v501 = vsel %vm484, %v498, %v500
    %v502 = vsel %vm484, %v500, %v498
    %v503 = vmul.f32 %v502, %v208
    %v504 = vmul.f32 %v501, %v209
    %505 = vrot.lane.b32.xlu0 %v382, 16
    %v506 = vpop.permute.xlu0 %505
    %507 = vrot.lane.b32.xlu0 %v389, 16
    %v508 = vpop.permute.xlu0 %507
    %v509 = vsel %vm484, %v506, %v508
    %v510 = vsel %vm484, %v508, %v506
    %v511 = vmul.f32 %v510, %v208
    %v512 = vmul.f32 %v509, %v209
    %v513 = vstv %s55
    %v514 = vmul.f32 %v513, %v487
    %v515 = vmul.f32 %v513, %v488
    %v516 = vadd.f32 %v463, %v514
    %v517 = vadd.f32 %v464, %v515
    %v518 = vstv %s56
    %v519 = vmul.f32 %v518, %v487
    %v520 = vmul.f32 %v518, %v488
    %v521 = vadd.f32 %v468, %v519
    %v522 = vadd.f32 %v469, %v520
    %v523 = vstv %s57
    %v524 = vmul.f32 %v523, %v487
    %v525 = vmul.f32 %v523, %v488
    %v526 = vadd.f32 %v473, %v524
    %v527 = vadd.f32 %v474, %v525
    %v528 = vstv %s58
    %v529 = vmul.f32 %v528, %v487
    %v530 = vmul.f32 %v528, %v488
    %v531 = vadd.f32 %v478, %v529
    %v532 = vadd.f32 %v479, %v530
    %v533 = vstv %s59
    %v534 = vmul.f32 %v533, %v495
    %v535 = vmul.f32 %v533, %v496
    %v536 = vadd.f32 %v516, %v534
    %v537 = vadd.f32 %v517, %v535
    %v538 = vstv %s60
    %v539 = vmul.f32 %v538, %v495
    %v540 = vmul.f32 %v538, %v496
    %v541 = vadd.f32 %v521, %v539
    %v542 = vadd.f32 %v522, %v540
    %v543 = vstv %s61
    %v544 = vmul.f32 %v543, %v495
    %v545 = vmul.f32 %v543, %v496
    %v546 = vadd.f32 %v526, %v544
    %v547 = vadd.f32 %v527, %v545
    %v548 = vstv %s62
    %v549 = vmul.f32 %v548, %v495
    %v550 = vmul.f32 %v548, %v496
    %v551 = vadd.f32 %v531, %v549
    %v552 = vadd.f32 %v532, %v550
    %v553 = vstv %s63
    %v554 = vmul.f32 %v553, %v503
    %v555 = vmul.f32 %v553, %v504
    %v556 = vadd.f32 %v536, %v554
    %v557 = vadd.f32 %v537, %v555
    %v558 = vstv %s64
    %v559 = vmul.f32 %v558, %v503
    %v560 = vmul.f32 %v558, %v504
    %v561 = vadd.f32 %v541, %v559
    %v562 = vadd.f32 %v542, %v560
    %v563 = vstv %s65
    %v564 = vmul.f32 %v563, %v503
    %v565 = vmul.f32 %v563, %v504
    %v566 = vadd.f32 %v546, %v564
    %v567 = vadd.f32 %v547, %v565
    %v568 = vstv %s66
    %v569 = vmul.f32 %v568, %v503
    %v570 = vmul.f32 %v568, %v504
    %v571 = vadd.f32 %v551, %v569
    %v572 = vadd.f32 %v552, %v570
    %v573 = vstv %s67
    %v574 = vmul.f32 %v573, %v511
    %v575 = vmul.f32 %v573, %v512
    %v576 = vadd.f32 %v556, %v574
    %v577 = vadd.f32 %v557, %v575
    %v578 = vstv %s68
    %v579 = vmul.f32 %v578, %v511
    %v580 = vmul.f32 %v578, %v512
    %v581 = vadd.f32 %v561, %v579
    %v582 = vadd.f32 %v562, %v580
    %v583 = vstv %s69
    %v584 = vmul.f32 %v583, %v511
    %v585 = vmul.f32 %v583, %v512
    %v586 = vadd.f32 %v566, %v584
    %v587 = vadd.f32 %v567, %v585
    %v588 = vstv %s70
    %v589 = vmul.f32 %v588, %v511
    %v590 = vmul.f32 %v588, %v512
    %v591 = vadd.f32 %v571, %v589
    %v592 = vadd.f32 %v572, %v590
    %593 = vrot.lane.b32.xlu0 %v276, 15
    %v594 = vpop.permute.xlu0 %593
    %595 = vrot.lane.b32.xlu0 %v283, 15
    %v596 = vpop.permute.xlu0 %595
    %vm597 = vcmp.lt.s32.totalorder %v192, 15
    %v598 = vsel %vm597, %v594, %v596
    %v599 = vsel %vm597, %v596, %v594
    %v600 = vmul.f32 %v599, %v216
    %v601 = vmul.f32 %v598, %v217
    %602 = vrot.lane.b32.xlu0 %v312, 15
    %v603 = vpop.permute.xlu0 %602
    %604 = vrot.lane.b32.xlu0 %v319, 15
    %v605 = vpop.permute.xlu0 %604
    %v606 = vsel %vm597, %v603, %v605
    %v607 = vsel %vm597, %v605, %v603
    %v608 = vmul.f32 %v607, %v216
    %v609 = vmul.f32 %v606, %v217
    %610 = vrot.lane.b32.xlu0 %v347, 15
    %v611 = vpop.permute.xlu0 %610
    %612 = vrot.lane.b32.xlu0 %v354, 15
    %v613 = vpop.permute.xlu0 %612
    %v614 = vsel %vm597, %v611, %v613
    %v615 = vsel %vm597, %v613, %v611
    %v616 = vmul.f32 %v615, %v216
    %v617 = vmul.f32 %v614, %v217
    %618 = vrot.lane.b32.xlu0 %v382, 15
    %v619 = vpop.permute.xlu0 %618
    %620 = vrot.lane.b32.xlu0 %v389, 15
    %v621 = vpop.permute.xlu0 %620
    %v622 = vsel %vm597, %v619, %v621
    %v623 = vsel %vm597, %v621, %v619
    %v624 = vmul.f32 %v623, %v216
    %v625 = vmul.f32 %v622, %v217
    %v626 = vstv %s71
    %v627 = vmul.f32 %v626, %v600
    %v628 = vmul.f32 %v626, %v601
    %v629 = vadd.f32 %v576, %v627
    %v630 = vadd.f32 %v577, %v628
    %v631 = vstv %s72
    %v632 = vmul.f32 %v631, %v600
    %v633 = vmul.f32 %v631, %v601
    %v634 = vadd.f32 %v581, %v632
    %v635 = vadd.f32 %v582, %v633
    %v636 = vstv %s73
    %v637 = vmul.f32 %v636, %v600
    %v638 = vmul.f32 %v636, %v601
    %v639 = vadd.f32 %v586, %v637
    %v640 = vadd.f32 %v587, %v638
    %v641 = vstv %s74
    %v642 = vmul.f32 %v641, %v600
    %v643 = vmul.f32 %v641, %v601
    %v644 = vadd.f32 %v591, %v642
    %v645 = vadd.f32 %v592, %v643
    %v646 = vstv %s75
    %v647 = vmul.f32 %v646, %v608
    %v648 = vmul.f32 %v646, %v609
    %v649 = vadd.f32 %v629, %v647
    %v650 = vadd.f32 %v630, %v648
    %v651 = vstv %s76
    %v652 = vmul.f32 %v651, %v608
    %v653 = vmul.f32 %v651, %v609
    %v654 = vadd.f32 %v634, %v652
    %v655 = vadd.f32 %v635, %v653
    %v656 = vstv %s77
    %v657 = vmul.f32 %v656, %v608
    %v658 = vmul.f32 %v656, %v609
    %v659 = vadd.f32 %v639, %v657
    %v660 = vadd.f32 %v640, %v658
    %v661 = vstv %s78
    %v662 = vmul.f32 %v661, %v608
    %v663 = vmul.f32 %v661, %v609
    %v664 = vadd.f32 %v644, %v662
    %v665 = vadd.f32 %v645, %v663
    %v666 = vstv %s79
    %v667 = vmul.f32 %v666, %v616
    %v668 = vmul.f32 %v666, %v617
    %v669 = vadd.f32 %v649, %v667
    %v670 = vadd.f32 %v650, %v668
    %v671 = vstv %s80
    %v672 = vmul.f32 %v671, %v616
    %v673 = vmul.f32 %v671, %v617
    %v674 = vadd.f32 %v654, %v672
    %v675 = vadd.f32 %v655, %v673
    %v676 = vstv %s81
    %v677 = vmul.f32 %v676, %v616
    %v678 = vmul.f32 %v676, %v617
    %v679 = vadd.f32 %v659, %v677
    %v680 = vadd.f32 %v660, %v678
    %v681 = vstv %s82
    %v682 = vmul.f32 %v681, %v616
    %v683 = vmul.f32 %v681, %v617
    %v684 = vadd.f32 %v664, %v682
    %v685 = vadd.f32 %v665, %v683
    %v686 = vstv %s83
    %v687 = vmul.f32 %v686, %v624
    %v688 = vmul.f32 %v686, %v625
    %v689 = vadd.f32 %v669, %v687
    %v690 = vadd.f32 %v670, %v688
    %v691 = vstv %s84
    %v692 = vmul.f32 %v691, %v624
    %v693 = vmul.f32 %v691, %v625
    %v694 = vadd.f32 %v674, %v692
    %v695 = vadd.f32 %v675, %v693
    %v696 = vstv %s85
    %v697 = vmul.f32 %v696, %v624
    %v698 = vmul.f32 %v696, %v625
    %v699 = vadd.f32 %v679, %v697
    %v700 = vadd.f32 %v680, %v698
    %v701 = vstv %s86
    %v702 = vmul.f32 %v701, %v624
    %v703 = vmul.f32 %v701, %v625
    %v704 = vadd.f32 %v684, %v702
    %v705 = vadd.f32 %v685, %v703
    %706 = vrot.lane.b32.xlu0 %v276, 1
    %v707 = vpop.permute.xlu0 %706
    %708 = vrot.lane.b32.xlu0 %v283, 1
    %v709 = vpop.permute.xlu0 %708
    %vm710 = vcmp.lt.s32.totalorder %v192, 1
    %v711 = vsel %vm710, %v707, %v709
    %v712 = vsel %vm710, %v709, %v707
    %v713 = vmul.f32 %v712, %v220
    %v714 = vmul.f32 %v711, %v221
    %715 = vrot.lane.b32.xlu0 %v312, 1
    %v716 = vpop.permute.xlu0 %715
    %717 = vrot.lane.b32.xlu0 %v319, 1
    %v718 = vpop.permute.xlu0 %717
    %v719 = vsel %vm710, %v716, %v718
    %v720 = vsel %vm710, %v718, %v716
    %v721 = vmul.f32 %v720, %v220
    %v722 = vmul.f32 %v719, %v221
    %723 = vrot.lane.b32.xlu0 %v347, 1
    %v724 = vpop.permute.xlu0 %723
    %725 = vrot.lane.b32.xlu0 %v354, 1
    %v726 = vpop.permute.xlu0 %725
    %v727 = vsel %vm710, %v724, %v726
    %v728 = vsel %vm710, %v726, %v724
    %v729 = vmul.f32 %v728, %v220
    %v730 = vmul.f32 %v727, %v221
    %731 = vrot.lane.b32.xlu0 %v382, 1
    %v732 = vpop.permute.xlu0 %731
    %733 = vrot.lane.b32.xlu0 %v389, 1
    %v734 = vpop.permute.xlu0 %733
    %v735 = vsel %vm710, %v732, %v734
    %v736 = vsel %vm710, %v734, %v732
    %v737 = vmul.f32 %v736, %v220
    %v738 = vmul.f32 %v735, %v221
    %v739 = vstv %s87
    %v740 = vmul.f32 %v739, %v713
    %v741 = vmul.f32 %v739, %v714
    %v742 = vadd.f32 %v689, %v740
    %v743 = vadd.f32 %v690, %v741
    %v744 = vstv %s88
    %v745 = vmul.f32 %v744, %v713
    %v746 = vmul.f32 %v744, %v714
    %v747 = vadd.f32 %v694, %v745
    %v748 = vadd.f32 %v695, %v746
    %v749 = vstv %s89
    %v750 = vmul.f32 %v749, %v713
    %v751 = vmul.f32 %v749, %v714
    %v752 = vadd.f32 %v699, %v750
    %v753 = vadd.f32 %v700, %v751
    %v754 = vstv %s90
    %v755 = vmul.f32 %v754, %v713
    %v756 = vmul.f32 %v754, %v714
    %v757 = vadd.f32 %v704, %v755
    %v758 = vadd.f32 %v705, %v756
    %v759 = vstv %s91
    %v760 = vmul.f32 %v759, %v721
    %v761 = vmul.f32 %v759, %v722
    %v762 = vadd.f32 %v742, %v760
    %v763 = vadd.f32 %v743, %v761
    %v764 = vstv %s92
    %v765 = vmul.f32 %v764, %v721
    %v766 = vmul.f32 %v764, %v722
    %v767 = vadd.f32 %v747, %v765
    %v768 = vadd.f32 %v748, %v766
    %v769 = vstv %s93
    %v770 = vmul.f32 %v769, %v721
    %v771 = vmul.f32 %v769, %v722
    %v772 = vadd.f32 %v752, %v770
    %v773 = vadd.f32 %v753, %v771
    %v774 = vstv %s94
    %v775 = vmul.f32 %v774, %v721
    %v776 = vmul.f32 %v774, %v722
    %v777 = vadd.f32 %v757, %v775
    %v778 = vadd.f32 %v758, %v776
    %v779 = vstv %s95
    %v780 = vmul.f32 %v779, %v729
    %v781 = vmul.f32 %v779, %v730
    %v782 = vadd.f32 %v762, %v780
    %v783 = vadd.f32 %v763, %v781
    %v784 = vstv %s96
    %v785 = vmul.f32 %v784, %v729
    %v786 = vmul.f32 %v784, %v730
    %v787 = vadd.f32 %v767, %v785
    %v788 = vadd.f32 %v768, %v786
    %v789 = vstv %s97
    %v790 = vmul.f32 %v789, %v729
    %v791 = vmul.f32 %v789, %v730
    %v792 = vadd.f32 %v772, %v790
    %v793 = vadd.f32 %v773, %v791
    %v794 = vstv %s98
    %v795 = vmul.f32 %v794, %v729
    %v796 = vmul.f32 %v794, %v730
    %v797 = vadd.f32 %v777, %v795
    %v798 = vadd.f32 %v778, %v796
    %v799 = vstv %s99
    %v800 = vmul.f32 %v799, %v737
    %v801 = vmul.f32 %v799, %v738
    %v802 = vadd.f32 %v782, %v800
    %v803 = vadd.f32 %v783, %v801
    %v804 = vstv %s100
    %v805 = vmul.f32 %v804, %v737
    %v806 = vmul.f32 %v804, %v738
    %v807 = vadd.f32 %v787, %v805
    %v808 = vadd.f32 %v788, %v806
    %v809 = vstv %s101
    %v810 = vmul.f32 %v809, %v737
    %v811 = vmul.f32 %v809, %v738
    %v812 = vadd.f32 %v792, %v810
    %v813 = vadd.f32 %v793, %v811
    %v814 = vstv %s102
    %v815 = vmul.f32 %v814, %v737
    %v816 = vmul.f32 %v814, %v738
    %v817 = vadd.f32 %v797, %v815
    %v818 = vadd.f32 %v798, %v816
    %v819 = vstv %s103
    %v820 = vmul.f32 %v819, %v244
    %v821 = vmul.f32 %v819, %v246
    %v824 = vcombine.low %v820, %v821
    %v826 = vunpack.c.l.s4 1966171168
    %v827 = vunpack.c.0.s8 %v826
    %v828 = vlaneseq
    %v829 = vshrl.u32 %v828, 7
    %v830 = vsub.s32 %v827, %v829
    %v831 = vrot.slane %v824, %v830
    %v832 = vcombine.high %v831, %v831
    %v834 = vunpack.c.l.s4 1966171168
    %v835 = vunpack.c.0.s8 %v834
    %v836 = vlaneseq
    %v837 = vshrl.u32 %v836, 7
    %v838 = vsub.s32 %v835, %v837
    %v839 = vrot.slane %v831, %v838
    %v841 = vunpack.c.l.s4 1966171168
    %v842 = vunpack.c.0.s8 %v841
    %v843 = vlaneseq
    %v844 = vshrl.u32 %v843, 7
    %v845 = vsub.s32 %v842, %v844
    %v846 = vrot.slane %v832, %v845
    %v849 = vadd.f32 %v802, %v839
    %v850 = vadd.f32 %v803, %v846
    %v851 = vstv %s104
    %v852 = vmul.f32 %v851, %v244
    %v853 = vmul.f32 %v851, %v246
    %v856 = vcombine.low %v852, %v853
    %v858 = vunpack.c.l.s4 1966171168
    %v859 = vunpack.c.0.s8 %v858
    %v860 = vlaneseq
    %v861 = vshrl.u32 %v860, 7
    %v862 = vsub.s32 %v859, %v861
    %v863 = vrot.slane %v856, %v862
    %v864 = vcombine.high %v863, %v863
    %v866 = vunpack.c.l.s4 1966171168
    %v867 = vunpack.c.0.s8 %v866
    %v868 = vlaneseq
    %v869 = vshrl.u32 %v868, 7
    %v870 = vsub.s32 %v867, %v869
    %v871 = vrot.slane %v863, %v870
    %v873 = vunpack.c.l.s4 1966171168
    %v874 = vunpack.c.0.s8 %v873
    %v875 = vlaneseq
    %v876 = vshrl.u32 %v875, 7
    %v877 = vsub.s32 %v874, %v876
    %v878 = vrot.slane %v864, %v877
    %v881 = vadd.f32 %v807, %v871
    %v882 = vadd.f32 %v808, %v878
    %v883 = vstv %s105
    %v884 = vmul.f32 %v883, %v244
    %v885 = vmul.f32 %v883, %v246
    %v888 = vcombine.low %v884, %v885
    %v890 = vunpack.c.l.s4 1966171168
    %v891 = vunpack.c.0.s8 %v890
    %v892 = vlaneseq
    %v893 = vshrl.u32 %v892, 7
    %v894 = vsub.s32 %v891, %v893
    %v895 = vrot.slane %v888, %v894
    %v896 = vcombine.high %v895, %v895
    %v898 = vunpack.c.l.s4 1966171168
    %v899 = vunpack.c.0.s8 %v898
    %v900 = vlaneseq
    %v901 = vshrl.u32 %v900, 7
    %v902 = vsub.s32 %v899, %v901
    %v903 = vrot.slane %v895, %v902
    %v905 = vunpack.c.l.s4 1966171168
    %v906 = vunpack.c.0.s8 %v905
    %v907 = vlaneseq
    %v908 = vshrl.u32 %v907, 7
    %v909 = vsub.s32 %v906, %v908
    %v910 = vrot.slane %v896, %v909
    %v913 = vadd.f32 %v812, %v903
    %v914 = vadd.f32 %v813, %v910
    %v915 = vstv %s106
    %v916 = vmul.f32 %v915, %v244
    %v917 = vmul.f32 %v915, %v246
    %v920 = vcombine.low %v916, %v917
    %v922 = vunpack.c.l.s4 1966171168
    %v923 = vunpack.c.0.s8 %v922
    %v924 = vlaneseq
    %v925 = vshrl.u32 %v924, 7
    %v926 = vsub.s32 %v923, %v925
    %v927 = vrot.slane %v920, %v926
    %v928 = vcombine.high %v927, %v927
    %v930 = vunpack.c.l.s4 1966171168
    %v931 = vunpack.c.0.s8 %v930
    %v932 = vlaneseq
    %v933 = vshrl.u32 %v932, 7
    %v934 = vsub.s32 %v931, %v933
    %v935 = vrot.slane %v927, %v934
    %v937 = vunpack.c.l.s4 1966171168
    %v938 = vunpack.c.0.s8 %v937
    %v939 = vlaneseq
    %v940 = vshrl.u32 %v939, 7
    %v941 = vsub.s32 %v938, %v940
    %v942 = vrot.slane %v928, %v941
    %v945 = vadd.f32 %v817, %v935
    %v946 = vadd.f32 %v818, %v942
    %v947 = vstv %s107
    %v948 = vmul.f32 %v947, %v248
    %v949 = vmul.f32 %v947, %v250
    %v952 = vcombine.low %v948, %v949
    %v954 = vunpack.c.l.s4 1966171168
    %v955 = vunpack.c.0.s8 %v954
    %v956 = vlaneseq
    %v957 = vshrl.u32 %v956, 7
    %v958 = vsub.s32 %v955, %v957
    %v959 = vrot.slane %v952, %v958
    %v960 = vcombine.high %v959, %v959
    %v962 = vunpack.c.l.s4 1966171168
    %v963 = vunpack.c.0.s8 %v962
    %v964 = vlaneseq
    %v965 = vshrl.u32 %v964, 7
    %v966 = vsub.s32 %v963, %v965
    %v967 = vrot.slane %v959, %v966
    %v969 = vunpack.c.l.s4 1966171168
    %v970 = vunpack.c.0.s8 %v969
    %v971 = vlaneseq
    %v972 = vshrl.u32 %v971, 7
    %v973 = vsub.s32 %v970, %v972
    %v974 = vrot.slane %v960, %v973
    %v977 = vadd.f32 %v849, %v967
    %v978 = vadd.f32 %v850, %v974
    %v979 = vstv %s108
    %v980 = vmul.f32 %v979, %v248
    %v981 = vmul.f32 %v979, %v250
    %v984 = vcombine.low %v980, %v981
    %v986 = vunpack.c.l.s4 1966171168
    %v987 = vunpack.c.0.s8 %v986
    %v988 = vlaneseq
    %v989 = vshrl.u32 %v988, 7
    %v990 = vsub.s32 %v987, %v989
    %v991 = vrot.slane %v984, %v990
    %v992 = vcombine.high %v991, %v991
    %v994 = vunpack.c.l.s4 1966171168
    %v995 = vunpack.c.0.s8 %v994
    %v996 = vlaneseq
    %v997 = vshrl.u32 %v996, 7
    %v998 = vsub.s32 %v995, %v997
    %v999 = vrot.slane %v991, %v998
    %v1001 = vunpack.c.l.s4 1966171168
    %v1002 = vunpack.c.0.s8 %v1001
    %v1003 = vlaneseq
    %v1004 = vshrl.u32 %v1003, 7
    %v1005 = vsub.s32 %v1002, %v1004
    %v1006 = vrot.slane %v992, %v1005
    %v1009 = vadd.f32 %v881, %v999
    %v1010 = vadd.f32 %v882, %v1006
    %v1011 = vstv %s109
    %v1012 = vmul.f32 %v1011, %v248
    %v1013 = vmul.f32 %v1011, %v250
    %v1016 = vcombine.low %v1012, %v1013
    %v1018 = vunpack.c.l.s4 1966171168
    %v1019 = vunpack.c.0.s8 %v1018
    %v1020 = vlaneseq
    %v1021 = vshrl.u32 %v1020, 7
    %v1022 = vsub.s32 %v1019, %v1021
    %v1023 = vrot.slane %v1016, %v1022
    %v1024 = vcombine.high %v1023, %v1023
    %v1026 = vunpack.c.l.s4 1966171168
    %v1027 = vunpack.c.0.s8 %v1026
    %v1028 = vlaneseq
    %v1029 = vshrl.u32 %v1028, 7
    %v1030 = vsub.s32 %v1027, %v1029
    %v1031 = vrot.slane %v1023, %v1030
    %v1033 = vunpack.c.l.s4 1966171168
    %v1034 = vunpack.c.0.s8 %v1033
    %v1035 = vlaneseq
    %v1036 = vshrl.u32 %v1035, 7
    %v1037 = vsub.s32 %v1034, %v1036
    %v1038 = vrot.slane %v1024, %v1037
    %v1041 = vadd.f32 %v913, %v1031
    %v1042 = vadd.f32 %v914, %v1038
    %v1043 = vstv %s110
    %v1044 = vmul.f32 %v1043, %v248
    %v1045 = vmul.f32 %v1043, %v250
    %v1048 = vcombine.low %v1044, %v1045
    %v1050 = vunpack.c.l.s4 1966171168
    %v1051 = vunpack.c.0.s8 %v1050
    %v1052 = vlaneseq
    %v1053 = vshrl.u32 %v1052, 7
    %v1054 = vsub.s32 %v1051, %v1053
    %v1055 = vrot.slane %v1048, %v1054
    %v1056 = vcombine.high %v1055, %v1055
    %v1058 = vunpack.c.l.s4 1966171168
    %v1059 = vunpack.c.0.s8 %v1058
    %v1060 = vlaneseq
    %v1061 = vshrl.u32 %v1060, 7
    %v1062 = vsub.s32 %v1059, %v1061
    %v1063 = vrot.slane %v1055, %v1062
    %v1065 = vunpack.c.l.s4 1966171168
    %v1066 = vunpack.c.0.s8 %v1065
    %v1067 = vlaneseq
    %v1068 = vshrl.u32 %v1067, 7
    %v1069 = vsub.s32 %v1066, %v1068
    %v1070 = vrot.slane %v1056, %v1069
    %v1073 = vadd.f32 %v945, %v1063
    %v1074 = vadd.f32 %v946, %v1070
    %v1075 = vstv %s111
    %v1076 = vmul.f32 %v1075, %v252
    %v1077 = vmul.f32 %v1075, %v254
    %v1080 = vcombine.low %v1076, %v1077
    %v1082 = vunpack.c.l.s4 1966171168
    %v1083 = vunpack.c.0.s8 %v1082
    %v1084 = vlaneseq
    %v1085 = vshrl.u32 %v1084, 7
    %v1086 = vsub.s32 %v1083, %v1085
    %v1087 = vrot.slane %v1080, %v1086
    %v1088 = vcombine.high %v1087, %v1087
    %v1090 = vunpack.c.l.s4 1966171168
    %v1091 = vunpack.c.0.s8 %v1090
    %v1092 = vlaneseq
    %v1093 = vshrl.u32 %v1092, 7
    %v1094 = vsub.s32 %v1091, %v1093
    %v1095 = vrot.slane %v1087, %v1094
    %v1097 = vunpack.c.l.s4 1966171168
    %v1098 = vunpack.c.0.s8 %v1097
    %v1099 = vlaneseq
    %v1100 = vshrl.u32 %v1099, 7
    %v1101 = vsub.s32 %v1098, %v1100
    %v1102 = vrot.slane %v1088, %v1101
    %v1105 = vadd.f32 %v977, %v1095
    %v1106 = vadd.f32 %v978, %v1102
    %v1107 = vstv %s112
    %v1108 = vmul.f32 %v1107, %v252
    %v1109 = vmul.f32 %v1107, %v254
    %v1112 = vcombine.low %v1108, %v1109
    %v1114 = vunpack.c.l.s4 1966171168
    %v1115 = vunpack.c.0.s8 %v1114
    %v1116 = vlaneseq
    %v1117 = vshrl.u32 %v1116, 7
    %v1118 = vsub.s32 %v1115, %v1117
    %v1119 = vrot.slane %v1112, %v1118
    %v1120 = vcombine.high %v1119, %v1119
    %v1122 = vunpack.c.l.s4 1966171168
    %v1123 = vunpack.c.0.s8 %v1122
    %v1124 = vlaneseq
    %v1125 = vshrl.u32 %v1124, 7
    %v1126 = vsub.s32 %v1123, %v1125
    %v1127 = vrot.slane %v1119, %v1126
    %v1129 = vunpack.c.l.s4 1966171168
    %v1130 = vunpack.c.0.s8 %v1129
    %v1131 = vlaneseq
    %v1132 = vshrl.u32 %v1131, 7
    %v1133 = vsub.s32 %v1130, %v1132
    %v1134 = vrot.slane %v1120, %v1133
    %v1137 = vadd.f32 %v1009, %v1127
    %v1138 = vadd.f32 %v1010, %v1134
    %v1139 = vstv %s113
    %v1140 = vmul.f32 %v1139, %v252
    %v1141 = vmul.f32 %v1139, %v254
    %v1144 = vcombine.low %v1140, %v1141
    %v1146 = vunpack.c.l.s4 1966171168
    %v1147 = vunpack.c.0.s8 %v1146
    %v1148 = vlaneseq
    %v1149 = vshrl.u32 %v1148, 7
    %v1150 = vsub.s32 %v1147, %v1149
    %v1151 = vrot.slane %v1144, %v1150
    %v1152 = vcombine.high %v1151, %v1151
    %v1154 = vunpack.c.l.s4 1966171168
    %v1155 = vunpack.c.0.s8 %v1154
    %v1156 = vlaneseq
    %v1157 = vshrl.u32 %v1156, 7
    %v1158 = vsub.s32 %v1155, %v1157
    %v1159 = vrot.slane %v1151, %v1158
    %v1161 = vunpack.c.l.s4 1966171168
    %v1162 = vunpack.c.0.s8 %v1161
    %v1163 = vlaneseq
    %v1164 = vshrl.u32 %v1163, 7
    %v1165 = vsub.s32 %v1162, %v1164
    %v1166 = vrot.slane %v1152, %v1165
    %v1169 = vadd.f32 %v1041, %v1159
    %v1170 = vadd.f32 %v1042, %v1166
    %v1171 = vstv %s114
    %v1172 = vmul.f32 %v1171, %v252
    %v1173 = vmul.f32 %v1171, %v254
    %v1176 = vcombine.low %v1172, %v1173
    %v1178 = vunpack.c.l.s4 1966171168
    %v1179 = vunpack.c.0.s8 %v1178
    %v1180 = vlaneseq
    %v1181 = vshrl.u32 %v1180, 7
    %v1182 = vsub.s32 %v1179, %v1181
    %v1183 = vrot.slane %v1176, %v1182
    %v1184 = vcombine.high %v1183, %v1183
    %v1186 = vunpack.c.l.s4 1966171168
    %v1187 = vunpack.c.0.s8 %v1186
    %v1188 = vlaneseq
    %v1189 = vshrl.u32 %v1188, 7
    %v1190 = vsub.s32 %v1187, %v1189
    %v1191 = vrot.slane %v1183, %v1190
    %v1193 = vunpack.c.l.s4 1966171168
    %v1194 = vunpack.c.0.s8 %v1193
    %v1195 = vlaneseq
    %v1196 = vshrl.u32 %v1195, 7
    %v1197 = vsub.s32 %v1194, %v1196
    %v1198 = vrot.slane %v1184, %v1197
    %v1201 = vadd.f32 %v1073, %v1191
    %v1202 = vadd.f32 %v1074, %v1198
    %v1203 = vstv %s115
    %v1204 = vmul.f32 %v1203, %v256
    %v1205 = vmul.f32 %v1203, %v258
    %v1208 = vcombine.low %v1204, %v1205
    %v1210 = vunpack.c.l.s4 1966171168
    %v1211 = vunpack.c.0.s8 %v1210
    %v1212 = vlaneseq
    %v1213 = vshrl.u32 %v1212, 7
    %v1214 = vsub.s32 %v1211, %v1213
    %v1215 = vrot.slane %v1208, %v1214
    %v1216 = vcombine.high %v1215, %v1215
    %v1218 = vunpack.c.l.s4 1966171168
    %v1219 = vunpack.c.0.s8 %v1218
    %v1220 = vlaneseq
    %v1221 = vshrl.u32 %v1220, 7
    %v1222 = vsub.s32 %v1219, %v1221
    %v1223 = vrot.slane %v1215, %v1222
    %v1225 = vunpack.c.l.s4 1966171168
    %v1226 = vunpack.c.0.s8 %v1225
    %v1227 = vlaneseq
    %v1228 = vshrl.u32 %v1227, 7
    %v1229 = vsub.s32 %v1226, %v1228
    %v1230 = vrot.slane %v1216, %v1229
    %v1233 = vadd.f32 %v1105, %v1223
    %v1234 = vadd.f32 %v1106, %v1230
    %v1235 = vstv %s116
    %v1236 = vmul.f32 %v1235, %v256
    %v1237 = vmul.f32 %v1235, %v258
    %v1240 = vcombine.low %v1236, %v1237
    %v1242 = vunpack.c.l.s4 1966171168
    %v1243 = vunpack.c.0.s8 %v1242
    %v1244 = vlaneseq
    %v1245 = vshrl.u32 %v1244, 7
    %v1246 = vsub.s32 %v1243, %v1245
    %v1247 = vrot.slane %v1240, %v1246
    %v1248 = vcombine.high %v1247, %v1247
    %v1250 = vunpack.c.l.s4 1966171168
    %v1251 = vunpack.c.0.s8 %v1250
    %v1252 = vlaneseq
    %v1253 = vshrl.u32 %v1252, 7
    %v1254 = vsub.s32 %v1251, %v1253
    %v1255 = vrot.slane %v1247, %v1254
    %v1257 = vunpack.c.l.s4 1966171168
    %v1258 = vunpack.c.0.s8 %v1257
    %v1259 = vlaneseq
    %v1260 = vshrl.u32 %v1259, 7
    %v1261 = vsub.s32 %v1258, %v1260
    %v1262 = vrot.slane %v1248, %v1261
    %v1265 = vadd.f32 %v1137, %v1255
    %v1266 = vadd.f32 %v1138, %v1262
    %v1267 = vstv %s117
    %v1268 = vmul.f32 %v1267, %v256
    %v1269 = vmul.f32 %v1267, %v258
    %v1272 = vcombine.low %v1268, %v1269
    %v1274 = vunpack.c.l.s4 1966171168
    %v1275 = vunpack.c.0.s8 %v1274
    %v1276 = vlaneseq
    %v1277 = vshrl.u32 %v1276, 7
    %v1278 = vsub.s32 %v1275, %v1277
    %v1279 = vrot.slane %v1272, %v1278
    %v1280 = vcombine.high %v1279, %v1279
    %v1282 = vunpack.c.l.s4 1966171168
    %v1283 = vunpack.c.0.s8 %v1282
    %v1284 = vlaneseq
    %v1285 = vshrl.u32 %v1284, 7
    %v1286 = vsub.s32 %v1283, %v1285
    %v1287 = vrot.slane %v1279, %v1286
    %v1289 = vunpack.c.l.s4 1966171168
    %v1290 = vunpack.c.0.s8 %v1289
    %v1291 = vlaneseq
    %v1292 = vshrl.u32 %v1291, 7
    %v1293 = vsub.s32 %v1290, %v1292
    %v1294 = vrot.slane %v1280, %v1293
    %v1297 = vadd.f32 %v1169, %v1287
    %v1298 = vadd.f32 %v1170, %v1294
    %v1299 = vstv %s118
    %v1300 = vmul.f32 %v1299, %v256
    %v1301 = vmul.f32 %v1299, %v258
    %v1304 = vcombine.low %v1300, %v1301
    %v1306 = vunpack.c.l.s4 1966171168
    %v1307 = vunpack.c.0.s8 %v1306
    %v1308 = vlaneseq
    %v1309 = vshrl.u32 %v1308, 7
    %v1310 = vsub.s32 %v1307, %v1309
    %v1311 = vrot.slane %v1304, %v1310
    %v1312 = vcombine.high %v1311, %v1311
    %v1314 = vunpack.c.l.s4 1966171168
    %v1315 = vunpack.c.0.s8 %v1314
    %v1316 = vlaneseq
    %v1317 = vshrl.u32 %v1316, 7
    %v1318 = vsub.s32 %v1315, %v1317
    %v1319 = vrot.slane %v1311, %v1318
    %v1321 = vunpack.c.l.s4 1966171168
    %v1322 = vunpack.c.0.s8 %v1321
    %v1323 = vlaneseq
    %v1324 = vshrl.u32 %v1323, 7
    %v1325 = vsub.s32 %v1322, %v1324
    %v1326 = vrot.slane %v1312, %v1325
    %v1329 = vadd.f32 %v1201, %v1319
    %v1330 = vadd.f32 %v1202, %v1326
    %1331 = vrot.lane.b32.xlu0 %v276, 127
    %v1332 = vpop.permute.xlu0 %1331
    %1333 = vrot.lane.b32.xlu0 %v283, 127
    %v1334 = vpop.permute.xlu0 %1333
    %vm1335 = vcmp.lt.s32.totalorder %v192, 127
    %v1336 = vsel %vm1335, %v1332, %v1334
    %v1337 = vsel %vm1335, %v1334, %v1332
    %v1338 = vmul.f32 %v1336, %v224
    %v1339 = vmul.f32 %v1337, %v225
    %1340 = vrot.lane.b32.xlu0 %v312, 127
    %v1341 = vpop.permute.xlu0 %1340
    %1342 = vrot.lane.b32.xlu0 %v319, 127
    %v1343 = vpop.permute.xlu0 %1342
    %v1344 = vsel %vm1335, %v1341, %v1343
    %v1345 = vsel %vm1335, %v1343, %v1341
    %v1346 = vmul.f32 %v1344, %v224
    %v1347 = vmul.f32 %v1345, %v225
    %1348 = vrot.lane.b32.xlu0 %v347, 127
    %v1349 = vpop.permute.xlu0 %1348
    %1350 = vrot.lane.b32.xlu0 %v354, 127
    %v1351 = vpop.permute.xlu0 %1350
    %v1352 = vsel %vm1335, %v1349, %v1351
    %v1353 = vsel %vm1335, %v1351, %v1349
    %v1354 = vmul.f32 %v1352, %v224
    %v1355 = vmul.f32 %v1353, %v225
    %1356 = vrot.lane.b32.xlu0 %v382, 127
    %v1357 = vpop.permute.xlu0 %1356
    %1358 = vrot.lane.b32.xlu0 %v389, 127
    %v1359 = vpop.permute.xlu0 %1358
    %v1360 = vsel %vm1335, %v1357, %v1359
    %v1361 = vsel %vm1335, %v1359, %v1357
    %v1362 = vmul.f32 %v1360, %v224
    %v1363 = vmul.f32 %v1361, %v225
    %v1364 = vstv %s119
    %v1365 = vmul.f32 %v1364, %v1338
    %v1366 = vmul.f32 %v1364, %v1339
    %v1367 = vadd.f32 %v1233, %v1365
    %v1368 = vadd.f32 %v1234, %v1366
    %v1369 = vstv %s120
    %v1370 = vmul.f32 %v1369, %v1338
    %v1371 = vmul.f32 %v1369, %v1339
    %v1372 = vadd.f32 %v1265, %v1370
    %v1373 = vadd.f32 %v1266, %v1371
    %v1374 = vstv %s121
    %v1375 = vmul.f32 %v1374, %v1338
    %v1376 = vmul.f32 %v1374, %v1339
    %v1377 = vadd.f32 %v1297, %v1375
    %v1378 = vadd.f32 %v1298, %v1376
    %v1379 = vstv %s122
    %v1380 = vmul.f32 %v1379, %v1338
    %v1381 = vmul.f32 %v1379, %v1339
    %v1382 = vadd.f32 %v1329, %v1380
    %v1383 = vadd.f32 %v1330, %v1381
    %v1384 = vstv %s123
    %v1385 = vmul.f32 %v1384, %v1346
    %v1386 = vmul.f32 %v1384, %v1347
    %v1387 = vadd.f32 %v1367, %v1385
    %v1388 = vadd.f32 %v1368, %v1386
    %v1389 = vstv %s124
    %v1390 = vmul.f32 %v1389, %v1346
    %v1391 = vmul.f32 %v1389, %v1347
    %v1392 = vadd.f32 %v1372, %v1390
    %v1393 = vadd.f32 %v1373, %v1391
    %v1394 = vstv %s125
    %v1395 = vmul.f32 %v1394, %v1346
    %v1396 = vmul.f32 %v1394, %v1347
    %v1397 = vadd.f32 %v1377, %v1395
    %v1398 = vadd.f32 %v1378, %v1396
    %v1399 = vstv %s126
    %v1400 = vmul.f32 %v1399, %v1346
    %v1401 = vmul.f32 %v1399, %v1347
    %v1402 = vadd.f32 %v1382, %v1400
    %v1403 = vadd.f32 %v1383, %v1401
    %v1404 = vstv %s127
    %v1405 = vmul.f32 %v1404, %v1354
    %v1406 = vmul.f32 %v1404, %v1355
    %v1407 = vadd.f32 %v1387, %v1405
    %v1408 = vadd.f32 %v1388, %v1406
    %v1409 = vstv %s128
    %v1410 = vmul.f32 %v1409, %v1354
    %v1411 = vmul.f32 %v1409, %v1355
    %v1412 = vadd.f32 %v1392, %v1410
    %v1413 = vadd.f32 %v1393, %v1411
    %v1414 = vstv %s129
    %v1415 = vmul.f32 %v1414, %v1354
    %v1416 = vmul.f32 %v1414, %v1355
    %v1417 = vadd.f32 %v1397, %v1415
    %v1418 = vadd.f32 %v1398, %v1416
    %v1419 = vstv %s130
    %v1420 = vmul.f32 %v1419, %v1354
    %v1421 = vmul.f32 %v1419, %v1355
    %v1422 = vadd.f32 %v1402, %v1420
    %v1423 = vadd.f32 %v1403, %v1421
    %v1424 = vstv %s131
    %v1425 = vmul.f32 %v1424, %v1362
    %v1426 = vmul.f32 %v1424, %v1363
    %v1427 = vadd.f32 %v1407, %v1425
    %v1428 = vadd.f32 %v1408, %v1426
    %v1429 = vstv %s132
    %v1430 = vmul.f32 %v1429, %v1362
    %v1431 = vmul.f32 %v1429, %v1363
    %v1432 = vadd.f32 %v1412, %v1430
    %v1433 = vadd.f32 %v1413, %v1431
    %v1434 = vstv %s133
    %v1435 = vmul.f32 %v1434, %v1362
    %v1436 = vmul.f32 %v1434, %v1363
    %v1437 = vadd.f32 %v1417, %v1435
    %v1438 = vadd.f32 %v1418, %v1436
    %v1439 = vstv %s134
    %v1440 = vmul.f32 %v1439, %v1362
    %v1441 = vmul.f32 %v1439, %v1363
    %v1442 = vadd.f32 %v1422, %v1440
    %v1443 = vadd.f32 %v1423, %v1441
    %1444 = vrot.lane.b32.xlu0 %v276, 113
    %v1445 = vpop.permute.xlu0 %1444
    %1446 = vrot.lane.b32.xlu0 %v283, 113
    %v1447 = vpop.permute.xlu0 %1446
    %vm1448 = vcmp.lt.s32.totalorder %v192, 113
    %v1449 = vsel %vm1448, %v1445, %v1447
    %v1450 = vsel %vm1448, %v1447, %v1445
    %v1451 = vmul.f32 %v1449, %v232
    %v1452 = vmul.f32 %v1450, %v233
    %1453 = vrot.lane.b32.xlu0 %v312, 113
    %v1454 = vpop.permute.xlu0 %1453
    %1455 = vrot.lane.b32.xlu0 %v319, 113
    %v1456 = vpop.permute.xlu0 %1455
    %v1457 = vsel %vm1448, %v1454, %v1456
    %v1458 = vsel %vm1448, %v1456, %v1454
    %v1459 = vmul.f32 %v1457, %v232
    %v1460 = vmul.f32 %v1458, %v233
    %1461 = vrot.lane.b32.xlu0 %v347, 113
    %v1462 = vpop.permute.xlu0 %1461
    %1463 = vrot.lane.b32.xlu0 %v354, 113
    %v1464 = vpop.permute.xlu0 %1463
    %v1465 = vsel %vm1448, %v1462, %v1464
    %v1466 = vsel %vm1448, %v1464, %v1462
    %v1467 = vmul.f32 %v1465, %v232
    %v1468 = vmul.f32 %v1466, %v233
    %1469 = vrot.lane.b32.xlu0 %v382, 113
    %v1470 = vpop.permute.xlu0 %1469
    %1471 = vrot.lane.b32.xlu0 %v389, 113
    %v1472 = vpop.permute.xlu0 %1471
    %v1473 = vsel %vm1448, %v1470, %v1472
    %v1474 = vsel %vm1448, %v1472, %v1470
    %v1475 = vmul.f32 %v1473, %v232
    %v1476 = vmul.f32 %v1474, %v233
    %v1477 = vstv %s135
    %v1478 = vmul.f32 %v1477, %v1451
    %v1479 = vmul.f32 %v1477, %v1452
    %v1480 = vadd.f32 %v1427, %v1478
    %v1481 = vadd.f32 %v1428, %v1479
    %v1482 = vstv %s136
    %v1483 = vmul.f32 %v1482, %v1451
    %v1484 = vmul.f32 %v1482, %v1452
    %v1485 = vadd.f32 %v1432, %v1483
    %v1486 = vadd.f32 %v1433, %v1484
    %v1487 = vstv %s137
    %v1488 = vmul.f32 %v1487, %v1451
    %v1489 = vmul.f32 %v1487, %v1452
    %v1490 = vadd.f32 %v1437, %v1488
    %v1491 = vadd.f32 %v1438, %v1489
    %v1492 = vstv %s138
    %v1493 = vmul.f32 %v1492, %v1451
    %v1494 = vmul.f32 %v1492, %v1452
    %v1495 = vadd.f32 %v1442, %v1493
    %v1496 = vadd.f32 %v1443, %v1494
    %v1497 = vstv %s139
    %v1498 = vmul.f32 %v1497, %v1459
    %v1499 = vmul.f32 %v1497, %v1460
    %v1500 = vadd.f32 %v1480, %v1498
    %v1501 = vadd.f32 %v1481, %v1499
    %v1502 = vstv %s140
    %v1503 = vmul.f32 %v1502, %v1459
    %v1504 = vmul.f32 %v1502, %v1460
    %v1505 = vadd.f32 %v1485, %v1503
    %v1506 = vadd.f32 %v1486, %v1504
    %v1507 = vstv %s141
    %v1508 = vmul.f32 %v1507, %v1459
    %v1509 = vmul.f32 %v1507, %v1460
    %v1510 = vadd.f32 %v1490, %v1508
    %v1511 = vadd.f32 %v1491, %v1509
    %v1512 = vstv %s142
    %v1513 = vmul.f32 %v1512, %v1459
    %v1514 = vmul.f32 %v1512, %v1460
    %v1515 = vadd.f32 %v1495, %v1513
    %v1516 = vadd.f32 %v1496, %v1514
    %v1517 = vstv %s143
    %v1518 = vmul.f32 %v1517, %v1467
    %v1519 = vmul.f32 %v1517, %v1468
    %v1520 = vadd.f32 %v1500, %v1518
    %v1521 = vadd.f32 %v1501, %v1519
    %v1522 = vstv %s144
    %v1523 = vmul.f32 %v1522, %v1467
    %v1524 = vmul.f32 %v1522, %v1468
    %v1525 = vadd.f32 %v1505, %v1523
    %v1526 = vadd.f32 %v1506, %v1524
    %v1527 = vstv %s145
    %v1528 = vmul.f32 %v1527, %v1467
    %v1529 = vmul.f32 %v1527, %v1468
    %v1530 = vadd.f32 %v1510, %v1528
    %v1531 = vadd.f32 %v1511, %v1529
    %v1532 = vstv %s146
    %v1533 = vmul.f32 %v1532, %v1467
    %v1534 = vmul.f32 %v1532, %v1468
    %v1535 = vadd.f32 %v1515, %v1533
    %v1536 = vadd.f32 %v1516, %v1534
    %v1537 = vstv %s147
    %v1538 = vmul.f32 %v1537, %v1475
    %v1539 = vmul.f32 %v1537, %v1476
    %v1540 = vadd.f32 %v1520, %v1538
    %v1541 = vadd.f32 %v1521, %v1539
    %v1542 = vstv %s148
    %v1543 = vmul.f32 %v1542, %v1475
    %v1544 = vmul.f32 %v1542, %v1476
    %v1545 = vadd.f32 %v1525, %v1543
    %v1546 = vadd.f32 %v1526, %v1544
    %v1547 = vstv %s149
    %v1548 = vmul.f32 %v1547, %v1475
    %v1549 = vmul.f32 %v1547, %v1476
    %v1550 = vadd.f32 %v1530, %v1548
    %v1551 = vadd.f32 %v1531, %v1549
    %v1552 = vstv %s150
    %v1553 = vmul.f32 %v1552, %v1475
    %v1554 = vmul.f32 %v1552, %v1476
    %v1555 = vadd.f32 %v1535, %v1553
    %v1556 = vadd.f32 %v1536, %v1554
    %1557 = vrot.lane.b32.xlu0 %v276, 112
    %v1558 = vpop.permute.xlu0 %1557
    %1559 = vrot.lane.b32.xlu0 %v283, 112
    %v1560 = vpop.permute.xlu0 %1559
    %vm1561 = vcmp.lt.s32.totalorder %v192, 112
    %v1562 = vsel %vm1561, %v1558, %v1560
    %v1563 = vsel %vm1561, %v1560, %v1558
    %v1564 = vmul.f32 %v1562, %v236
    %v1565 = vmul.f32 %v1563, %v237
    %1566 = vrot.lane.b32.xlu0 %v312, 112
    %v1567 = vpop.permute.xlu0 %1566
    %1568 = vrot.lane.b32.xlu0 %v319, 112
    %v1569 = vpop.permute.xlu0 %1568
    %v1570 = vsel %vm1561, %v1567, %v1569
    %v1571 = vsel %vm1561, %v1569, %v1567
    %v1572 = vmul.f32 %v1570, %v236
    %v1573 = vmul.f32 %v1571, %v237
    %1574 = vrot.lane.b32.xlu0 %v347, 112
    %v1575 = vpop.permute.xlu0 %1574
    %1576 = vrot.lane.b32.xlu0 %v354, 112
    %v1577 = vpop.permute.xlu0 %1576
    %v1578 = vsel %vm1561, %v1575, %v1577
    %v1579 = vsel %vm1561, %v1577, %v1575
    %v1580 = vmul.f32 %v1578, %v236
    %v1581 = vmul.f32 %v1579, %v237
    %1582 = vrot.lane.b32.xlu0 %v382, 112
    %v1583 = vpop.permute.xlu0 %1582
    %1584 = vrot.lane.b32.xlu0 %v389, 112
    %v1585 = vpop.permute.xlu0 %1584
    %v1586 = vsel %vm1561, %v1583, %v1585
    %v1587 = vsel %vm1561, %v1585, %v1583
    %v1588 = vmul.f32 %v1586, %v236
    %v1589 = vmul.f32 %v1587, %v237
    %v1590 = vstv %s151
    %v1591 = vmul.f32 %v1590, %v1564
    %v1592 = vmul.f32 %v1590, %v1565
    %v1593 = vadd.f32 %v1540, %v1591
    %v1594 = vadd.f32 %v1541, %v1592
    %v1595 = vstv %s152
    %v1596 = vmul.f32 %v1595, %v1564
    %v1597 = vmul.f32 %v1595, %v1565
    %v1598 = vadd.f32 %v1545, %v1596
    %v1599 = vadd.f32 %v1546, %v1597
    %v1600 = vstv %s153
    %v1601 = vmul.f32 %v1600, %v1564
    %v1602 = vmul.f32 %v1600, %v1565
    %v1603 = vadd.f32 %v1550, %v1601
    %v1604 = vadd.f32 %v1551, %v1602
    %v1605 = vstv %s154
    %v1606 = vmul.f32 %v1605, %v1564
    %v1607 = vmul.f32 %v1605, %v1565
    %v1608 = vadd.f32 %v1555, %v1606
    %v1609 = vadd.f32 %v1556, %v1607
    %v1610 = vstv %s155
    %v1611 = vmul.f32 %v1610, %v1572
    %v1612 = vmul.f32 %v1610, %v1573
    %v1613 = vadd.f32 %v1593, %v1611
    %v1614 = vadd.f32 %v1594, %v1612
    %v1615 = vstv %s156
    %v1616 = vmul.f32 %v1615, %v1572
    %v1617 = vmul.f32 %v1615, %v1573
    %v1618 = vadd.f32 %v1598, %v1616
    %v1619 = vadd.f32 %v1599, %v1617
    %v1620 = vstv %s157
    %v1621 = vmul.f32 %v1620, %v1572
    %v1622 = vmul.f32 %v1620, %v1573
    %v1623 = vadd.f32 %v1603, %v1621
    %v1624 = vadd.f32 %v1604, %v1622
    %v1625 = vstv %s158
    %v1626 = vmul.f32 %v1625, %v1572
    %v1627 = vmul.f32 %v1625, %v1573
    %v1628 = vadd.f32 %v1608, %v1626
    %v1629 = vadd.f32 %v1609, %v1627
    %v1630 = vstv %s159
    %v1631 = vmul.f32 %v1630, %v1580
    %v1632 = vmul.f32 %v1630, %v1581
    %v1633 = vadd.f32 %v1613, %v1631
    %v1634 = vadd.f32 %v1614, %v1632
    %v1635 = vstv %s160
    %v1636 = vmul.f32 %v1635, %v1580
    %v1637 = vmul.f32 %v1635, %v1581
    %v1638 = vadd.f32 %v1618, %v1636
    %v1639 = vadd.f32 %v1619, %v1637
    %v1640 = vstv %s161
    %v1641 = vmul.f32 %v1640, %v1580
    %v1642 = vmul.f32 %v1640, %v1581
    %v1643 = vadd.f32 %v1623, %v1641
    %v1644 = vadd.f32 %v1624, %v1642
    %v1645 = vstv %s162
    %v1646 = vmul.f32 %v1645, %v1580
    %v1647 = vmul.f32 %v1645, %v1581
    %v1648 = vadd.f32 %v1628, %v1646
    %v1649 = vadd.f32 %v1629, %v1647
    %v1650 = vstv %s163
    %v1651 = vmul.f32 %v1650, %v1588
    %v1652 = vmul.f32 %v1650, %v1589
    %v1653 = vadd.f32 %v1633, %v1651
    %v1654 = vadd.f32 %v1634, %v1652
    %v1655 = vstv %s164
    %v1656 = vmul.f32 %v1655, %v1588
    %v1657 = vmul.f32 %v1655, %v1589
    %v1658 = vadd.f32 %v1638, %v1656
    %v1659 = vadd.f32 %v1639, %v1657
    %v1660 = vstv %s165
    %v1661 = vmul.f32 %v1660, %v1588
    %v1662 = vmul.f32 %v1660, %v1589
    %v1663 = vadd.f32 %v1643, %v1661
    %v1664 = vadd.f32 %v1644, %v1662
    %v1665 = vstv %s166
    %v1666 = vmul.f32 %v1665, %v1588
    %v1667 = vmul.f32 %v1665, %v1589
    %v1668 = vadd.f32 %v1648, %v1666
    %v1669 = vadd.f32 %v1649, %v1667
    %1670 = vrot.lane.b32.xlu0 %v276, 111
    %v1671 = vpop.permute.xlu0 %1670
    %1672 = vrot.lane.b32.xlu0 %v283, 111
    %v1673 = vpop.permute.xlu0 %1672
    %vm1674 = vcmp.lt.s32.totalorder %v192, 111
    %v1675 = vsel %vm1674, %v1671, %v1673
    %v1676 = vsel %vm1674, %v1673, %v1671
    %v1677 = vmul.f32 %v1675, %v242
    %v1678 = vmul.f32 %v1676, %v243
    %1679 = vrot.lane.b32.xlu0 %v312, 111
    %v1680 = vpop.permute.xlu0 %1679
    %1681 = vrot.lane.b32.xlu0 %v319, 111
    %v1682 = vpop.permute.xlu0 %1681
    %v1683 = vsel %vm1674, %v1680, %v1682
    %v1684 = vsel %vm1674, %v1682, %v1680
    %v1685 = vmul.f32 %v1683, %v242
    %v1686 = vmul.f32 %v1684, %v243
    %1687 = vrot.lane.b32.xlu0 %v347, 111
    %v1688 = vpop.permute.xlu0 %1687
    %1689 = vrot.lane.b32.xlu0 %v354, 111
    %v1690 = vpop.permute.xlu0 %1689
    %v1691 = vsel %vm1674, %v1688, %v1690
    %v1692 = vsel %vm1674, %v1690, %v1688
    %v1693 = vmul.f32 %v1691, %v242
    %v1694 = vmul.f32 %v1692, %v243
    %1695 = vrot.lane.b32.xlu0 %v382, 111
    %v1696 = vpop.permute.xlu0 %1695
    %1697 = vrot.lane.b32.xlu0 %v389, 111
    %v1698 = vpop.permute.xlu0 %1697
    %v1699 = vsel %vm1674, %v1696, %v1698
    %v1700 = vsel %vm1674, %v1698, %v1696
    %v1701 = vmul.f32 %v1699, %v242
    %v1702 = vmul.f32 %v1700, %v243
    %v1703 = vstv %s167
    %v1704 = vmul.f32 %v1703, %v1677
    %v1705 = vmul.f32 %v1703, %v1678
    %v1706 = vadd.f32 %v1653, %v1704
    %v1707 = vadd.f32 %v1654, %v1705
    %v1708 = vstv %s168
    %v1709 = vmul.f32 %v1708, %v1677
    %v1710 = vmul.f32 %v1708, %v1678
    %v1711 = vadd.f32 %v1658, %v1709
    %v1712 = vadd.f32 %v1659, %v1710
    %v1713 = vstv %s169
    %v1714 = vmul.f32 %v1713, %v1677
    %v1715 = vmul.f32 %v1713, %v1678
    %v1716 = vadd.f32 %v1663, %v1714
    %v1717 = vadd.f32 %v1664, %v1715
    %v1718 = vstv %s170
    %v1719 = vmul.f32 %v1718, %v1677
    %v1720 = vmul.f32 %v1718, %v1678
    %v1721 = vadd.f32 %v1668, %v1719
    %v1722 = vadd.f32 %v1669, %v1720
    %v1723 = vstv %s171
    %v1724 = vmul.f32 %v1723, %v1685
    %v1725 = vmul.f32 %v1723, %v1686
    %v1726 = vadd.f32 %v1706, %v1724
    %v1727 = vadd.f32 %v1707, %v1725
    %v1728 = vstv %s172
    %v1729 = vmul.f32 %v1728, %v1685
    %v1730 = vmul.f32 %v1728, %v1686
    %v1731 = vadd.f32 %v1711, %v1729
    %v1732 = vadd.f32 %v1712, %v1730
    %v1733 = vstv %s173
    %v1734 = vmul.f32 %v1733, %v1685
    %v1735 = vmul.f32 %v1733, %v1686
    %v1736 = vadd.f32 %v1716, %v1734
    %v1737 = vadd.f32 %v1717, %v1735
    %v1738 = vstv %s174
    %v1739 = vmul.f32 %v1738, %v1685
    %v1740 = vmul.f32 %v1738, %v1686
    %v1741 = vadd.f32 %v1721, %v1739
    %v1742 = vadd.f32 %v1722, %v1740
    %v1743 = vstv %s175
    %v1744 = vmul.f32 %v1743, %v1693
    %v1745 = vmul.f32 %v1743, %v1694
    %v1746 = vadd.f32 %v1726, %v1744
    %v1747 = vadd.f32 %v1727, %v1745
    %v1748 = vstv %s176
    %v1749 = vmul.f32 %v1748, %v1693
    %v1750 = vmul.f32 %v1748, %v1694
    %v1751 = vadd.f32 %v1731, %v1749
    %v1752 = vadd.f32 %v1732, %v1750
    %v1753 = vstv %s177
    %v1754 = vmul.f32 %v1753, %v1693
    %v1755 = vmul.f32 %v1753, %v1694
    %v1756 = vadd.f32 %v1736, %v1754
    %v1757 = vadd.f32 %v1737, %v1755
    %v1758 = vstv %s178
    %v1759 = vmul.f32 %v1758, %v1693
    %v1760 = vmul.f32 %v1758, %v1694
    %v1761 = vadd.f32 %v1741, %v1759
    %v1762 = vadd.f32 %v1742, %v1760
    %v1763 = vstv %s179
    %v1764 = vmul.f32 %v1763, %v1701
    %v1765 = vmul.f32 %v1763, %v1702
    %v1766 = vadd.f32 %v1746, %v1764
    %v1767 = vadd.f32 %v1747, %v1765
    %v1768 = vstv %s180
    %v1769 = vmul.f32 %v1768, %v1701
    %v1770 = vmul.f32 %v1768, %v1702
    %v1771 = vadd.f32 %v1751, %v1769
    %v1772 = vadd.f32 %v1752, %v1770
    %v1773 = vstv %s181
    %v1774 = vmul.f32 %v1773, %v1701
    %v1775 = vmul.f32 %v1773, %v1702
    %v1776 = vadd.f32 %v1756, %v1774
    %v1777 = vadd.f32 %v1757, %v1775
    %v1778 = vstv %s182
    %v1779 = vmul.f32 %v1778, %v1701
    %v1780 = vmul.f32 %v1778, %v1702
    %v1781 = vadd.f32 %v1761, %v1779
    %v1782 = vadd.f32 %v1762, %v1780
    %v1783 = vmax.f32 %v1766, 0.0
    %v1784 = vmax.f32 %v1767, 0.0
    %v1785 = vmax.f32 %v1771, 0.0
    %v1786 = vmax.f32 %v1772, 0.0
    %v1787 = vmax.f32 %v1776, 0.0
    %v1788 = vmax.f32 %v1777, 0.0
    %v1789 = vmax.f32 %v1781, 0.0
    %v1790 = vmax.f32 %v1782, 0.0
    %1791 = vrot.lane.b32.xlu0 %v1783, 17
    %v1792 = vpop.permute.xlu0 %1791
    %1793 = vrot.lane.b32.xlu0 %v1784, 17
    %v1794 = vpop.permute.xlu0 %1793
    %v1795 = vsel %vm290, %v1792, %v1794
    %v1796 = vsel %vm290, %v1794, %v1792
    %v1797 = vmul.f32 %v1796, %v204
    %v1798 = vmul.f32 %v1795, %v205
    %1799 = vrot.lane.b32.xlu0 %v1785, 17
    %v1800 = vpop.permute.xlu0 %1799
    %1801 = vrot.lane.b32.xlu0 %v1786, 17
    %v1802 = vpop.permute.xlu0 %1801
    %v1803 = vsel %vm290, %v1800, %v1802
    %v1804 = vsel %vm290, %v1802, %v1800
    %v1805 = vmul.f32 %v1804, %v204
    %v1806 = vmul.f32 %v1803, %v205
    %1807 = vrot.lane.b32.xlu0 %v1787, 17
    %v1808 = vpop.permute.xlu0 %1807
    %1809 = vrot.lane.b32.xlu0 %v1788, 17
    %v1810 = vpop.permute.xlu0 %1809
    %v1811 = vsel %vm290, %v1808, %v1810
    %v1812 = vsel %vm290, %v1810, %v1808
    %v1813 = vmul.f32 %v1812, %v204
    %v1814 = vmul.f32 %v1811, %v205
    %1815 = vrot.lane.b32.xlu0 %v1789, 17
    %v1816 = vpop.permute.xlu0 %1815
    %1817 = vrot.lane.b32.xlu0 %v1790, 17
    %v1818 = vpop.permute.xlu0 %1817
    %v1819 = vsel %vm290, %v1816, %v1818
    %v1820 = vsel %vm290, %v1818, %v1816
    %v1821 = vmul.f32 %v1820, %v204
    %v1822 = vmul.f32 %v1819, %v205
    %v1823 = vmul.f32 %v400, %v1797
    %v1824 = vmul.f32 %v400, %v1798
    %v1825 = vadd.f32 %v184, %v1823
    %v1826 = vadd.f32 %v184, %v1824
    %v1827 = vmul.f32 %v405, %v1797
    %v1828 = vmul.f32 %v405, %v1798
    %v1829 = vadd.f32 %v186, %v1827
    %v1830 = vadd.f32 %v186, %v1828
    %v1831 = vmul.f32 %v410, %v1797
    %v1832 = vmul.f32 %v410, %v1798
    %v1833 = vadd.f32 %v188, %v1831
    %v1834 = vadd.f32 %v188, %v1832
    %v1835 = vmul.f32 %v415, %v1797
    %v1836 = vmul.f32 %v415, %v1798
    %v1837 = vadd.f32 %v190, %v1835
    %v1838 = vadd.f32 %v190, %v1836
    %v1839 = vmul.f32 %v420, %v1805
    %v1840 = vmul.f32 %v420, %v1806
    %v1841 = vadd.f32 %v1825, %v1839
    %v1842 = vadd.f32 %v1826, %v1840
    %v1843 = vmul.f32 %v425, %v1805
    %v1844 = vmul.f32 %v425, %v1806
    %v1845 = vadd.f32 %v1829, %v1843
    %v1846 = vadd.f32 %v1830, %v1844
    %v1847 = vmul.f32 %v430, %v1805
    %v1848 = vmul.f32 %v430, %v1806
    %v1849 = vadd.f32 %v1833, %v1847
    %v1850 = vadd.f32 %v1834, %v1848
    %v1851 = vmul.f32 %v435, %v1805
    %v1852 = vmul.f32 %v435, %v1806
    %v1853 = vadd.f32 %v1837, %v1851
    %v1854 = vadd.f32 %v1838, %v1852
    %v1855 = vmul.f32 %v440, %v1813
    %v1856 = vmul.f32 %v440, %v1814
    %v1857 = vadd.f32 %v1841, %v1855
    %v1858 = vadd.f32 %v1842, %v1856
    %v1859 = vmul.f32 %v445, %v1813
    %v1860 = vmul.f32 %v445, %v1814
    %v1861 = vadd.f32 %v1845, %v1859
    %v1862 = vadd.f32 %v1846, %v1860
    %v1863 = vmul.f32 %v450, %v1813
    %v1864 = vmul.f32 %v450, %v1814
    %v1865 = vadd.f32 %v1849, %v1863
    %v1866 = vadd.f32 %v1850, %v1864
    %v1867 = vmul.f32 %v455, %v1813
    %v1868 = vmul.f32 %v455, %v1814
    %v1869 = vadd.f32 %v1853, %v1867
    %v1870 = vadd.f32 %v1854, %v1868
    %v1871 = vmul.f32 %v460, %v1821
    %v1872 = vmul.f32 %v460, %v1822
    %v1873 = vadd.f32 %v1857, %v1871
    %v1874 = vadd.f32 %v1858, %v1872
    %v1875 = vmul.f32 %v465, %v1821
    %v1876 = vmul.f32 %v465, %v1822
    %v1877 = vadd.f32 %v1861, %v1875
    %v1878 = vadd.f32 %v1862, %v1876
    %v1879 = vmul.f32 %v470, %v1821
    %v1880 = vmul.f32 %v470, %v1822
    %v1881 = vadd.f32 %v1865, %v1879
    %v1882 = vadd.f32 %v1866, %v1880
    %v1883 = vmul.f32 %v475, %v1821
    %v1884 = vmul.f32 %v475, %v1822
    %v1885 = vadd.f32 %v1869, %v1883
    %v1886 = vadd.f32 %v1870, %v1884
    %1887 = vrot.lane.b32.xlu0 %v1783, 16
    %v1888 = vpop.permute.xlu0 %1887
    %1889 = vrot.lane.b32.xlu0 %v1784, 16
    %v1890 = vpop.permute.xlu0 %1889
    %v1891 = vsel %vm484, %v1888, %v1890
    %v1892 = vsel %vm484, %v1890, %v1888
    %v1893 = vmul.f32 %v1892, %v208
    %v1894 = vmul.f32 %v1891, %v209
    %1895 = vrot.lane.b32.xlu0 %v1785, 16
    %v1896 = vpop.permute.xlu0 %1895
    %1897 = vrot.lane.b32.xlu0 %v1786, 16
    %v1898 = vpop.permute.xlu0 %1897
    %v1899 = vsel %vm484, %v1896, %v1898
    %v1900 = vsel %vm484, %v1898, %v1896
    %v1901 = vmul.f32 %v1900, %v208
    %v1902 = vmul.f32 %v1899, %v209
    %1903 = vrot.lane.b32.xlu0 %v1787, 16
    %v1904 = vpop.permute.xlu0 %1903
    %1905 = vrot.lane.b32.xlu0 %v1788, 16
    %v1906 = vpop.permute.xlu0 %1905
    %v1907 = vsel %vm484, %v1904, %v1906
    %v1908 = vsel %vm484, %v1906, %v1904
    %v1909 = vmul.f32 %v1908, %v208
    %v1910 = vmul.f32 %v1907, %v209
    %1911 = vrot.lane.b32.xlu0 %v1789, 16
    %v1912 = vpop.permute.xlu0 %1911
    %1913 = vrot.lane.b32.xlu0 %v1790, 16
    %v1914 = vpop.permute.xlu0 %1913
    %v1915 = vsel %vm484, %v1912, %v1914
    %v1916 = vsel %vm484, %v1914, %v1912
    %v1917 = vmul.f32 %v1916, %v208
    %v1918 = vmul.f32 %v1915, %v209
    %v1919 = vmul.f32 %v513, %v1893
    %v1920 = vmul.f32 %v513, %v1894
    %v1921 = vadd.f32 %v1873, %v1919
    %v1922 = vadd.f32 %v1874, %v1920
    %v1923 = vmul.f32 %v518, %v1893
    %v1924 = vmul.f32 %v518, %v1894
    %v1925 = vadd.f32 %v1877, %v1923
    %v1926 = vadd.f32 %v1878, %v1924
    %v1927 = vmul.f32 %v523, %v1893
    %v1928 = vmul.f32 %v523, %v1894
    %v1929 = vadd.f32 %v1881, %v1927
    %v1930 = vadd.f32 %v1882, %v1928
    %v1931 = vmul.f32 %v528, %v1893
    %v1932 = vmul.f32 %v528, %v1894
    %v1933 = vadd.f32 %v1885, %v1931
    %v1934 = vadd.f32 %v1886, %v1932
    %v1935 = vmul.f32 %v533, %v1901
    %v1936 = vmul.f32 %v533, %v1902
    %v1937 = vadd.f32 %v1921, %v1935
    %v1938 = vadd.f32 %v1922, %v1936
    %v1939 = vmul.f32 %v538, %v1901
    %v1940 = vmul.f32 %v538, %v1902
    %v1941 = vadd.f32 %v1925, %v1939
    %v1942 = vadd.f32 %v1926, %v1940
    %v1943 = vmul.f32 %v543, %v1901
    %v1944 = vmul.f32 %v543, %v1902
    %v1945 = vadd.f32 %v1929, %v1943
    %v1946 = vadd.f32 %v1930, %v1944
    %v1947 = vmul.f32 %v548, %v1901
    %v1948 = vmul.f32 %v548, %v1902
    %v1949 = vadd.f32 %v1933, %v1947
    %v1950 = vadd.f32 %v1934, %v1948
    %v1951 = vmul.f32 %v553, %v1909
    %v1952 = vmul.f32 %v553, %v1910
    %v1953 = vadd.f32 %v1937, %v1951
    %v1954 = vadd.f32 %v1938, %v1952
    %v1955 = vmul.f32 %v558, %v1909
    %v1956 = vmul.f32 %v558, %v1910
    %v1957 = vadd.f32 %v1941, %v1955
    %v1958 = vadd.f32 %v1942, %v1956
    %v1959 = vmul.f32 %v563, %v1909
    %v1960 = vmul.f32 %v563, %v1910
    %v1961 = vadd.f32 %v1945, %v1959
    %v1962 = vadd.f32 %v1946, %v1960
    %v1963 = vmul.f32 %v568, %v1909
    %v1964 = vmul.f32 %v568, %v1910
    %v1965 = vadd.f32 %v1949, %v1963
    %v1966 = vadd.f32 %v1950, %v1964
    %v1967 = vmul.f32 %v573, %v1917
    %v1968 = vmul.f32 %v573, %v1918
    %v1969 = vadd.f32 %v1953, %v1967
    %v1970 = vadd.f32 %v1954, %v1968
    %v1971 = vmul.f32 %v578, %v1917
    %v1972 = vmul.f32 %v578, %v1918
    %v1973 = vadd.f32 %v1957, %v1971
    %v1974 = vadd.f32 %v1958, %v1972
    %v1975 = vmul.f32 %v583, %v1917
    %v1976 = vmul.f32 %v583, %v1918
    %v1977 = vadd.f32 %v1961, %v1975
    %v1978 = vadd.f32 %v1962, %v1976
    %v1979 = vmul.f32 %v588, %v1917
    %v1980 = vmul.f32 %v588, %v1918
    %v1981 = vadd.f32 %v1965, %v1979
    %v1982 = vadd.f32 %v1966, %v1980
    %1983 = vrot.lane.b32.xlu0 %v1783, 15
    %v1984 = vpop.permute.xlu0 %1983
    %1985 = vrot.lane.b32.xlu0 %v1784, 15
    %v1986 = vpop.permute.xlu0 %1985
    %v1987 = vsel %vm597, %v1984, %v1986
    %v1988 = vsel %vm597, %v1986, %v1984
    %v1989 = vmul.f32 %v1988, %v216
    %v1990 = vmul.f32 %v1987, %v217
    %1991 = vrot.lane.b32.xlu0 %v1785, 15
    %v1992 = vpop.permute.xlu0 %1991
    %1993 = vrot.lane.b32.xlu0 %v1786, 15
    %v1994 = vpop.permute.xlu0 %1993
    %v1995 = vsel %vm597, %v1992, %v1994
    %v1996 = vsel %vm597, %v1994, %v1992
    %v1997 = vmul.f32 %v1996, %v216
    %v1998 = vmul.f32 %v1995, %v217
    %1999 = vrot.lane.b32.xlu0 %v1787, 15
    %v2000 = vpop.permute.xlu0 %1999
    %2001 = vrot.lane.b32.xlu0 %v1788, 15
    %v2002 = vpop.permute.xlu0 %2001
    %v2003 = vsel %vm597, %v2000, %v2002
    %v2004 = vsel %vm597, %v2002, %v2000
    %v2005 = vmul.f32 %v2004, %v216
    %v2006 = vmul.f32 %v2003, %v217
    %2007 = vrot.lane.b32.xlu0 %v1789, 15
    %v2008 = vpop.permute.xlu0 %2007
    %2009 = vrot.lane.b32.xlu0 %v1790, 15
    %v2010 = vpop.permute.xlu0 %2009
    %v2011 = vsel %vm597, %v2008, %v2010
    %v2012 = vsel %vm597, %v2010, %v2008
    %v2013 = vmul.f32 %v2012, %v216
    %v2014 = vmul.f32 %v2011, %v217
    %v2015 = vmul.f32 %v626, %v1989
    %v2016 = vmul.f32 %v626, %v1990
    %v2017 = vadd.f32 %v1969, %v2015
    %v2018 = vadd.f32 %v1970, %v2016
    %v2019 = vmul.f32 %v631, %v1989
    %v2020 = vmul.f32 %v631, %v1990
    %v2021 = vadd.f32 %v1973, %v2019
    %v2022 = vadd.f32 %v1974, %v2020
    %v2023 = vmul.f32 %v636, %v1989
    %v2024 = vmul.f32 %v636, %v1990
    %v2025 = vadd.f32 %v1977, %v2023
    %v2026 = vadd.f32 %v1978, %v2024
    %v2027 = vmul.f32 %v641, %v1989
    %v2028 = vmul.f32 %v641, %v1990
    %v2029 = vadd.f32 %v1981, %v2027
    %v2030 = vadd.f32 %v1982, %v2028
    %v2031 = vmul.f32 %v646, %v1997
    %v2032 = vmul.f32 %v646, %v1998
    %v2033 = vadd.f32 %v2017, %v2031
    %v2034 = vadd.f32 %v2018, %v2032
    %v2035 = vmul.f32 %v651, %v1997
    %v2036 = vmul.f32 %v651, %v1998
    %v2037 = vadd.f32 %v2021, %v2035
    %v2038 = vadd.f32 %v2022, %v2036
    %v2039 = vmul.f32 %v656, %v1997
    %v2040 = vmul.f32 %v656, %v1998
    %v2041 = vadd.f32 %v2025, %v2039
    %v2042 = vadd.f32 %v2026, %v2040
    %v2043 = vmul.f32 %v661, %v1997
    %v2044 = vmul.f32 %v661, %v1998
    %v2045 = vadd.f32 %v2029, %v2043
    %v2046 = vadd.f32 %v2030, %v2044
    %v2047 = vmul.f32 %v666, %v2005
    %v2048 = vmul.f32 %v666, %v2006
    %v2049 = vadd.f32 %v2033, %v2047
    %v2050 = vadd.f32 %v2034, %v2048
    %v2051 = vmul.f32 %v671, %v2005
    %v2052 = vmul.f32 %v671, %v2006
    %v2053 = vadd.f32 %v2037, %v2051
    %v2054 = vadd.f32 %v2038, %v2052
    %v2055 = vmul.f32 %v676, %v2005
    %v2056 = vmul.f32 %v676, %v2006
    %v2057 = vadd.f32 %v2041, %v2055
    %v2058 = vadd.f32 %v2042, %v2056
    %v2059 = vmul.f32 %v681, %v2005
    %v2060 = vmul.f32 %v681, %v2006
    %v2061 = vadd.f32 %v2045, %v2059
    %v2062 = vadd.f32 %v2046, %v2060
    %v2063 = vmul.f32 %v686, %v2013
    %v2064 = vmul.f32 %v686, %v2014
    %v2065 = vadd.f32 %v2049, %v2063
    %v2066 = vadd.f32 %v2050, %v2064
    %v2067 = vmul.f32 %v691, %v2013
    %v2068 = vmul.f32 %v691, %v2014
    %v2069 = vadd.f32 %v2053, %v2067
    %v2070 = vadd.f32 %v2054, %v2068
    %v2071 = vmul.f32 %v696, %v2013
    %v2072 = vmul.f32 %v696, %v2014
    %v2073 = vadd.f32 %v2057, %v2071
    %v2074 = vadd.f32 %v2058, %v2072
    %v2075 = vmul.f32 %v701, %v2013
    %v2076 = vmul.f32 %v701, %v2014
    %v2077 = vadd.f32 %v2061, %v2075
    %v2078 = vadd.f32 %v2062, %v2076
    %2079 = vrot.lane.b32.xlu0 %v1783, 1
    %v2080 = vpop.permute.xlu0 %2079
    %2081 = vrot.lane.b32.xlu0 %v1784, 1
    %v2082 = vpop.permute.xlu0 %2081
    %v2083 = vsel %vm710, %v2080, %v2082
    %v2084 = vsel %vm710, %v2082, %v2080
    %v2085 = vmul.f32 %v2084, %v220
    %v2086 = vmul.f32 %v2083, %v221
    %2087 = vrot.lane.b32.xlu0 %v1785, 1
    %v2088 = vpop.permute.xlu0 %2087
    %2089 = vrot.lane.b32.xlu0 %v1786, 1
    %v2090 = vpop.permute.xlu0 %2089
    %v2091 = vsel %vm710, %v2088, %v2090
    %v2092 = vsel %vm710, %v2090, %v2088
    %v2093 = vmul.f32 %v2092, %v220
    %v2094 = vmul.f32 %v2091, %v221
    %2095 = vrot.lane.b32.xlu0 %v1787, 1
    %v2096 = vpop.permute.xlu0 %2095
    %2097 = vrot.lane.b32.xlu0 %v1788, 1
    %v2098 = vpop.permute.xlu0 %2097
    %v2099 = vsel %vm710, %v2096, %v2098
    %v2100 = vsel %vm710, %v2098, %v2096
    %v2101 = vmul.f32 %v2100, %v220
    %v2102 = vmul.f32 %v2099, %v221
    %2103 = vrot.lane.b32.xlu0 %v1789, 1
    %v2104 = vpop.permute.xlu0 %2103
    %2105 = vrot.lane.b32.xlu0 %v1790, 1
    %v2106 = vpop.permute.xlu0 %2105
    %v2107 = vsel %vm710, %v2104, %v2106
    %v2108 = vsel %vm710, %v2106, %v2104
    %v2109 = vmul.f32 %v2108, %v220
    %v2110 = vmul.f32 %v2107, %v221
    %v2111 = vmul.f32 %v739, %v2085
    %v2112 = vmul.f32 %v739, %v2086
    %v2113 = vadd.f32 %v2065, %v2111
    %v2114 = vadd.f32 %v2066, %v2112
    %v2115 = vmul.f32 %v744, %v2085
    %v2116 = vmul.f32 %v744, %v2086
    %v2117 = vadd.f32 %v2069, %v2115
    %v2118 = vadd.f32 %v2070, %v2116
    %v2119 = vmul.f32 %v749, %v2085
    %v2120 = vmul.f32 %v749, %v2086
    %v2121 = vadd.f32 %v2073, %v2119
    %v2122 = vadd.f32 %v2074, %v2120
    %v2123 = vmul.f32 %v754, %v2085
    %v2124 = vmul.f32 %v754, %v2086
    %v2125 = vadd.f32 %v2077, %v2123
    %v2126 = vadd.f32 %v2078, %v2124
    %v2127 = vmul.f32 %v759, %v2093
    %v2128 = vmul.f32 %v759, %v2094
    %v2129 = vadd.f32 %v2113, %v2127
    %v2130 = vadd.f32 %v2114, %v2128
    %v2131 = vmul.f32 %v764, %v2093
    %v2132 = vmul.f32 %v764, %v2094
    %v2133 = vadd.f32 %v2117, %v2131
    %v2134 = vadd.f32 %v2118, %v2132
    %v2135 = vmul.f32 %v769, %v2093
    %v2136 = vmul.f32 %v769, %v2094
    %v2137 = vadd.f32 %v2121, %v2135
    %v2138 = vadd.f32 %v2122, %v2136
    %v2139 = vmul.f32 %v774, %v2093
    %v2140 = vmul.f32 %v774, %v2094
    %v2141 = vadd.f32 %v2125, %v2139
    %v2142 = vadd.f32 %v2126, %v2140
    %v2143 = vmul.f32 %v779, %v2101
    %v2144 = vmul.f32 %v779, %v2102
    %v2145 = vadd.f32 %v2129, %v2143
    %v2146 = vadd.f32 %v2130, %v2144
    %v2147 = vmul.f32 %v784, %v2101
    %v2148 = vmul.f32 %v784, %v2102
    %v2149 = vadd.f32 %v2133, %v2147
    %v2150 = vadd.f32 %v2134, %v2148
    %v2151 = vmul.f32 %v789, %v2101
    %v2152 = vmul.f32 %v789, %v2102
    %v2153 = vadd.f32 %v2137, %v2151
    %v2154 = vadd.f32 %v2138, %v2152
    %v2155 = vmul.f32 %v794, %v2101
    %v2156 = vmul.f32 %v794, %v2102
    %v2157 = vadd.f32 %v2141, %v2155
    %v2158 = vadd.f32 %v2142, %v2156
    %v2159 = vmul.f32 %v799, %v2109
    %v2160 = vmul.f32 %v799, %v2110
    %v2161 = vadd.f32 %v2145, %v2159
    %v2162 = vadd.f32 %v2146, %v2160
    %v2163 = vmul.f32 %v804, %v2109
    %v2164 = vmul.f32 %v804, %v2110
    %v2165 = vadd.f32 %v2149, %v2163
    %v2166 = vadd.f32 %v2150, %v2164
    %v2167 = vmul.f32 %v809, %v2109
    %v2168 = vmul.f32 %v809, %v2110
    %v2169 = vadd.f32 %v2153, %v2167
    %v2170 = vadd.f32 %v2154, %v2168
    %v2171 = vmul.f32 %v814, %v2109
    %v2172 = vmul.f32 %v814, %v2110
    %v2173 = vadd.f32 %v2157, %v2171
    %v2174 = vadd.f32 %v2158, %v2172
    %v2175 = vmul.f32 %v819, %v1783
    %v2176 = vmul.f32 %v819, %v1784
    %v2177 = vadd.f32 %v2161, %v2175
    %v2178 = vadd.f32 %v2162, %v2176
    %v2179 = vmul.f32 %v851, %v1783
    %v2180 = vmul.f32 %v851, %v1784
    %v2181 = vadd.f32 %v2165, %v2179
    %v2182 = vadd.f32 %v2166, %v2180
    %v2183 = vmul.f32 %v883, %v1783
    %v2184 = vmul.f32 %v883, %v1784
    %v2185 = vadd.f32 %v2169, %v2183
    %v2186 = vadd.f32 %v2170, %v2184
    %v2187 = vmul.f32 %v915, %v1783
    %v2188 = vmul.f32 %v915, %v1784
    %v2189 = vadd.f32 %v2173, %v2187
    %v2190 = vadd.f32 %v2174, %v2188
    %v2191 = vmul.f32 %v947, %v1785
    %v2192 = vmul.f32 %v947, %v1786
    %v2193 = vadd.f32 %v2177, %v2191
    %v2194 = vadd.f32 %v2178, %v2192
    %v2195 = vmul.f32 %v979, %v1785
    %v2196 = vmul.f32 %v979, %v1786
    %v2197 = vadd.f32 %v2181, %v2195
    %v2198 = vadd.f32 %v2182, %v2196
    %v2199 = vmul.f32 %v1011, %v1785
    %v2200 = vmul.f32 %v1011, %v1786
    %v2201 = vadd.f32 %v2185, %v2199
    %v2202 = vadd.f32 %v2186, %v2200
    %v2203 = vmul.f32 %v1043, %v1785
    %v2204 = vmul.f32 %v1043, %v1786
    %v2205 = vadd.f32 %v2189, %v2203
    %v2206 = vadd.f32 %v2190, %v2204
    %v2207 = vmul.f32 %v1075, %v1787
    %v2208 = vmul.f32 %v1075, %v1788
    %v2209 = vadd.f32 %v2193, %v2207
    %v2210 = vadd.f32 %v2194, %v2208
    %v2211 = vmul.f32 %v1107, %v1787
    %v2212 = vmul.f32 %v1107, %v1788
    %v2213 = vadd.f32 %v2197, %v2211
    %v2214 = vadd.f32 %v2198, %v2212
    %v2215 = vmul.f32 %v1139, %v1787
    %v2216 = vmul.f32 %v1139, %v1788
    %v2217 = vadd.f32 %v2201, %v2215
    %v2218 = vadd.f32 %v2202, %v2216
    %v2219 = vmul.f32 %v1171, %v1787
    %v2220 = vmul.f32 %v1171, %v1788
    %v2221 = vadd.f32 %v2205, %v2219
    %v2222 = vadd.f32 %v2206, %v2220
    %v2223 = vmul.f32 %v1203, %v1789
    %v2224 = vmul.f32 %v1203, %v1790
    %v2225 = vadd.f32 %v2209, %v2223
    %v2226 = vadd.f32 %v2210, %v2224
    %v2227 = vmul.f32 %v1235, %v1789
    %v2228 = vmul.f32 %v1235, %v1790
    %v2229 = vadd.f32 %v2213, %v2227
    %v2230 = vadd.f32 %v2214, %v2228
    %v2231 = vmul.f32 %v1267, %v1789
    %v2232 = vmul.f32 %v1267, %v1790
    %v2233 = vadd.f32 %v2217, %v2231
    %v2234 = vadd.f32 %v2218, %v2232
    %v2235 = vmul.f32 %v1299, %v1789
    %v2236 = vmul.f32 %v1299, %v1790
    %v2237 = vadd.f32 %v2221, %v2235
    %v2238 = vadd.f32 %v2222, %v2236
    %2239 = vrot.lane.b32.xlu0 %v1783, 127
    %v2240 = vpop.permute.xlu0 %2239
    %2241 = vrot.lane.b32.xlu0 %v1784, 127
    %v2242 = vpop.permute.xlu0 %2241
    %v2243 = vsel %vm1335, %v2240, %v2242
    %v2244 = vsel %vm1335, %v2242, %v2240
    %v2245 = vmul.f32 %v2243, %v224
    %v2246 = vmul.f32 %v2244, %v225
    %2247 = vrot.lane.b32.xlu0 %v1785, 127
    %v2248 = vpop.permute.xlu0 %2247
    %2249 = vrot.lane.b32.xlu0 %v1786, 127
    %v2250 = vpop.permute.xlu0 %2249
    %v2251 = vsel %vm1335, %v2248, %v2250
    %v2252 = vsel %vm1335, %v2250, %v2248
    %v2253 = vmul.f32 %v2251, %v224
    %v2254 = vmul.f32 %v2252, %v225
    %2255 = vrot.lane.b32.xlu0 %v1787, 127
    %v2256 = vpop.permute.xlu0 %2255
    %2257 = vrot.lane.b32.xlu0 %v1788, 127
    %v2258 = vpop.permute.xlu0 %2257
    %v2259 = vsel %vm1335, %v2256, %v2258
    %v2260 = vsel %vm1335, %v2258, %v2256
    %v2261 = vmul.f32 %v2259, %v224
    %v2262 = vmul.f32 %v2260, %v225
    %2263 = vrot.lane.b32.xlu0 %v1789, 127
    %v2264 = vpop.permute.xlu0 %2263
    %2265 = vrot.lane.b32.xlu0 %v1790, 127
    %v2266 = vpop.permute.xlu0 %2265
    %v2267 = vsel %vm1335, %v2264, %v2266
    %v2268 = vsel %vm1335, %v2266, %v2264
    %v2269 = vmul.f32 %v2267, %v224
    %v2270 = vmul.f32 %v2268, %v225
    %v2271 = vmul.f32 %v1364, %v2245
    %v2272 = vmul.f32 %v1364, %v2246
    %v2273 = vadd.f32 %v2225, %v2271
    %v2274 = vadd.f32 %v2226, %v2272
    %v2275 = vmul.f32 %v1369, %v2245
    %v2276 = vmul.f32 %v1369, %v2246
    %v2277 = vadd.f32 %v2229, %v2275
    %v2278 = vadd.f32 %v2230, %v2276
    %v2279 = vmul.f32 %v1374, %v2245
    %v2280 = vmul.f32 %v1374, %v2246
    %v2281 = vadd.f32 %v2233, %v2279
    %v2282 = vadd.f32 %v2234, %v2280
    %v2283 = vmul.f32 %v1379, %v2245
    %v2284 = vmul.f32 %v1379, %v2246
    %v2285 = vadd.f32 %v2237, %v2283
    %v2286 = vadd.f32 %v2238, %v2284
    %v2287 = vmul.f32 %v1384, %v2253
    %v2288 = vmul.f32 %v1384, %v2254
    %v2289 = vadd.f32 %v2273, %v2287
    %v2290 = vadd.f32 %v2274, %v2288
    %v2291 = vmul.f32 %v1389, %v2253
    %v2292 = vmul.f32 %v1389, %v2254
    %v2293 = vadd.f32 %v2277, %v2291
    %v2294 = vadd.f32 %v2278, %v2292
    %v2295 = vmul.f32 %v1394, %v2253
    %v2296 = vmul.f32 %v1394, %v2254
    %v2297 = vadd.f32 %v2281, %v2295
    %v2298 = vadd.f32 %v2282, %v2296
    %v2299 = vmul.f32 %v1399, %v2253
    %v2300 = vmul.f32 %v1399, %v2254
    %v2301 = vadd.f32 %v2285, %v2299
    %v2302 = vadd.f32 %v2286, %v2300
    %v2303 = vmul.f32 %v1404, %v2261
    %v2304 = vmul.f32 %v1404, %v2262
    %v2305 = vadd.f32 %v2289, %v2303
    %v2306 = vadd.f32 %v2290, %v2304
    %v2307 = vmul.f32 %v1409, %v2261
    %v2308 = vmul.f32 %v1409, %v2262
    %v2309 = vadd.f32 %v2293, %v2307
    %v2310 = vadd.f32 %v2294, %v2308
    %v2311 = vmul.f32 %v1414, %v2261
    %v2312 = vmul.f32 %v1414, %v2262
    %v2313 = vadd.f32 %v2297, %v2311
    %v2314 = vadd.f32 %v2298, %v2312
    %v2315 = vmul.f32 %v1419, %v2261
    %v2316 = vmul.f32 %v1419, %v2262
    %v2317 = vadd.f32 %v2301, %v2315
    %v2318 = vadd.f32 %v2302, %v2316
    %v2319 = vmul.f32 %v1424, %v2269
    %v2320 = vmul.f32 %v1424, %v2270
    %v2321 = vadd.f32 %v2305, %v2319
    %v2322 = vadd.f32 %v2306, %v2320
    %v2323 = vmul.f32 %v1429, %v2269
    %v2324 = vmul.f32 %v1429, %v2270
    %v2325 = vadd.f32 %v2309, %v2323
    %v2326 = vadd.f32 %v2310, %v2324
    %v2327 = vmul.f32 %v1434, %v2269
    %v2328 = vmul.f32 %v1434, %v2270
    %v2329 = vadd.f32 %v2313, %v2327
    %v2330 = vadd.f32 %v2314, %v2328
    %v2331 = vmul.f32 %v1439, %v2269
    %v2332 = vmul.f32 %v1439, %v2270
    %v2333 = vadd.f32 %v2317, %v2331
    %v2334 = vadd.f32 %v2318, %v2332
    %2335 = vrot.lane.b32.xlu0 %v1783, 113
    %v2336 = vpop.permute.xlu0 %2335
    %2337 = vrot.lane.b32.xlu0 %v1784, 113
    %v2338 = vpop.permute.xlu0 %2337
    %v2339 = vsel %vm1448, %v2336, %v2338
    %v2340 = vsel %vm1448, %v2338, %v2336
    %v2341 = vmul.f32 %v2339, %v232
    %v2342 = vmul.f32 %v2340, %v233
    %2343 = vrot.lane.b32.xlu0 %v1785, 113
    %v2344 = vpop.permute.xlu0 %2343
    %2345 = vrot.lane.b32.xlu0 %v1786, 113
    %v2346 = vpop.permute.xlu0 %2345
    %v2347 = vsel %vm1448, %v2344, %v2346
    %v2348 = vsel %vm1448, %v2346, %v2344
    %v2349 = vmul.f32 %v2347, %v232
    %v2350 = vmul.f32 %v2348, %v233
    %2351 = vrot.lane.b32.xlu0 %v1787, 113
    %v2352 = vpop.permute.xlu0 %2351
    %2353 = vrot.lane.b32.xlu0 %v1788, 113
    %v2354 = vpop.permute.xlu0 %2353
    %v2355 = vsel %vm1448, %v2352, %v2354
    %v2356 = vsel %vm1448, %v2354, %v2352
    %v2357 = vmul.f32 %v2355, %v232
    %v2358 = vmul.f32 %v2356, %v233
    %2359 = vrot.lane.b32.xlu0 %v1789, 113
    %v2360 = vpop.permute.xlu0 %2359
    %2361 = vrot.lane.b32.xlu0 %v1790, 113
    %v2362 = vpop.permute.xlu0 %2361
    %v2363 = vsel %vm1448, %v2360, %v2362
    %v2364 = vsel %vm1448, %v2362, %v2360
    %v2365 = vmul.f32 %v2363, %v232
    %v2366 = vmul.f32 %v2364, %v233
    %v2367 = vmul.f32 %v1477, %v2341
    %v2368 = vmul.f32 %v1477, %v2342
    %v2369 = vadd.f32 %v2321, %v2367
    %v2370 = vadd.f32 %v2322, %v2368
    %v2371 = vmul.f32 %v1482, %v2341
    %v2372 = vmul.f32 %v1482, %v2342
    %v2373 = vadd.f32 %v2325, %v2371
    %v2374 = vadd.f32 %v2326, %v2372
    %v2375 = vmul.f32 %v1487, %v2341
    %v2376 = vmul.f32 %v1487, %v2342
    %v2377 = vadd.f32 %v2329, %v2375
    %v2378 = vadd.f32 %v2330, %v2376
    %v2379 = vmul.f32 %v1492, %v2341
    %v2380 = vmul.f32 %v1492, %v2342
    %v2381 = vadd.f32 %v2333, %v2379
    %v2382 = vadd.f32 %v2334, %v2380
    %v2383 = vmul.f32 %v1497, %v2349
    %v2384 = vmul.f32 %v1497, %v2350
    %v2385 = vadd.f32 %v2369, %v2383
    %v2386 = vadd.f32 %v2370, %v2384
    %v2387 = vmul.f32 %v1502, %v2349
    %v2388 = vmul.f32 %v1502, %v2350
    %v2389 = vadd.f32 %v2373, %v2387
    %v2390 = vadd.f32 %v2374, %v2388
    %v2391 = vmul.f32 %v1507, %v2349
    %v2392 = vmul.f32 %v1507, %v2350
    %v2393 = vadd.f32 %v2377, %v2391
    %v2394 = vadd.f32 %v2378, %v2392
    %v2395 = vmul.f32 %v1512, %v2349
    %v2396 = vmul.f32 %v1512, %v2350
    %v2397 = vadd.f32 %v2381, %v2395
    %v2398 = vadd.f32 %v2382, %v2396
    %v2399 = vmul.f32 %v1517, %v2357
    %v2400 = vmul.f32 %v1517, %v2358
    %v2401 = vadd.f32 %v2385, %v2399
    %v2402 = vadd.f32 %v2386, %v2400
    %v2403 = vmul.f32 %v1522, %v2357
    %v2404 = vmul.f32 %v1522, %v2358
    %v2405 = vadd.f32 %v2389, %v2403
    %v2406 = vadd.f32 %v2390, %v2404
    %v2407 = vmul.f32 %v1527, %v2357
    %v2408 = vmul.f32 %v1527, %v2358
    %v2409 = vadd.f32 %v2393, %v2407
    %v2410 = vadd.f32 %v2394, %v2408
    %v2411 = vmul.f32 %v1532, %v2357
    %v2412 = vmul.f32 %v1532, %v2358
    %v2413 = vadd.f32 %v2397, %v2411
    %v2414 = vadd.f32 %v2398, %v2412
    %v2415 = vmul.f32 %v1537, %v2365
    %v2416 = vmul.f32 %v1537, %v2366
    %v2417 = vadd.f32 %v2401, %v2415
    %v2418 = vadd.f32 %v2402, %v2416
    %v2419 = vmul.f32 %v1542, %v2365
    %v2420 = vmul.f32 %v1542, %v2366
    %v2421 = vadd.f32 %v2405, %v2419
    %v2422 = vadd.f32 %v2406, %v2420
    %v2423 = vmul.f32 %v1547, %v2365
    %v2424 = vmul.f32 %v1547, %v2366
    %v2425 = vadd.f32 %v2409, %v2423
    %v2426 = vadd.f32 %v2410, %v2424
    %v2427 = vmul.f32 %v1552, %v2365
    %v2428 = vmul.f32 %v1552, %v2366
    %v2429 = vadd.f32 %v2413, %v2427
    %v2430 = vadd.f32 %v2414, %v2428
    %2431 = vrot.lane.b32.xlu0 %v1783, 112
    %v2432 = vpop.permute.xlu0 %2431
    %2433 = vrot.lane.b32.xlu0 %v1784, 112
    %v2434 = vpop.permute.xlu0 %2433
    %v2435 = vsel %vm1561, %v2432, %v2434
    %v2436 = vsel %vm1561, %v2434, %v2432
    %v2437 = vmul.f32 %v2435, %v236
    %v2438 = vmul.f32 %v2436, %v237
    %2439 = vrot.lane.b32.xlu0 %v1785, 112
    %v2440 = vpop.permute.xlu0 %2439
    %2441 = vrot.lane.b32.xlu0 %v1786, 112
    %v2442 = vpop.permute.xlu0 %2441
    %v2443 = vsel %vm1561, %v2440, %v2442
    %v2444 = vsel %vm1561, %v2442, %v2440
    %v2445 = vmul.f32 %v2443, %v236
    %v2446 = vmul.f32 %v2444, %v237
    %2447 = vrot.lane.b32.xlu0 %v1787, 112
    %v2448 = vpop.permute.xlu0 %2447
    %2449 = vrot.lane.b32.xlu0 %v1788, 112
    %v2450 = vpop.permute.xlu0 %2449
    %v2451 = vsel %vm1561, %v2448, %v2450
    %v2452 = vsel %vm1561, %v2450, %v2448
    %v2453 = vmul.f32 %v2451, %v236
    %v2454 = vmul.f32 %v2452, %v237
    %2455 = vrot.lane.b32.xlu0 %v1789, 112
    %v2456 = vpop.permute.xlu0 %2455
    %2457 = vrot.lane.b32.xlu0 %v1790, 112
    %v2458 = vpop.permute.xlu0 %2457
    %v2459 = vsel %vm1561, %v2456, %v2458
    %v2460 = vsel %vm1561, %v2458, %v2456
    %v2461 = vmul.f32 %v2459, %v236
    %v2462 = vmul.f32 %v2460, %v237
    %v2463 = vmul.f32 %v1590, %v2437
    %v2464 = vmul.f32 %v1590, %v2438
    %v2465 = vadd.f32 %v2417, %v2463
    %v2466 = vadd.f32 %v2418, %v2464
    %v2467 = vmul.f32 %v1595, %v2437
    %v2468 = vmul.f32 %v1595, %v2438
    %v2469 = vadd.f32 %v2421, %v2467
    %v2470 = vadd.f32 %v2422, %v2468
    %v2471 = vmul.f32 %v1600, %v2437
    %v2472 = vmul.f32 %v1600, %v2438
    %v2473 = vadd.f32 %v2425, %v2471
    %v2474 = vadd.f32 %v2426, %v2472
    %v2475 = vmul.f32 %v1605, %v2437
    %v2476 = vmul.f32 %v1605, %v2438
    %v2477 = vadd.f32 %v2429, %v2475
    %v2478 = vadd.f32 %v2430, %v2476
    %v2479 = vmul.f32 %v1610, %v2445
    %v2480 = vmul.f32 %v1610, %v2446
    %v2481 = vadd.f32 %v2465, %v2479
    %v2482 = vadd.f32 %v2466, %v2480
    %v2483 = vmul.f32 %v1615, %v2445
    %v2484 = vmul.f32 %v1615, %v2446
    %v2485 = vadd.f32 %v2469, %v2483
    %v2486 = vadd.f32 %v2470, %v2484
    %v2487 = vmul.f32 %v1620, %v2445
    %v2488 = vmul.f32 %v1620, %v2446
    %v2489 = vadd.f32 %v2473, %v2487
    %v2490 = vadd.f32 %v2474, %v2488
    %v2491 = vmul.f32 %v1625, %v2445
    %v2492 = vmul.f32 %v1625, %v2446
    %v2493 = vadd.f32 %v2477, %v2491
    %v2494 = vadd.f32 %v2478, %v2492
    %v2495 = vmul.f32 %v1630, %v2453
    %v2496 = vmul.f32 %v1630, %v2454
    %v2497 = vadd.f32 %v2481, %v2495
    %v2498 = vadd.f32 %v2482, %v2496
    %v2499 = vmul.f32 %v1635, %v2453
    %v2500 = vmul.f32 %v1635, %v2454
    %v2501 = vadd.f32 %v2485, %v2499
    %v2502 = vadd.f32 %v2486, %v2500
    %v2503 = vmul.f32 %v1640, %v2453
    %v2504 = vmul.f32 %v1640, %v2454
    %v2505 = vadd.f32 %v2489, %v2503
    %v2506 = vadd.f32 %v2490, %v2504
    %v2507 = vmul.f32 %v1645, %v2453
    %v2508 = vmul.f32 %v1645, %v2454
    %v2509 = vadd.f32 %v2493, %v2507
    %v2510 = vadd.f32 %v2494, %v2508
    %v2511 = vmul.f32 %v1650, %v2461
    %v2512 = vmul.f32 %v1650, %v2462
    %v2513 = vadd.f32 %v2497, %v2511
    %v2514 = vadd.f32 %v2498, %v2512
    %v2515 = vmul.f32 %v1655, %v2461
    %v2516 = vmul.f32 %v1655, %v2462
    %v2517 = vadd.f32 %v2501, %v2515
    %v2518 = vadd.f32 %v2502, %v2516
    %v2519 = vmul.f32 %v1660, %v2461
    %v2520 = vmul.f32 %v1660, %v2462
    %v2521 = vadd.f32 %v2505, %v2519
    %v2522 = vadd.f32 %v2506, %v2520
    %v2523 = vmul.f32 %v1665, %v2461
    %v2524 = vmul.f32 %v1665, %v2462
    %v2525 = vadd.f32 %v2509, %v2523
    %v2526 = vadd.f32 %v2510, %v2524
    %2527 = vrot.lane.b32.xlu0 %v1783, 111
    %v2528 = vpop.permute.xlu0 %2527
    %2529 = vrot.lane.b32.xlu0 %v1784, 111
    %v2530 = vpop.permute.xlu0 %2529
    %v2531 = vsel %vm1674, %v2528, %v2530
    %v2532 = vsel %vm1674, %v2530, %v2528
    %v2533 = vmul.f32 %v2531, %v242
    %v2534 = vmul.f32 %v2532, %v243
    %2535 = vrot.lane.b32.xlu0 %v1785, 111
    %v2536 = vpop.permute.xlu0 %2535
    %2537 = vrot.lane.b32.xlu0 %v1786, 111
    %v2538 = vpop.permute.xlu0 %2537
    %v2539 = vsel %vm1674, %v2536, %v2538
    %v2540 = vsel %vm1674, %v2538, %v2536
    %v2541 = vmul.f32 %v2539, %v242
    %v2542 = vmul.f32 %v2540, %v243
    %2543 = vrot.lane.b32.xlu0 %v1787, 111
    %v2544 = vpop.permute.xlu0 %2543
    %2545 = vrot.lane.b32.xlu0 %v1788, 111
    %v2546 = vpop.permute.xlu0 %2545
    %v2547 = vsel %vm1674, %v2544, %v2546
    %v2548 = vsel %vm1674, %v2546, %v2544
    %v2549 = vmul.f32 %v2547, %v242
    %v2550 = vmul.f32 %v2548, %v243
    %2551 = vrot.lane.b32.xlu0 %v1789, 111
    %v2552 = vpop.permute.xlu0 %2551
    %2553 = vrot.lane.b32.xlu0 %v1790, 111
    %v2554 = vpop.permute.xlu0 %2553
    %v2555 = vsel %vm1674, %v2552, %v2554
    %v2556 = vsel %vm1674, %v2554, %v2552
    %v2557 = vmul.f32 %v2555, %v242
    %v2558 = vmul.f32 %v2556, %v243
    %v2559 = vmul.f32 %v1703, %v2533
    %v2560 = vmul.f32 %v1703, %v2534
    %v2561 = vadd.f32 %v2513, %v2559
    %v2562 = vadd.f32 %v2514, %v2560
    %v2563 = vmul.f32 %v1708, %v2533
    %v2564 = vmul.f32 %v1708, %v2534
    %v2565 = vadd.f32 %v2517, %v2563
    %v2566 = vadd.f32 %v2518, %v2564
    %v2567 = vmul.f32 %v1713, %v2533
    %v2568 = vmul.f32 %v1713, %v2534
    %v2569 = vadd.f32 %v2521, %v2567
    %v2570 = vadd.f32 %v2522, %v2568
    %v2571 = vmul.f32 %v1718, %v2533
    %v2572 = vmul.f32 %v1718, %v2534
    %v2573 = vadd.f32 %v2525, %v2571
    %v2574 = vadd.f32 %v2526, %v2572
    %v2575 = vmul.f32 %v1723, %v2541
    %v2576 = vmul.f32 %v1723, %v2542
    %v2577 = vadd.f32 %v2561, %v2575
    %v2578 = vadd.f32 %v2562, %v2576
    %v2579 = vmul.f32 %v1728, %v2541
    %v2580 = vmul.f32 %v1728, %v2542
    %v2581 = vadd.f32 %v2565, %v2579
    %v2582 = vadd.f32 %v2566, %v2580
    %v2583 = vmul.f32 %v1733, %v2541
    %v2584 = vmul.f32 %v1733, %v2542
    %v2585 = vadd.f32 %v2569, %v2583
    %v2586 = vadd.f32 %v2570, %v2584
    %v2587 = vmul.f32 %v1738, %v2541
    %v2588 = vmul.f32 %v1738, %v2542
    %v2589 = vadd.f32 %v2573, %v2587
    %v2590 = vadd.f32 %v2574, %v2588
    %v2591 = vmul.f32 %v1743, %v2549
    %v2592 = vmul.f32 %v1743, %v2550
    %v2593 = vadd.f32 %v2577, %v2591
    %v2594 = vadd.f32 %v2578, %v2592
    %v2595 = vmul.f32 %v1748, %v2549
    %v2596 = vmul.f32 %v1748, %v2550
    %v2597 = vadd.f32 %v2581, %v2595
    %v2598 = vadd.f32 %v2582, %v2596
    %v2599 = vmul.f32 %v1753, %v2549
    %v2600 = vmul.f32 %v1753, %v2550
    %v2601 = vadd.f32 %v2585, %v2599
    %v2602 = vadd.f32 %v2586, %v2600
    %v2603 = vmul.f32 %v1758, %v2549
    %v2604 = vmul.f32 %v1758, %v2550
    %v2605 = vadd.f32 %v2589, %v2603
    %v2606 = vadd.f32 %v2590, %v2604
    %v2607 = vmul.f32 %v1763, %v2557
    %v2608 = vmul.f32 %v1763, %v2558
    %v2609 = vadd.f32 %v2593, %v2607
    %v2610 = vadd.f32 %v2594, %v2608
    %v2611 = vmul.f32 %v1768, %v2557
    %v2612 = vmul.f32 %v1768, %v2558
    %v2613 = vadd.f32 %v2597, %v2611
    %v2614 = vadd.f32 %v2598, %v2612
    %v2615 = vmul.f32 %v1773, %v2557
    %v2616 = vmul.f32 %v1773, %v2558
    %v2617 = vadd.f32 %v2601, %v2615
    %v2618 = vadd.f32 %v2602, %v2616
    %v2619 = vmul.f32 %v1778, %v2557
    %v2620 = vmul.f32 %v1778, %v2558
    %v2621 = vadd.f32 %v2605, %v2619
    %v2622 = vadd.f32 %v2606, %v2620
    %v2623 = vmax.f32 %v2609, 0.0
    %v2624 = vmax.f32 %v2610, 0.0
    %v2625 = vmax.f32 %v2613, 0.0
    %v2626 = vmax.f32 %v2614, 0.0
    %v2627 = vmax.f32 %v2617, 0.0
    %v2628 = vmax.f32 %v2618, 0.0
    %v2629 = vmax.f32 %v2621, 0.0
    %v2630 = vmax.f32 %v2622, 0.0
    %2631 = vrot.lane.b32.xlu0 %v2623, 17
    %v2632 = vpop.permute.xlu0 %2631
    %2633 = vrot.lane.b32.xlu0 %v2624, 17
    %v2634 = vpop.permute.xlu0 %2633
    %v2635 = vsel %vm290, %v2632, %v2634
    %v2636 = vsel %vm290, %v2634, %v2632
    %v2637 = vmul.f32 %v2636, %v204
    %v2638 = vmul.f32 %v2635, %v205
    %2639 = vrot.lane.b32.xlu0 %v2625, 17
    %v2640 = vpop.permute.xlu0 %2639
    %2641 = vrot.lane.b32.xlu0 %v2626, 17
    %v2642 = vpop.permute.xlu0 %2641
    %v2643 = vsel %vm290, %v2640, %v2642
    %v2644 = vsel %vm290, %v2642, %v2640
    %v2645 = vmul.f32 %v2644, %v204
    %v2646 = vmul.f32 %v2643, %v205
    %2647 = vrot.lane.b32.xlu0 %v2627, 17
    %v2648 = vpop.permute.xlu0 %2647
    %2649 = vrot.lane.b32.xlu0 %v2628, 17
    %v2650 = vpop.permute.xlu0 %2649
    %v2651 = vsel %vm290, %v2648, %v2650
    %v2652 = vsel %vm290, %v2650, %v2648
    %v2653 = vmul.f32 %v2652, %v204
    %v2654 = vmul.f32 %v2651, %v205
    %2655 = vrot.lane.b32.xlu0 %v2629, 17
    %v2656 = vpop.permute.xlu0 %2655
    %2657 = vrot.lane.b32.xlu0 %v2630, 17
    %v2658 = vpop.permute.xlu0 %2657
    %v2659 = vsel %vm290, %v2656, %v2658
    %v2660 = vsel %vm290, %v2658, %v2656
    %v2661 = vmul.f32 %v2660, %v204
    %v2662 = vmul.f32 %v2659, %v205
    %v2663 = vmul.f32 %v400, %v2637
    %v2664 = vmul.f32 %v400, %v2638
    %v2665 = vadd.f32 %v184, %v2663
    %v2666 = vadd.f32 %v184, %v2664
    %v2667 = vmul.f32 %v405, %v2637
    %v2668 = vmul.f32 %v405, %v2638
    %v2669 = vadd.f32 %v186, %v2667
    %v2670 = vadd.f32 %v186, %v2668
    %v2671 = vmul.f32 %v410, %v2637
    %v2672 = vmul.f32 %v410, %v2638
    %v2673 = vadd.f32 %v188, %v2671
    %v2674 = vadd.f32 %v188, %v2672
    %v2675 = vmul.f32 %v415, %v2637
    %v2676 = vmul.f32 %v415, %v2638
    %v2677 = vadd.f32 %v190, %v2675
    %v2678 = vadd.f32 %v190, %v2676
    %v2679 = vmul.f32 %v420, %v2645
    %v2680 = vmul.f32 %v420, %v2646
    %v2681 = vadd.f32 %v2665, %v2679
    %v2682 = vadd.f32 %v2666, %v2680
    %v2683 = vmul.f32 %v425, %v2645
    %v2684 = vmul.f32 %v425, %v2646
    %v2685 = vadd.f32 %v2669, %v2683
    %v2686 = vadd.f32 %v2670, %v2684
    %v2687 = vmul.f32 %v430, %v2645
    %v2688 = vmul.f32 %v430, %v2646
    %v2689 = vadd.f32 %v2673, %v2687
    %v2690 = vadd.f32 %v2674, %v2688
    %v2691 = vmul.f32 %v435, %v2645
    %v2692 = vmul.f32 %v435, %v2646
    %v2693 = vadd.f32 %v2677, %v2691
    %v2694 = vadd.f32 %v2678, %v2692
    %v2695 = vmul.f32 %v440, %v2653
    %v2696 = vmul.f32 %v440, %v2654
    %v2697 = vadd.f32 %v2681, %v2695
    %v2698 = vadd.f32 %v2682, %v2696
    %v2699 = vmul.f32 %v445, %v2653
    %v2700 = vmul.f32 %v445, %v2654
    %v2701 = vadd.f32 %v2685, %v2699
    %v2702 = vadd.f32 %v2686, %v2700
    %v2703 = vmul.f32 %v450, %v2653
    %v2704 = vmul.f32 %v450, %v2654
    %v2705 = vadd.f32 %v2689, %v2703
    %v2706 = vadd.f32 %v2690, %v2704
    %v2707 = vmul.f32 %v455, %v2653
    %v2708 = vmul.f32 %v455, %v2654
    %v2709 = vadd.f32 %v2693, %v2707
    %v2710 = vadd.f32 %v2694, %v2708
    %v2711 = vmul.f32 %v460, %v2661
    %v2712 = vmul.f32 %v460, %v2662
    %v2713 = vadd.f32 %v2697, %v2711
    %v2714 = vadd.f32 %v2698, %v2712
    %v2715 = vmul.f32 %v465, %v2661
    %v2716 = vmul.f32 %v465, %v2662
    %v2717 = vadd.f32 %v2701, %v2715
    %v2718 = vadd.f32 %v2702, %v2716
    %v2719 = vmul.f32 %v470, %v2661
    %v2720 = vmul.f32 %v470, %v2662
    %v2721 = vadd.f32 %v2705, %v2719
    %v2722 = vadd.f32 %v2706, %v2720
    %v2723 = vmul.f32 %v475, %v2661
    %v2724 = vmul.f32 %v475, %v2662
    %v2725 = vadd.f32 %v2709, %v2723
    %v2726 = vadd.f32 %v2710, %v2724
    %2727 = vrot.lane.b32.xlu0 %v2623, 16
    %v2728 = vpop.permute.xlu0 %2727
    %2729 = vrot.lane.b32.xlu0 %v2624, 16
    %v2730 = vpop.permute.xlu0 %2729
    %v2731 = vsel %vm484, %v2728, %v2730
    %v2732 = vsel %vm484, %v2730, %v2728
    %v2733 = vmul.f32 %v2732, %v208
    %v2734 = vmul.f32 %v2731, %v209
    %2735 = vrot.lane.b32.xlu0 %v2625, 16
    %v2736 = vpop.permute.xlu0 %2735
    %2737 = vrot.lane.b32.xlu0 %v2626, 16
    %v2738 = vpop.permute.xlu0 %2737
    %v2739 = vsel %vm484, %v2736, %v2738
    %v2740 = vsel %vm484, %v2738, %v2736
    %v2741 = vmul.f32 %v2740, %v208
    %v2742 = vmul.f32 %v2739, %v209
    %2743 = vrot.lane.b32.xlu0 %v2627, 16
    %v2744 = vpop.permute.xlu0 %2743
    %2745 = vrot.lane.b32.xlu0 %v2628, 16
    %v2746 = vpop.permute.xlu0 %2745
    %v2747 = vsel %vm484, %v2744, %v2746
    %v2748 = vsel %vm484, %v2746, %v2744
    %v2749 = vmul.f32 %v2748, %v208
    %v2750 = vmul.f32 %v2747, %v209
    %2751 = vrot.lane.b32.xlu0 %v2629, 16
    %v2752 = vpop.permute.xlu0 %2751
    %2753 = vrot.lane.b32.xlu0 %v2630, 16
    %v2754 = vpop.permute.xlu0 %2753
    %v2755 = vsel %vm484, %v2752, %v2754
    %v2756 = vsel %vm484, %v2754, %v2752
    %v2757 = vmul.f32 %v2756, %v208
    %v2758 = vmul.f32 %v2755, %v209
    %v2759 = vmul.f32 %v513, %v2733
    %v2760 = vmul.f32 %v513, %v2734
    %v2761 = vadd.f32 %v2713, %v2759
    %v2762 = vadd.f32 %v2714, %v2760
    %v2763 = vmul.f32 %v518, %v2733
    %v2764 = vmul.f32 %v518, %v2734
    %v2765 = vadd.f32 %v2717, %v2763
    %v2766 = vadd.f32 %v2718, %v2764
    %v2767 = vmul.f32 %v523, %v2733
    %v2768 = vmul.f32 %v523, %v2734
    %v2769 = vadd.f32 %v2721, %v2767
    %v2770 = vadd.f32 %v2722, %v2768
    %v2771 = vmul.f32 %v528, %v2733
    %v2772 = vmul.f32 %v528, %v2734
    %v2773 = vadd.f32 %v2725, %v2771
    %v2774 = vadd.f32 %v2726, %v2772
    %v2775 = vmul.f32 %v533, %v2741
    %v2776 = vmul.f32 %v533, %v2742
    %v2777 = vadd.f32 %v2761, %v2775
    %v2778 = vadd.f32 %v2762, %v2776
    %v2779 = vmul.f32 %v538, %v2741
    %v2780 = vmul.f32 %v538, %v2742
    %v2781 = vadd.f32 %v2765, %v2779
    %v2782 = vadd.f32 %v2766, %v2780
    %v2783 = vmul.f32 %v543, %v2741
    %v2784 = vmul.f32 %v543, %v2742
    %v2785 = vadd.f32 %v2769, %v2783
    %v2786 = vadd.f32 %v2770, %v2784
    %v2787 = vmul.f32 %v548, %v2741
    %v2788 = vmul.f32 %v548, %v2742
    %v2789 = vadd.f32 %v2773, %v2787
    %v2790 = vadd.f32 %v2774, %v2788
    %v2791 = vmul.f32 %v553, %v2749
    %v2792 = vmul.f32 %v553, %v2750
    %v2793 = vadd.f32 %v2777, %v2791
    %v2794 = vadd.f32 %v2778, %v2792
    %v2795 = vmul.f32 %v558, %v2749
    %v2796 = vmul.f32 %v558, %v2750
    %v2797 = vadd.f32 %v2781, %v2795
    %v2798 = vadd.f32 %v2782, %v2796
    %v2799 = vmul.f32 %v563, %v2749
    %v2800 = vmul.f32 %v563, %v2750
    %v2801 = vadd.f32 %v2785, %v2799
    %v2802 = vadd.f32 %v2786, %v2800
    %v2803 = vmul.f32 %v568, %v2749
    %v2804 = vmul.f32 %v568, %v2750
    %v2805 = vadd.f32 %v2789, %v2803
    %v2806 = vadd.f32 %v2790, %v2804
    %v2807 = vmul.f32 %v573, %v2757
    %v2808 = vmul.f32 %v573, %v2758
    %v2809 = vadd.f32 %v2793, %v2807
    %v2810 = vadd.f32 %v2794, %v2808
    %v2811 = vmul.f32 %v578, %v2757
    %v2812 = vmul.f32 %v578, %v2758
    %v2813 = vadd.f32 %v2797, %v2811
    %v2814 = vadd.f32 %v2798, %v2812
    %v2815 = vmul.f32 %v583, %v2757
    %v2816 = vmul.f32 %v583, %v2758
    %v2817 = vadd.f32 %v2801, %v2815
    %v2818 = vadd.f32 %v2802, %v2816
    %v2819 = vmul.f32 %v588, %v2757
    %v2820 = vmul.f32 %v588, %v2758
    %v2821 = vadd.f32 %v2805, %v2819
    %v2822 = vadd.f32 %v2806, %v2820
    %2823 = vrot.lane.b32.xlu0 %v2623, 15
    %v2824 = vpop.permute.xlu0 %2823
    %2825 = vrot.lane.b32.xlu0 %v2624, 15
    %v2826 = vpop.permute.xlu0 %2825
    %v2827 = vsel %vm597, %v2824, %v2826
    %v2828 = vsel %vm597, %v2826, %v2824
    %v2829 = vmul.f32 %v2828, %v216
    %v2830 = vmul.f32 %v2827, %v217
    %2831 = vrot.lane.b32.xlu0 %v2625, 15
    %v2832 = vpop.permute.xlu0 %2831
    %2833 = vrot.lane.b32.xlu0 %v2626, 15
    %v2834 = vpop.permute.xlu0 %2833
    %v2835 = vsel %vm597, %v2832, %v2834
    %v2836 = vsel %vm597, %v2834, %v2832
    %v2837 = vmul.f32 %v2836, %v216
    %v2838 = vmul.f32 %v2835, %v217
    %2839 = vrot.lane.b32.xlu0 %v2627, 15
    %v2840 = vpop.permute.xlu0 %2839
    %2841 = vrot.lane.b32.xlu0 %v2628, 15
    %v2842 = vpop.permute.xlu0 %2841
    %v2843 = vsel %vm597, %v2840, %v2842
    %v2844 = vsel %vm597, %v2842, %v2840
    %v2845 = vmul.f32 %v2844, %v216
    %v2846 = vmul.f32 %v2843, %v217
    %2847 = vrot.lane.b32.xlu0 %v2629, 15
    %v2848 = vpop.permute.xlu0 %2847
    %2849 = vrot.lane.b32.xlu0 %v2630, 15
    %v2850 = vpop.permute.xlu0 %2849
    %v2851 = vsel %vm597, %v2848, %v2850
    %v2852 = vsel %vm597, %v2850, %v2848
    %v2853 = vmul.f32 %v2852, %v216
    %v2854 = vmul.f32 %v2851, %v217
    %v2855 = vmul.f32 %v626, %v2829
    %v2856 = vmul.f32 %v626, %v2830
    %v2857 = vadd.f32 %v2809, %v2855
    %v2858 = vadd.f32 %v2810, %v2856
    %v2859 = vmul.f32 %v631, %v2829
    %v2860 = vmul.f32 %v631, %v2830
    %v2861 = vadd.f32 %v2813, %v2859
    %v2862 = vadd.f32 %v2814, %v2860
    %v2863 = vmul.f32 %v636, %v2829
    %v2864 = vmul.f32 %v636, %v2830
    %v2865 = vadd.f32 %v2817, %v2863
    %v2866 = vadd.f32 %v2818, %v2864
    %v2867 = vmul.f32 %v641, %v2829
    %v2868 = vmul.f32 %v641, %v2830
    %v2869 = vadd.f32 %v2821, %v2867
    %v2870 = vadd.f32 %v2822, %v2868
    %v2871 = vmul.f32 %v646, %v2837
    %v2872 = vmul.f32 %v646, %v2838
    %v2873 = vadd.f32 %v2857, %v2871
    %v2874 = vadd.f32 %v2858, %v2872
    %v2875 = vmul.f32 %v651, %v2837
    %v2876 = vmul.f32 %v651, %v2838
    %v2877 = vadd.f32 %v2861, %v2875
    %v2878 = vadd.f32 %v2862, %v2876
    %v2879 = vmul.f32 %v656, %v2837
    %v2880 = vmul.f32 %v656, %v2838
    %v2881 = vadd.f32 %v2865, %v2879
    %v2882 = vadd.f32 %v2866, %v2880
    %v2883 = vmul.f32 %v661, %v2837
    %v2884 = vmul.f32 %v661, %v2838
    %v2885 = vadd.f32 %v2869, %v2883
    %v2886 = vadd.f32 %v2870, %v2884
    %v2887 = vmul.f32 %v666, %v2845
    %v2888 = vmul.f32 %v666, %v2846
    %v2889 = vadd.f32 %v2873, %v2887
    %v2890 = vadd.f32 %v2874, %v2888
    %v2891 = vmul.f32 %v671, %v2845
    %v2892 = vmul.f32 %v671, %v2846
    %v2893 = vadd.f32 %v2877, %v2891
    %v2894 = vadd.f32 %v2878, %v2892
    %v2895 = vmul.f32 %v676, %v2845
    %v2896 = vmul.f32 %v676, %v2846
    %v2897 = vadd.f32 %v2881, %v2895
    %v2898 = vadd.f32 %v2882, %v2896
    %v2899 = vmul.f32 %v681, %v2845
    %v2900 = vmul.f32 %v681, %v2846
    %v2901 = vadd.f32 %v2885, %v2899
    %v2902 = vadd.f32 %v2886, %v2900
    %v2903 = vmul.f32 %v686, %v2853
    %v2904 = vmul.f32 %v686, %v2854
    %v2905 = vadd.f32 %v2889, %v2903
    %v2906 = vadd.f32 %v2890, %v2904
    %v2907 = vmul.f32 %v691, %v2853
    %v2908 = vmul.f32 %v691, %v2854
    %v2909 = vadd.f32 %v2893, %v2907
    %v2910 = vadd.f32 %v2894, %v2908
    %v2911 = vmul.f32 %v696, %v2853
    %v2912 = vmul.f32 %v696, %v2854
    %v2913 = vadd.f32 %v2897, %v2911
    %v2914 = vadd.f32 %v2898, %v2912
    %v2915 = vmul.f32 %v701, %v2853
    %v2916 = vmul.f32 %v701, %v2854
    %v2917 = vadd.f32 %v2901, %v2915
    %v2918 = vadd.f32 %v2902, %v2916
    %2919 = vrot.lane.b32.xlu0 %v2623, 1
    %v2920 = vpop.permute.xlu0 %2919
    %2921 = vrot.lane.b32.xlu0 %v2624, 1
    %v2922 = vpop.permute.xlu0 %2921
    %v2923 = vsel %vm710, %v2920, %v2922
    %v2924 = vsel %vm710, %v2922, %v2920
    %v2925 = vmul.f32 %v2924, %v220
    %v2926 = vmul.f32 %v2923, %v221
    %2927 = vrot.lane.b32.xlu0 %v2625, 1
    %v2928 = vpop.permute.xlu0 %2927
    %2929 = vrot.lane.b32.xlu0 %v2626, 1
    %v2930 = vpop.permute.xlu0 %2929
    %v2931 = vsel %vm710, %v2928, %v2930
    %v2932 = vsel %vm710, %v2930, %v2928
    %v2933 = vmul.f32 %v2932, %v220
    %v2934 = vmul.f32 %v2931, %v221
    %2935 = vrot.lane.b32.xlu0 %v2627, 1
    %v2936 = vpop.permute.xlu0 %2935
    %2937 = vrot.lane.b32.xlu0 %v2628, 1
    %v2938 = vpop.permute.xlu0 %2937
    %v2939 = vsel %vm710, %v2936, %v2938
    %v2940 = vsel %vm710, %v2938, %v2936
    %v2941 = vmul.f32 %v2940, %v220
    %v2942 = vmul.f32 %v2939, %v221
    %2943 = vrot.lane.b32.xlu0 %v2629, 1
    %v2944 = vpop.permute.xlu0 %2943
    %2945 = vrot.lane.b32.xlu0 %v2630, 1
    %v2946 = vpop.permute.xlu0 %2945
    %v2947 = vsel %vm710, %v2944, %v2946
    %v2948 = vsel %vm710, %v2946, %v2944
    %v2949 = vmul.f32 %v2948, %v220
    %v2950 = vmul.f32 %v2947, %v221
    %v2951 = vmul.f32 %v739, %v2925
    %v2952 = vmul.f32 %v739, %v2926
    %v2953 = vadd.f32 %v2905, %v2951
    %v2954 = vadd.f32 %v2906, %v2952
    %v2955 = vmul.f32 %v744, %v2925
    %v2956 = vmul.f32 %v744, %v2926
    %v2957 = vadd.f32 %v2909, %v2955
    %v2958 = vadd.f32 %v2910, %v2956
    %v2959 = vmul.f32 %v749, %v2925
    %v2960 = vmul.f32 %v749, %v2926
    %v2961 = vadd.f32 %v2913, %v2959
    %v2962 = vadd.f32 %v2914, %v2960
    %v2963 = vmul.f32 %v754, %v2925
    %v2964 = vmul.f32 %v754, %v2926
    %v2965 = vadd.f32 %v2917, %v2963
    %v2966 = vadd.f32 %v2918, %v2964
    %v2967 = vmul.f32 %v759, %v2933
    %v2968 = vmul.f32 %v759, %v2934
    %v2969 = vadd.f32 %v2953, %v2967
    %v2970 = vadd.f32 %v2954, %v2968
    %v2971 = vmul.f32 %v764, %v2933
    %v2972 = vmul.f32 %v764, %v2934
    %v2973 = vadd.f32 %v2957, %v2971
    %v2974 = vadd.f32 %v2958, %v2972
    %v2975 = vmul.f32 %v769, %v2933
    %v2976 = vmul.f32 %v769, %v2934
    %v2977 = vadd.f32 %v2961, %v2975
    %v2978 = vadd.f32 %v2962, %v2976
    %v2979 = vmul.f32 %v774, %v2933
    %v2980 = vmul.f32 %v774, %v2934
    %v2981 = vadd.f32 %v2965, %v2979
    %v2982 = vadd.f32 %v2966, %v2980
    %v2983 = vmul.f32 %v779, %v2941
    %v2984 = vmul.f32 %v779, %v2942
    %v2985 = vadd.f32 %v2969, %v2983
    %v2986 = vadd.f32 %v2970, %v2984
    %v2987 = vmul.f32 %v784, %v2941
    %v2988 = vmul.f32 %v784, %v2942
    %v2989 = vadd.f32 %v2973, %v2987
    %v2990 = vadd.f32 %v2974, %v2988
    %v2991 = vmul.f32 %v789, %v2941
    %v2992 = vmul.f32 %v789, %v2942
    %v2993 = vadd.f32 %v2977, %v2991
    %v2994 = vadd.f32 %v2978, %v2992
    %v2995 = vmul.f32 %v794, %v2941
    %v2996 = vmul.f32 %v794, %v2942
    %v2997 = vadd.f32 %v2981, %v2995
    %v2998 = vadd.f32 %v2982, %v2996
    %v2999 = vmul.f32 %v799, %v2949
    %v3000 = vmul.f32 %v799, %v2950
    %v3001 = vadd.f32 %v2985, %v2999
    %v3002 = vadd.f32 %v2986, %v3000
    %v3003 = vmul.f32 %v804, %v2949
    %v3004 = vmul.f32 %v804, %v2950
    %v3005 = vadd.f32 %v2989, %v3003
    %v3006 = vadd.f32 %v2990, %v3004
    %v3007 = vmul.f32 %v809, %v2949
    %v3008 = vmul.f32 %v809, %v2950
    %v3009 = vadd.f32 %v2993, %v3007
    %v3010 = vadd.f32 %v2994, %v3008
    %v3011 = vmul.f32 %v814, %v2949
    %v3012 = vmul.f32 %v814, %v2950
    %v3013 = vadd.f32 %v2997, %v3011
    %v3014 = vadd.f32 %v2998, %v3012
    %v3015 = vmul.f32 %v819, %v2623
    %v3016 = vmul.f32 %v819, %v2624
    %v3017 = vadd.f32 %v3001, %v3015
    %v3018 = vadd.f32 %v3002, %v3016
    %v3019 = vmul.f32 %v851, %v2623
    %v3020 = vmul.f32 %v851, %v2624
    %v3021 = vadd.f32 %v3005, %v3019
    %v3022 = vadd.f32 %v3006, %v3020
    %v3023 = vmul.f32 %v883, %v2623
    %v3024 = vmul.f32 %v883, %v2624
    %v3025 = vadd.f32 %v3009, %v3023
    %v3026 = vadd.f32 %v3010, %v3024
    %v3027 = vmul.f32 %v915, %v2623
    %v3028 = vmul.f32 %v915, %v2624
    %v3029 = vadd.f32 %v3013, %v3027
    %v3030 = vadd.f32 %v3014, %v3028
    %v3031 = vmul.f32 %v947, %v2625
    %v3032 = vmul.f32 %v947, %v2626
    %v3033 = vadd.f32 %v3017, %v3031
    %v3034 = vadd.f32 %v3018, %v3032
    %v3035 = vmul.f32 %v979, %v2625
    %v3036 = vmul.f32 %v979, %v2626
    %v3037 = vadd.f32 %v3021, %v3035
    %v3038 = vadd.f32 %v3022, %v3036
    %v3039 = vmul.f32 %v1011, %v2625
    %v3040 = vmul.f32 %v1011, %v2626
    %v3041 = vadd.f32 %v3025, %v3039
    %v3042 = vadd.f32 %v3026, %v3040
    %v3043 = vmul.f32 %v1043, %v2625
    %v3044 = vmul.f32 %v1043, %v2626
    %v3045 = vadd.f32 %v3029, %v3043
    %v3046 = vadd.f32 %v3030, %v3044
    %v3047 = vmul.f32 %v1075, %v2627
    %v3048 = vmul.f32 %v1075, %v2628
    %v3049 = vadd.f32 %v3033, %v3047
    %v3050 = vadd.f32 %v3034, %v3048
    %v3051 = vmul.f32 %v1107, %v2627
    %v3052 = vmul.f32 %v1107, %v2628
    %v3053 = vadd.f32 %v3037, %v3051
    %v3054 = vadd.f32 %v3038, %v3052
    %v3055 = vmul.f32 %v1139, %v2627
    %v3056 = vmul.f32 %v1139, %v2628
    %v3057 = vadd.f32 %v3041, %v3055
    %v3058 = vadd.f32 %v3042, %v3056
    %v3059 = vmul.f32 %v1171, %v2627
    %v3060 = vmul.f32 %v1171, %v2628
    %v3061 = vadd.f32 %v3045, %v3059
    %v3062 = vadd.f32 %v3046, %v3060
    %v3063 = vmul.f32 %v1203, %v2629
    %v3064 = vmul.f32 %v1203, %v2630
    %v3065 = vadd.f32 %v3049, %v3063
    %v3066 = vadd.f32 %v3050, %v3064
    %v3067 = vmul.f32 %v1235, %v2629
    %v3068 = vmul.f32 %v1235, %v2630
    %v3069 = vadd.f32 %v3053, %v3067
    %v3070 = vadd.f32 %v3054, %v3068
    %v3071 = vmul.f32 %v1267, %v2629
    %v3072 = vmul.f32 %v1267, %v2630
    %v3073 = vadd.f32 %v3057, %v3071
    %v3074 = vadd.f32 %v3058, %v3072
    %v3075 = vmul.f32 %v1299, %v2629
    %v3076 = vmul.f32 %v1299, %v2630
    %v3077 = vadd.f32 %v3061, %v3075
    %v3078 = vadd.f32 %v3062, %v3076
    %3079 = vrot.lane.b32.xlu0 %v2623, 127
    %v3080 = vpop.permute.xlu0 %3079
    %3081 = vrot.lane.b32.xlu0 %v2624, 127
    %v3082 = vpop.permute.xlu0 %3081
    %v3083 = vsel %vm1335, %v3080, %v3082
    %v3084 = vsel %vm1335, %v3082, %v3080
    %v3085 = vmul.f32 %v3083, %v224
    %v3086 = vmul.f32 %v3084, %v225
    %3087 = vrot.lane.b32.xlu0 %v2625, 127
    %v3088 = vpop.permute.xlu0 %3087
    %3089 = vrot.lane.b32.xlu0 %v2626, 127
    %v3090 = vpop.permute.xlu0 %3089
    %v3091 = vsel %vm1335, %v3088, %v3090
    %v3092 = vsel %vm1335, %v3090, %v3088
    %v3093 = vmul.f32 %v3091, %v224
    %v3094 = vmul.f32 %v3092, %v225
    %3095 = vrot.lane.b32.xlu0 %v2627, 127
    %v3096 = vpop.permute.xlu0 %3095
    %3097 = vrot.lane.b32.xlu0 %v2628, 127
    %v3098 = vpop.permute.xlu0 %3097
    %v3099 = vsel %vm1335, %v3096, %v3098
    %v3100 = vsel %vm1335, %v3098, %v3096
    %v3101 = vmul.f32 %v3099, %v224
    %v3102 = vmul.f32 %v3100, %v225
    %3103 = vrot.lane.b32.xlu0 %v2629, 127
    %v3104 = vpop.permute.xlu0 %3103
    %3105 = vrot.lane.b32.xlu0 %v2630, 127
    %v3106 = vpop.permute.xlu0 %3105
    %v3107 = vsel %vm1335, %v3104, %v3106
    %v3108 = vsel %vm1335, %v3106, %v3104
    %v3109 = vmul.f32 %v3107, %v224
    %v3110 = vmul.f32 %v3108, %v225
    %v3111 = vmul.f32 %v1364, %v3085
    %v3112 = vmul.f32 %v1364, %v3086
    %v3113 = vadd.f32 %v3065, %v3111
    %v3114 = vadd.f32 %v3066, %v3112
    %v3115 = vmul.f32 %v1369, %v3085
    %v3116 = vmul.f32 %v1369, %v3086
    %v3117 = vadd.f32 %v3069, %v3115
    %v3118 = vadd.f32 %v3070, %v3116
    %v3119 = vmul.f32 %v1374, %v3085
    %v3120 = vmul.f32 %v1374, %v3086
    %v3121 = vadd.f32 %v3073, %v3119
    %v3122 = vadd.f32 %v3074, %v3120
    %v3123 = vmul.f32 %v1379, %v3085
    %v3124 = vmul.f32 %v1379, %v3086
    %v3125 = vadd.f32 %v3077, %v3123
    %v3126 = vadd.f32 %v3078, %v3124
    %v3127 = vmul.f32 %v1384, %v3093
    %v3128 = vmul.f32 %v1384, %v3094
    %v3129 = vadd.f32 %v3113, %v3127
    %v3130 = vadd.f32 %v3114, %v3128
    %v3131 = vmul.f32 %v1389, %v3093
    %v3132 = vmul.f32 %v1389, %v3094
    %v3133 = vadd.f32 %v3117, %v3131
    %v3134 = vadd.f32 %v3118, %v3132
    %v3135 = vmul.f32 %v1394, %v3093
    %v3136 = vmul.f32 %v1394, %v3094
    %v3137 = vadd.f32 %v3121, %v3135
    %v3138 = vadd.f32 %v3122, %v3136
    %v3139 = vmul.f32 %v1399, %v3093
    %v3140 = vmul.f32 %v1399, %v3094
    %v3141 = vadd.f32 %v3125, %v3139
    %v3142 = vadd.f32 %v3126, %v3140
    %v3143 = vmul.f32 %v1404, %v3101
    %v3144 = vmul.f32 %v1404, %v3102
    %v3145 = vadd.f32 %v3129, %v3143
    %v3146 = vadd.f32 %v3130, %v3144
    %v3147 = vmul.f32 %v1409, %v3101
    %v3148 = vmul.f32 %v1409, %v3102
    %v3149 = vadd.f32 %v3133, %v3147
    %v3150 = vadd.f32 %v3134, %v3148
    %v3151 = vmul.f32 %v1414, %v3101
    %v3152 = vmul.f32 %v1414, %v3102
    %v3153 = vadd.f32 %v3137, %v3151
    %v3154 = vadd.f32 %v3138, %v3152
    %v3155 = vmul.f32 %v1419, %v3101
    %v3156 = vmul.f32 %v1419, %v3102
    %v3157 = vadd.f32 %v3141, %v3155
    %v3158 = vadd.f32 %v3142, %v3156
    %v3159 = vmul.f32 %v1424, %v3109
    %v3160 = vmul.f32 %v1424, %v3110
    %v3161 = vadd.f32 %v3145, %v3159
    %v3162 = vadd.f32 %v3146, %v3160
    %v3163 = vmul.f32 %v1429, %v3109
    %v3164 = vmul.f32 %v1429, %v3110
    %v3165 = vadd.f32 %v3149, %v3163
    %v3166 = vadd.f32 %v3150, %v3164
    %v3167 = vmul.f32 %v1434, %v3109
    %v3168 = vmul.f32 %v1434, %v3110
    %v3169 = vadd.f32 %v3153, %v3167
    %v3170 = vadd.f32 %v3154, %v3168
    %v3171 = vmul.f32 %v1439, %v3109
    %v3172 = vmul.f32 %v1439, %v3110
    %v3173 = vadd.f32 %v3157, %v3171
    %v3174 = vadd.f32 %v3158, %v3172
    %3175 = vrot.lane.b32.xlu0 %v2623, 113
    %v3176 = vpop.permute.xlu0 %3175
    %3177 = vrot.lane.b32.xlu0 %v2624, 113
    %v3178 = vpop.permute.xlu0 %3177
    %v3179 = vsel %vm1448, %v3176, %v3178
    %v3180 = vsel %vm1448, %v3178, %v3176
    %v3181 = vmul.f32 %v3179, %v232
    %v3182 = vmul.f32 %v3180, %v233
    %3183 = vrot.lane.b32.xlu0 %v2625, 113
    %v3184 = vpop.permute.xlu0 %3183
    %3185 = vrot.lane.b32.xlu0 %v2626, 113
    %v3186 = vpop.permute.xlu0 %3185
    %v3187 = vsel %vm1448, %v3184, %v3186
    %v3188 = vsel %vm1448, %v3186, %v3184
    %v3189 = vmul.f32 %v3187, %v232
    %v3190 = vmul.f32 %v3188, %v233
    %3191 = vrot.lane.b32.xlu0 %v2627, 113
    %v3192 = vpop.permute.xlu0 %3191
    %3193 = vrot.lane.b32.xlu0 %v2628, 113
    %v3194 = vpop.permute.xlu0 %3193
    %v3195 = vsel %vm1448, %v3192, %v3194
    %v3196 = vsel %vm1448, %v3194, %v3192
    %v3197 = vmul.f32 %v3195, %v232
    %v3198 = vmul.f32 %v3196, %v233
    %3199 = vrot.lane.b32.xlu0 %v2629, 113
    %v3200 = vpop.permute.xlu0 %3199
    %3201 = vrot.lane.b32.xlu0 %v2630, 113
    %v3202 = vpop.permute.xlu0 %3201
    %v3203 = vsel %vm1448, %v3200, %v3202
    %v3204 = vsel %vm1448, %v3202, %v3200
    %v3205 = vmul.f32 %v3203, %v232
    %v3206 = vmul.f32 %v3204, %v233
    %v3207 = vmul.f32 %v1477, %v3181
    %v3208 = vmul.f32 %v1477, %v3182
    %v3209 = vadd.f32 %v3161, %v3207
    %v3210 = vadd.f32 %v3162, %v3208
    %v3211 = vmul.f32 %v1482, %v3181
    %v3212 = vmul.f32 %v1482, %v3182
    %v3213 = vadd.f32 %v3165, %v3211
    %v3214 = vadd.f32 %v3166, %v3212
    %v3215 = vmul.f32 %v1487, %v3181
    %v3216 = vmul.f32 %v1487, %v3182
    %v3217 = vadd.f32 %v3169, %v3215
    %v3218 = vadd.f32 %v3170, %v3216
    %v3219 = vmul.f32 %v1492, %v3181
    %v3220 = vmul.f32 %v1492, %v3182
    %v3221 = vadd.f32 %v3173, %v3219
    %v3222 = vadd.f32 %v3174, %v3220
    %v3223 = vmul.f32 %v1497, %v3189
    %v3224 = vmul.f32 %v1497, %v3190
    %v3225 = vadd.f32 %v3209, %v3223
    %v3226 = vadd.f32 %v3210, %v3224
    %v3227 = vmul.f32 %v1502, %v3189
    %v3228 = vmul.f32 %v1502, %v3190
    %v3229 = vadd.f32 %v3213, %v3227
    %v3230 = vadd.f32 %v3214, %v3228
    %v3231 = vmul.f32 %v1507, %v3189
    %v3232 = vmul.f32 %v1507, %v3190
    %v3233 = vadd.f32 %v3217, %v3231
    %v3234 = vadd.f32 %v3218, %v3232
    %v3235 = vmul.f32 %v1512, %v3189
    %v3236 = vmul.f32 %v1512, %v3190
    %v3237 = vadd.f32 %v3221, %v3235
    %v3238 = vadd.f32 %v3222, %v3236
    %v3239 = vmul.f32 %v1517, %v3197
    %v3240 = vmul.f32 %v1517, %v3198
    %v3241 = vadd.f32 %v3225, %v3239
    %v3242 = vadd.f32 %v3226, %v3240
    %v3243 = vmul.f32 %v1522, %v3197
    %v3244 = vmul.f32 %v1522, %v3198
    %v3245 = vadd.f32 %v3229, %v3243
    %v3246 = vadd.f32 %v3230, %v3244
    %v3247 = vmul.f32 %v1527, %v3197
    %v3248 = vmul.f32 %v1527, %v3198
    %v3249 = vadd.f32 %v3233, %v3247
    %v3250 = vadd.f32 %v3234, %v3248
    %v3251 = vmul.f32 %v1532, %v3197
    %v3252 = vmul.f32 %v1532, %v3198
    %v3253 = vadd.f32 %v3237, %v3251
    %v3254 = vadd.f32 %v3238, %v3252
    %v3255 = vmul.f32 %v1537, %v3205
    %v3256 = vmul.f32 %v1537, %v3206
    %v3257 = vadd.f32 %v3241, %v3255
    %v3258 = vadd.f32 %v3242, %v3256
    %v3259 = vmul.f32 %v1542, %v3205
    %v3260 = vmul.f32 %v1542, %v3206
    %v3261 = vadd.f32 %v3245, %v3259
    %v3262 = vadd.f32 %v3246, %v3260
    %v3263 = vmul.f32 %v1547, %v3205
    %v3264 = vmul.f32 %v1547, %v3206
    %v3265 = vadd.f32 %v3249, %v3263
    %v3266 = vadd.f32 %v3250, %v3264
    %v3267 = vmul.f32 %v1552, %v3205
    %v3268 = vmul.f32 %v1552, %v3206
    %v3269 = vadd.f32 %v3253, %v3267
    %v3270 = vadd.f32 %v3254, %v3268
    %3271 = vrot.lane.b32.xlu0 %v2623, 112
    %v3272 = vpop.permute.xlu0 %3271
    %3273 = vrot.lane.b32.xlu0 %v2624, 112
    %v3274 = vpop.permute.xlu0 %3273
    %v3275 = vsel %vm1561, %v3272, %v3274
    %v3276 = vsel %vm1561, %v3274, %v3272
    %v3277 = vmul.f32 %v3275, %v236
    %v3278 = vmul.f32 %v3276, %v237
    %3279 = vrot.lane.b32.xlu0 %v2625, 112
    %v3280 = vpop.permute.xlu0 %3279
    %3281 = vrot.lane.b32.xlu0 %v2626, 112
    %v3282 = vpop.permute.xlu0 %3281
    %v3283 = vsel %vm1561, %v3280, %v3282
    %v3284 = vsel %vm1561, %v3282, %v3280
    %v3285 = vmul.f32 %v3283, %v236
    %v3286 = vmul.f32 %v3284, %v237
    %3287 = vrot.lane.b32.xlu0 %v2627, 112
    %v3288 = vpop.permute.xlu0 %3287
    %3289 = vrot.lane.b32.xlu0 %v2628, 112
    %v3290 = vpop.permute.xlu0 %3289
    %v3291 = vsel %vm1561, %v3288, %v3290
    %v3292 = vsel %vm1561, %v3290, %v3288
    %v3293 = vmul.f32 %v3291, %v236
    %v3294 = vmul.f32 %v3292, %v237
    %3295 = vrot.lane.b32.xlu0 %v2629, 112
    %v3296 = vpop.permute.xlu0 %3295
    %3297 = vrot.lane.b32.xlu0 %v2630, 112
    %v3298 = vpop.permute.xlu0 %3297
    %v3299 = vsel %vm1561, %v3296, %v3298
    %v3300 = vsel %vm1561, %v3298, %v3296
    %v3301 = vmul.f32 %v3299, %v236
    %v3302 = vmul.f32 %v3300, %v237
    %v3303 = vmul.f32 %v1590, %v3277
    %v3304 = vmul.f32 %v1590, %v3278
    %v3305 = vadd.f32 %v3257, %v3303
    %v3306 = vadd.f32 %v3258, %v3304
    %v3307 = vmul.f32 %v1595, %v3277
    %v3308 = vmul.f32 %v1595, %v3278
    %v3309 = vadd.f32 %v3261, %v3307
    %v3310 = vadd.f32 %v3262, %v3308
    %v3311 = vmul.f32 %v1600, %v3277
    %v3312 = vmul.f32 %v1600, %v3278
    %v3313 = vadd.f32 %v3265, %v3311
    %v3314 = vadd.f32 %v3266, %v3312
    %v3315 = vmul.f32 %v1605, %v3277
    %v3316 = vmul.f32 %v1605, %v3278
    %v3317 = vadd.f32 %v3269, %v3315
    %v3318 = vadd.f32 %v3270, %v3316
    %v3319 = vmul.f32 %v1610, %v3285
    %v3320 = vmul.f32 %v1610, %v3286
    %v3321 = vadd.f32 %v3305, %v3319
    %v3322 = vadd.f32 %v3306, %v3320
    %v3323 = vmul.f32 %v1615, %v3285
    %v3324 = vmul.f32 %v1615, %v3286
    %v3325 = vadd.f32 %v3309, %v3323
    %v3326 = vadd.f32 %v3310, %v3324
    %v3327 = vmul.f32 %v1620, %v3285
    %v3328 = vmul.f32 %v1620, %v3286
    %v3329 = vadd.f32 %v3313, %v3327
    %v3330 = vadd.f32 %v3314, %v3328
    %v3331 = vmul.f32 %v1625, %v3285
    %v3332 = vmul.f32 %v1625, %v3286
    %v3333 = vadd.f32 %v3317, %v3331
    %v3334 = vadd.f32 %v3318, %v3332
    %v3335 = vmul.f32 %v1630, %v3293
    %v3336 = vmul.f32 %v1630, %v3294
    %v3337 = vadd.f32 %v3321, %v3335
    %v3338 = vadd.f32 %v3322, %v3336
    %v3339 = vmul.f32 %v1635, %v3293
    %v3340 = vmul.f32 %v1635, %v3294
    %v3341 = vadd.f32 %v3325, %v3339
    %v3342 = vadd.f32 %v3326, %v3340
    %v3343 = vmul.f32 %v1640, %v3293
    %v3344 = vmul.f32 %v1640, %v3294
    %v3345 = vadd.f32 %v3329, %v3343
    %v3346 = vadd.f32 %v3330, %v3344
    %v3347 = vmul.f32 %v1645, %v3293
    %v3348 = vmul.f32 %v1645, %v3294
    %v3349 = vadd.f32 %v3333, %v3347
    %v3350 = vadd.f32 %v3334, %v3348
    %v3351 = vmul.f32 %v1650, %v3301
    %v3352 = vmul.f32 %v1650, %v3302
    %v3353 = vadd.f32 %v3337, %v3351
    %v3354 = vadd.f32 %v3338, %v3352
    %v3355 = vmul.f32 %v1655, %v3301
    %v3356 = vmul.f32 %v1655, %v3302
    %v3357 = vadd.f32 %v3341, %v3355
    %v3358 = vadd.f32 %v3342, %v3356
    %v3359 = vmul.f32 %v1660, %v3301
    %v3360 = vmul.f32 %v1660, %v3302
    %v3361 = vadd.f32 %v3345, %v3359
    %v3362 = vadd.f32 %v3346, %v3360
    %v3363 = vmul.f32 %v1665, %v3301
    %v3364 = vmul.f32 %v1665, %v3302
    %v3365 = vadd.f32 %v3349, %v3363
    %v3366 = vadd.f32 %v3350, %v3364
    %3367 = vrot.lane.b32.xlu0 %v2623, 111
    %v3368 = vpop.permute.xlu0 %3367
    %3369 = vrot.lane.b32.xlu0 %v2624, 111
    %v3370 = vpop.permute.xlu0 %3369
    %v3371 = vsel %vm1674, %v3368, %v3370
    %v3372 = vsel %vm1674, %v3370, %v3368
    %v3373 = vmul.f32 %v3371, %v242
    %v3374 = vmul.f32 %v3372, %v243
    %3375 = vrot.lane.b32.xlu0 %v2625, 111
    %v3376 = vpop.permute.xlu0 %3375
    %3377 = vrot.lane.b32.xlu0 %v2626, 111
    %v3378 = vpop.permute.xlu0 %3377
    %v3379 = vsel %vm1674, %v3376, %v3378
    %v3380 = vsel %vm1674, %v3378, %v3376
    %v3381 = vmul.f32 %v3379, %v242
    %v3382 = vmul.f32 %v3380, %v243
    %3383 = vrot.lane.b32.xlu0 %v2627, 111
    %v3384 = vpop.permute.xlu0 %3383
    %3385 = vrot.lane.b32.xlu0 %v2628, 111
    %v3386 = vpop.permute.xlu0 %3385
    %v3387 = vsel %vm1674, %v3384, %v3386
    %v3388 = vsel %vm1674, %v3386, %v3384
    %v3389 = vmul.f32 %v3387, %v242
    %v3390 = vmul.f32 %v3388, %v243
    %3391 = vrot.lane.b32.xlu0 %v2629, 111
    %v3392 = vpop.permute.xlu0 %3391
    %3393 = vrot.lane.b32.xlu0 %v2630, 111
    %v3394 = vpop.permute.xlu0 %3393
    %v3395 = vsel %vm1674, %v3392, %v3394
    %v3396 = vsel %vm1674, %v3394, %v3392
    %v3397 = vmul.f32 %v3395, %v242
    %v3398 = vmul.f32 %v3396, %v243
    %v3399 = vmul.f32 %v1703, %v3373
    %v3400 = vmul.f32 %v1703, %v3374
    %v3401 = vadd.f32 %v3353, %v3399
    %v3402 = vadd.f32 %v3354, %v3400
    %v3403 = vmul.f32 %v1708, %v3373
    %v3404 = vmul.f32 %v1708, %v3374
    %v3405 = vadd.f32 %v3357, %v3403
    %v3406 = vadd.f32 %v3358, %v3404
    %v3407 = vmul.f32 %v1713, %v3373
    %v3408 = vmul.f32 %v1713, %v3374
    %v3409 = vadd.f32 %v3361, %v3407
    %v3410 = vadd.f32 %v3362, %v3408
    %v3411 = vmul.f32 %v1718, %v3373
    %v3412 = vmul.f32 %v1718, %v3374
    %v3413 = vadd.f32 %v3365, %v3411
    %v3414 = vadd.f32 %v3366, %v3412
    %v3415 = vmul.f32 %v1723, %v3381
    %v3416 = vmul.f32 %v1723, %v3382
    %v3417 = vadd.f32 %v3401, %v3415
    %v3418 = vadd.f32 %v3402, %v3416
    %v3419 = vmul.f32 %v1728, %v3381
    %v3420 = vmul.f32 %v1728, %v3382
    %v3421 = vadd.f32 %v3405, %v3419
    %v3422 = vadd.f32 %v3406, %v3420
    %v3423 = vmul.f32 %v1733, %v3381
    %v3424 = vmul.f32 %v1733, %v3382
    %v3425 = vadd.f32 %v3409, %v3423
    %v3426 = vadd.f32 %v3410, %v3424
    %v3427 = vmul.f32 %v1738, %v3381
    %v3428 = vmul.f32 %v1738, %v3382
    %v3429 = vadd.f32 %v3413, %v3427
    %v3430 = vadd.f32 %v3414, %v3428
    %v3431 = vmul.f32 %v1743, %v3389
    %v3432 = vmul.f32 %v1743, %v3390
    %v3433 = vadd.f32 %v3417, %v3431
    %v3434 = vadd.f32 %v3418, %v3432
    %v3435 = vmul.f32 %v1748, %v3389
    %v3436 = vmul.f32 %v1748, %v3390
    %v3437 = vadd.f32 %v3421, %v3435
    %v3438 = vadd.f32 %v3422, %v3436
    %v3439 = vmul.f32 %v1753, %v3389
    %v3440 = vmul.f32 %v1753, %v3390
    %v3441 = vadd.f32 %v3425, %v3439
    %v3442 = vadd.f32 %v3426, %v3440
    %v3443 = vmul.f32 %v1758, %v3389
    %v3444 = vmul.f32 %v1758, %v3390
    %v3445 = vadd.f32 %v3429, %v3443
    %v3446 = vadd.f32 %v3430, %v3444
    %v3447 = vmul.f32 %v1763, %v3397
    %v3448 = vmul.f32 %v1763, %v3398
    %v3449 = vadd.f32 %v3433, %v3447
    %v3450 = vadd.f32 %v3434, %v3448
    %v3451 = vmul.f32 %v1768, %v3397
    %v3452 = vmul.f32 %v1768, %v3398
    %v3453 = vadd.f32 %v3437, %v3451
    %v3454 = vadd.f32 %v3438, %v3452
    %v3455 = vmul.f32 %v1773, %v3397
    %v3456 = vmul.f32 %v1773, %v3398
    %v3457 = vadd.f32 %v3441, %v3455
    %v3458 = vadd.f32 %v3442, %v3456
    %v3459 = vmul.f32 %v1778, %v3397
    %v3460 = vmul.f32 %v1778, %v3398
    %v3461 = vadd.f32 %v3445, %v3459
    %v3462 = vadd.f32 %v3446, %v3460
    %v3463 = vmax.f32 %v3449, 0.0
    %v3464 = vmax.f32 %v3450, 0.0
    %v3465 = vmax.f32 %v3453, 0.0
    %v3466 = vmax.f32 %v3454, 0.0
    %v3467 = vmax.f32 %v3457, 0.0
    %v3468 = vmax.f32 %v3458, 0.0
    %v3469 = vmax.f32 %v3461, 0.0
    %v3470 = vmax.f32 %v3462, 0.0
    %v3473 = vcombine.low %v3463, %v3464
    %v3475 = vunpack.c.l.s4 1966171168
    %v3476 = vunpack.c.0.s8 %v3475
    %v3477 = vlaneseq
    %v3478 = vshrl.u32 %v3477, 7
    %v3479 = vsub.s32 %v3476, %v3478
    %v3480 = vrot.slane %v3473, %v3479
    %v3481 = vcombine.high %v3480, %v3480
    %v3483 = vunpack.c.l.s4 1966171168
    %v3484 = vunpack.c.0.s8 %v3483
    %v3485 = vlaneseq
    %v3486 = vshrl.u32 %v3485, 7
    %v3487 = vsub.s32 %v3484, %v3486
    %v3488 = vrot.slane %v3480, %v3487
    %v3490 = vunpack.c.l.s4 1966171168
    %v3491 = vunpack.c.0.s8 %v3490
    %v3492 = vlaneseq
    %v3493 = vshrl.u32 %v3492, 7
    %v3494 = vsub.s32 %v3491, %v3493
    %v3495 = vrot.slane %v3481, %v3494
    %v3498 = vlaneseq
    %vm3499 = vcmp.ge.s32.totalorder %v3498, 0
    %vm3500 = vcmp.lt.s32.totalorder %v3498, 256
    %vm3501 = vmand %vm3499, %vm3500
    %3502 = vst.msk [vmem:[%s3] ss:$4 sm:$0x3] %vm3501, %v3488
    %s3503 = scalar_lea.vmem %s3, 8
    %3504 = vst.msk [vmem:[%s3503] ss:$4 sm:$0x3] %vm3501, %v3495
    %v3507 = vcombine.low %v3465, %v3466
    %v3509 = vunpack.c.l.s4 1966171168
    %v3510 = vunpack.c.0.s8 %v3509
    %v3511 = vlaneseq
    %v3512 = vshrl.u32 %v3511, 7
    %v3513 = vsub.s32 %v3510, %v3512
    %v3514 = vrot.slane %v3507, %v3513
    %v3515 = vcombine.high %v3514, %v3514
    %v3517 = vunpack.c.l.s4 1966171168
    %v3518 = vunpack.c.0.s8 %v3517
    %v3519 = vlaneseq
    %v3520 = vshrl.u32 %v3519, 7
    %v3521 = vsub.s32 %v3518, %v3520
    %v3522 = vrot.slane %v3514, %v3521
    %v3524 = vunpack.c.l.s4 1966171168
    %v3525 = vunpack.c.0.s8 %v3524
    %v3526 = vlaneseq
    %v3527 = vshrl.u32 %v3526, 7
    %v3528 = vsub.s32 %v3525, %v3527
    %v3529 = vrot.slane %v3515, %v3528
    %s3532 = scalar_lea.vmem %s3, 1
    %3533 = vst.msk [vmem:[%s3532] ss:$4 sm:$0x3] %vm3501, %v3522
    %s3534 = scalar_lea.vmem %s3, 9
    %3535 = vst.msk [vmem:[%s3534] ss:$4 sm:$0x3] %vm3501, %v3529
    %v3538 = vcombine.low %v3467, %v3468
    %v3540 = vunpack.c.l.s4 1966171168
    %v3541 = vunpack.c.0.s8 %v3540
    %v3542 = vlaneseq
    %v3543 = vshrl.u32 %v3542, 7
    %v3544 = vsub.s32 %v3541, %v3543
    %v3545 = vrot.slane %v3538, %v3544
    %v3546 = vcombine.high %v3545, %v3545
    %v3548 = vunpack.c.l.s4 1966171168
    %v3549 = vunpack.c.0.s8 %v3548
    %v3550 = vlaneseq
    %v3551 = vshrl.u32 %v3550, 7
    %v3552 = vsub.s32 %v3549, %v3551
    %v3553 = vrot.slane %v3545, %v3552
    %v3555 = vunpack.c.l.s4 1966171168
    %v3556 = vunpack.c.0.s8 %v3555
    %v3557 = vlaneseq
    %v3558 = vshrl.u32 %v3557, 7
    %v3559 = vsub.s32 %v3556, %v3558
    %v3560 = vrot.slane %v3546, %v3559
    %s3563 = scalar_lea.vmem %s3, 2
    %3564 = vst.msk [vmem:[%s3563] ss:$4 sm:$0x3] %vm3501, %v3553
    %s3565 = scalar_lea.vmem %s3, 10
    %3566 = vst.msk [vmem:[%s3565] ss:$4 sm:$0x3] %vm3501, %v3560
    %v3569 = vcombine.low %v3469, %v3470
    %v3571 = vunpack.c.l.s4 1966171168
    %v3572 = vunpack.c.0.s8 %v3571
    %v3573 = vlaneseq
    %v3574 = vshrl.u32 %v3573, 7
    %v3575 = vsub.s32 %v3572, %v3574
    %v3576 = vrot.slane %v3569, %v3575
    %v3577 = vcombine.high %v3576, %v3576
    %v3579 = vunpack.c.l.s4 1966171168
    %v3580 = vunpack.c.0.s8 %v3579
    %v3581 = vlaneseq
    %v3582 = vshrl.u32 %v3581, 7
    %v3583 = vsub.s32 %v3580, %v3582
    %v3584 = vrot.slane %v3576, %v3583
    %v3586 = vunpack.c.l.s4 1966171168
    %v3587 = vunpack.c.0.s8 %v3586
    %v3588 = vlaneseq
    %v3589 = vshrl.u32 %v3588, 7
    %v3590 = vsub.s32 %v3587, %v3589
    %v3591 = vrot.slane %v3577, %v3590
    %s3594 = scalar_lea.vmem %s3, 3
    %3595 = vst.msk [vmem:[%s3594] ss:$4 sm:$0x3] %vm3501, %v3584
    %s3596 = scalar_lea.vmem %s3, 11
    %3597 = vst.msk [vmem:[%s3596] ss:$4 sm:$0x3] %vm3501, %v3591
    // Predicated region
    $region22: #{cnn_forward.1} parent=1 // pred_check
      _
    $region23: #{cnn_forward.1} parent=1 // pred_check_branch
      %3599 = sbr.rel (0) target = $region25
    $region24: #{cnn_forward.1} parent=1 // pred_region
      _
    $region25: #{cnn_forward.1} parent=1 // pred_fallthru
      _
    // Predicated region
    $region26: #{cnn_forward.1} parent=1 // pred_check
      _
    $region27: #{cnn_forward.1} parent=1 // pred_check_branch
      %3601 = sbr.rel (0) target = $region29
    $region28: #{cnn_forward.1} parent=1 // pred_region
      _
    $region29: #{cnn_forward.1} parent=1 // pred_fallthru
      _
    %3602 = vsyncpa [#allocation3], 1
    %3603 = vsyncpa [#allocation5], 1

</llo_original>
